<compile_context>
chip_gen: v6e
topology: v6e:2x2x1
jax: 0.10.0
libtpu: 0.0.40
codegen_flags: <defaults>
</compile_context>

<pallas_src>
import functools

import jax
import jax.numpy as jnp
from jax import lax
from jax.experimental import pallas as pl
from jax.experimental.pallas import tpu as pltpu

BN_EPS = 1e-5
MAX_TILE_N = 2048   # VMEM-safe upper bound for the points tile on all gens


# ----------------------------------------------------------------------------
# Stage 1: pointwise MLP C->64->128->1024 (+ folded BN shift + ReLU) and the
# running max over points, accumulated directly into the output block.
# ----------------------------------------------------------------------------
def _stn3d_conv_max_kernel(x_ref,
                           w1_ref, b1_ref,
                           w2_ref, b2_ref,
                           w3_ref, b3_ref,
                           o_ref,
                           *, n_points, tile_n):
    nt = pl.program_id(1)

    @pl.when(nt == 0)
    def _init():
        o_ref[...] = jnp.full_like(o_ref, -jnp.inf)

    x = x_ref[0]                                               # (C, TN) points on lanes

    # conv1 (BN scale folded into w1) + shift + relu; contracts the tiny C axis.
    h = lax.dot_general(x, w1_ref[...],
                        dimension_numbers=(((0,), (0,)), ((), ())),
                        preferred_element_type=jnp.float32)    # (TN, 64)
    h = jnp.maximum(h + b1_ref[...], 0.0)

    # conv2 + shift + relu (bf16 operands, f32 MXU accumulation)
    h = jnp.dot(h.astype(jnp.bfloat16), w2_ref[...],
                preferred_element_type=jnp.float32)            # (TN, 128)
    h = jnp.maximum(h + b2_ref[...], 0.0)

    # conv3 + shift + relu
    h = jnp.dot(h.astype(jnp.bfloat16), w3_ref[...],
                preferred_element_type=jnp.float32)            # (TN, 1024)
    h = jnp.maximum(h + b3_ref[...], 0.0)

    def _fold_max(hv):
        o_ref[...] = jnp.maximum(o_ref[...],
                                 hv.max(axis=0).reshape(o_ref.shape))

    rem = n_points % tile_n
    if rem == 0:
        _fold_max(h)
    else:
        n_tiles = pl.num_programs(1)

        @pl.when(nt == n_tiles - 1)        # only the partial last tile is masked
        def _last():
            row = lax.broadcasted_iota(jnp.int32, (tile_n, 1), 0)
            _fold_max(jnp.where(row < rem, h, -jnp.inf))

        @pl.when(nt < n_tiles - 1)
        def _full():
            _fold_max(h)


# ----------------------------------------------------------------------------
# Stage 2: FC head batched over B (one weight pass total, lane-dense input).
# ----------------------------------------------------------------------------
def _stn3d_head_kernel(g_ref,
                       wf1_ref, b4_ref,
                       wf2_ref, b5_ref,
                       wf3_ref, bf3_ref,
                       o_ref):
    g = g_ref[...]                                             # (B, 1024)
    f = jnp.dot(g.astype(jnp.bfloat16), wf1_ref[...],
                preferred_element_type=jnp.float32)            # (B, 512)
    f = jnp.maximum(f + b4_ref[...], 0.0)
    f = jnp.dot(f.astype(jnp.bfloat16), wf2_ref[...],
                preferred_element_type=jnp.float32)            # (B, 256)
    f = jnp.maximum(f + b5_ref[...], 0.0)
    o_ref[...] = jnp.dot(f, wf3_ref[...],
                         preferred_element_type=jnp.float32) + bf3_ref[...]


# ----------------------------------------------------------------------------
# Wrapper
# ----------------------------------------------------------------------------
def _const_spec(shape):
    return pl.BlockSpec(shape, lambda *_: (0,) * len(shape))


@functools.partial(jax.jit, static_argnames=("tile_n",))
def stn3d_forward(x_ncw, params, tile_n=1024):
    """x_ncw: (B, C, N) float32 (native PyTorch NCW layout). Returns (B, 3, 3)."""
    B, C, N = x_ncw.shape
    (w1, b1, w2, b2, w3, b3, wf1, b4, wf2, b5, wf3, bf3i) = params

    # Points tile: multiple of 128 (lane axis), capped for VMEM, or full N.
    tn = min(tile_n, MAX_TILE_N)
    if N <= tn:
        tn = N
    else:
        tn = max(128, (tn // 128) * 128)
    n_tiles = pl.cdiv(N, tn)

    conv_kernel = functools.partial(_stn3d_conv_max_kernel, n_points=N, tile_n=tn)

    # Stage 1: global feature g = max_n relu(bn(conv(...)))  -> (B, 1, 1024)
    g = pl.pallas_call(
        conv_kernel,
        out_shape=jax.ShapeDtypeStruct((B, 1, 1024), jnp.float32),
        grid_spec=pltpu.PrefetchScalarGridSpec(
            num_scalar_prefetch=0,
            grid=(B, n_tiles),
            in_specs=[
                pl.BlockSpec((1, C, tn), lambda b, n: (b, 0, n)),
                _const_spec(w1.shape), _const_spec(b1.shape),
                _const_spec(w2.shape), _const_spec(b2.shape),
                _const_spec(w3.shape), _const_spec(b3.shape),
            ],
            out_specs=pl.BlockSpec((1, 1, 1024), lambda b, n: (b, 0, 0)),
        ),
        compiler_params=pltpu.CompilerParams(
            dimension_semantics=("parallel", "arbitrary"),
            vmem_limit_bytes=32 * 1024 * 1024),
    )(x_ncw, w1, b1, w2, b2, w3, b3)

    g = g.reshape(B, 1024)

    # Stage 2: fc1/fc2/fc3 head batched over B in a single grid step.
    out9 = pl.pallas_call(
        _stn3d_head_kernel,
        out_shape=jax.ShapeDtypeStruct((B, 9), jnp.float32),
        grid_spec=pltpu.PrefetchScalarGridSpec(
            num_scalar_prefetch=0,
            grid=(1,),
            in_specs=[
                pl.BlockSpec((B, 1024), lambda i: (0, 0)),
                _const_spec(wf1.shape), _const_spec(b4.shape),
                _const_spec(wf2.shape), _const_spec(b5.shape),
                _const_spec(wf3.shape), _const_spec(bf3i.shape),
            ],
            out_specs=pl.BlockSpec((B, 9), lambda i: (0, 0)),
        ),
        compiler_params=pltpu.CompilerParams(
            dimension_semantics=("arbitrary",)),
    )(g, wf1, b4, wf2, b5, wf3, bf3i)

    return out9.reshape(B, 3, 3)   # x.view(-1, 3, 3)


# ----------------------------------------------------------------------------
# Deterministic parameter construction (synthetic; mirrors __init__ shapes)
# ----------------------------------------------------------------------------
def _fold_bn(w, lin_bias, gamma, beta, mean, var):
    """Fold inference BatchNorm + layer bias: y = x @ (w*scale) + shift."""
    scale = gamma / jnp.sqrt(var + BN_EPS)
    w_folded = w * scale[None, :]
    shift = (lin_bias - mean) * scale + beta
    return w_folded, shift.reshape(1, -1)


def make_params(key, channel):
    dims = [
        (channel, 64, jnp.float32),    # conv1 + bn1  (tiny K -> keep f32)
        (64, 128, jnp.bfloat16),       # conv2 + bn2
        (128, 1024, jnp.bfloat16),     # conv3 + bn3
        (1024, 512, jnp.bfloat16),     # fc1  + bn4
        (512, 256, jnp.bfloat16),      # fc2  + bn5
    ]
    params = []
    keys = jax.random.split(key, 6 * len(dims) + 2)
    ki = 0
    for cin, cout, wdt in dims:
        w = 0.1 * jax.random.normal(keys[ki], (cin, cout), jnp.float32); ki += 1
        lb = 0.1 * jax.random.normal(keys[ki], (cout,), jnp.float32); ki += 1
        gamma = 1.0 + 0.1 * jax.random.normal(keys[ki], (cout,), jnp.float32); ki += 1
        beta = 0.1 * jax.random.normal(keys[ki], (cout,), jnp.float32); ki += 1
        mean = 0.1 * jax.random.normal(keys[ki], (cout,), jnp.float32); ki += 1
        var = jnp.abs(jax.random.normal(keys[ki], (cout,), jnp.float32)) + 0.5; ki += 1
        w_folded, shift = _fold_bn(w, lb, gamma, beta, mean, var)
        params.extend([w_folded.astype(wdt), shift])
    # fc3 (no BN); identity matrix folded into its bias at build time
    wf3 = 0.1 * jax.random.normal(keys[ki], (256, 9), jnp.float32); ki += 1
    bf3 = 0.1 * jax.random.normal(keys[ki], (9,), jnp.float32).reshape(1, 9); ki += 1
    bf3_plus_iden = bf3 + jnp.eye(3, dtype=jnp.float32).reshape(1, 9)
    params.extend([wf3, bf3_plus_iden])
    return tuple(params)


# ----------------------------------------------------------------------------
# Reference (plain JAX, same precision policy) for a sanity check
# ----------------------------------------------------------------------------
def reference_forward(x_ncw, params):
    (w1, b1, w2, b2, w3, b3, wf1, b4, wf2, b5, wf3, bf3i) = params
    x = jnp.transpose(x_ncw, (0, 2, 1))                         # (B, N, C)
    h = jnp.einsum("bnc,cd->bnd", x, w1, preferred_element_type=jnp.float32)
    h = jnp.maximum(h + b1, 0.0)
    h = jnp.einsum("bnc,cd->bnd", h.astype(jnp.bfloat16), w2,
                   preferred_element_type=jnp.float32)
    h = jnp.maximum(h + b2, 0.0)
    h = jnp.einsum("bnc,cd->bnd", h.astype(jnp.bfloat16), w3,
                   preferred_element_type=jnp.float32)
    h = jnp.maximum(h + b3, 0.0)
    g = jnp.max(h, axis=1)                                      # (B, 1024)
    f = jnp.maximum(jnp.dot(g.astype(jnp.bfloat16), wf1,
                            preferred_element_type=jnp.float32) + b4, 0.0)
    f = jnp.maximum(jnp.dot(f.astype(jnp.bfloat16), wf2,
                            preferred_element_type=jnp.float32) + b5, 0.0)
    out = jnp.dot(f, wf3, preferred_element_type=jnp.float32) + bf3i
    return out.reshape(-1, 3, 3)


if __name__ == "__main__":
    key = jax.random.PRNGKey(0)
    k_x, k_p, k_x2 = jax.random.split(key, 3)

    # Small shapes consistent with the module: batch=2, channels=4, points=16.
    B, C, N = 2, 4, 16
    x = jax.random.normal(k_x, (B, C, N), jnp.float32)
    params = make_params(k_p, C)

    out = jax.block_until_ready(stn3d_forward(x, params))
    ref = reference_forward(x, params)
    assert out.shape == (B, 3, 3)
    assert jnp.allclose(out, ref, atol=1e-2, rtol=1e-2), "mismatch vs reference"

    # Also exercise the multi-tile / partial-last-tile masking path.
    N2 = 300
    x2 = jax.random.normal(k_x2, (B, C, N2), jnp.float32)
    out2 = jax.block_until_ready(stn3d_forward(x2, params, tile_n=128))
    ref2 = reference_forward(x2, params)
    assert jnp.allclose(out2, ref2, atol=1e-2, rtol=1e-2), "mismatch vs reference (tiled)"

    print("KERNEL_OK")
</pallas_src>

<mosaic_0001>
module attributes {stable_mosaic.version = 11 : i64} {
  func.func @_stn3d_head_kernel(%arg0: i32, %arg1: memref<2x1024xf32, #tpu.memory_space<vmem>>, %arg2: memref<1024x512xbf16, #tpu.memory_space<vmem>>, %arg3: memref<1x512xf32, #tpu.memory_space<vmem>>, %arg4: memref<512x256xbf16, #tpu.memory_space<vmem>>, %arg5: memref<1x256xf32, #tpu.memory_space<vmem>>, %arg6: memref<256x9xf32, #tpu.memory_space<vmem>>, %arg7: memref<1x9xf32, #tpu.memory_space<vmem>>, %arg8: memref<2x9xf32, #tpu.memory_space<vmem>>) attributes {dimension_semantics = [#tpu.dimension_semantics<arbitrary>], iteration_bounds = array<i64: 1>, scalar_prefetch = 0 : i64, scratch_operands = 0 : i64, tpu.core_type = #tpu.core_type<tc>, window_params = [{pipeline_mode = #tpu.pipeline_mode<synchronous>, transform_indices = @transform_0, window_bounds = array<i64: 2, 1024>}, {pipeline_mode = #tpu.pipeline_mode<synchronous>, transform_indices = @transform_1, window_bounds = array<i64: 1024, 512>}, {pipeline_mode = #tpu.pipeline_mode<synchronous>, transform_indices = @transform_2, window_bounds = array<i64: 1, 512>}, {pipeline_mode = #tpu.pipeline_mode<synchronous>, transform_indices = @transform_3, window_bounds = array<i64: 512, 256>}, {pipeline_mode = #tpu.pipeline_mode<synchronous>, transform_indices = @transform_4, window_bounds = array<i64: 1, 256>}, {pipeline_mode = #tpu.pipeline_mode<synchronous>, transform_indices = @transform_5, window_bounds = array<i64: 256, 9>}, {pipeline_mode = #tpu.pipeline_mode<synchronous>, transform_indices = @transform_6, window_bounds = array<i64: 1, 9>}, {pipeline_mode = #tpu.pipeline_mode<synchronous>, transform_indices = @transform_7, window_bounds = array<i64: 2, 9>}]} {
    %c0 = arith.constant 0 : index
    %c0_0 = arith.constant 0 : index
    %0 = vector.load %arg1[%c0, %c0_0] : memref<2x1024xf32, #tpu.memory_space<vmem>>, vector<2x1024xf32>
    %1 = arith.truncf %0 : vector<2x1024xf32> to vector<2x1024xbf16>
    %c0_1 = arith.constant 0 : index
    %c0_2 = arith.constant 0 : index
    %2 = vector.load %arg2[%c0_1, %c0_2] : memref<1024x512xbf16, #tpu.memory_space<vmem>>, vector<1024x512xbf16>
    %cst = arith.constant dense<0.000000e+00> : vector<2x512xf32>
    %3 = tpu.matmul %1, %2, %cst {dimension_numbers = #tpu.dot_dimension_numbers<[1], [0], [0], [1], [0, 0, 1, 1], [], []>} : vector<2x1024xbf16>, vector<1024x512xbf16>, vector<2x512xf32> -> vector<2x512xf32>
    %c0_3 = arith.constant 0 : index
    %c0_4 = arith.constant 0 : index
    %4 = vector.load %arg3[%c0_3, %c0_4] : memref<1x512xf32, #tpu.memory_space<vmem>>, vector<1x512xf32>
    %5 = vector.broadcast %4 : vector<1x512xf32> to vector<2x512xf32>
    %6 = arith.addf %3, %5 : vector<2x512xf32>
    %cst_5 = arith.constant 0.000000e+00 : f32
    %7 = vector.broadcast %cst_5 : f32 to vector<2x512xf32>
    %8 = arith.maximumf %6, %7 : vector<2x512xf32>
    %9 = arith.truncf %8 : vector<2x512xf32> to vector<2x512xbf16>
    %c0_6 = arith.constant 0 : index
    %c0_7 = arith.constant 0 : index
    %10 = vector.load %arg4[%c0_6, %c0_7] : memref<512x256xbf16, #tpu.memory_space<vmem>>, vector<512x256xbf16>
    %cst_8 = arith.constant dense<0.000000e+00> : vector<2x256xf32>
    %11 = tpu.matmul %9, %10, %cst_8 {dimension_numbers = #tpu.dot_dimension_numbers<[1], [0], [0], [1], [0, 0, 1, 1], [], []>} : vector<2x512xbf16>, vector<512x256xbf16>, vector<2x256xf32> -> vector<2x256xf32>
    %c0_9 = arith.constant 0 : index
    %c0_10 = arith.constant 0 : index
    %12 = vector.load %arg5[%c0_9, %c0_10] : memref<1x256xf32, #tpu.memory_space<vmem>>, vector<1x256xf32>
    %13 = vector.broadcast %12 : vector<1x256xf32> to vector<2x256xf32>
    %14 = arith.addf %11, %13 : vector<2x256xf32>
    %cst_11 = arith.constant 0.000000e+00 : f32
    %15 = vector.broadcast %cst_11 : f32 to vector<2x256xf32>
    %16 = arith.maximumf %14, %15 : vector<2x256xf32>
    %c0_12 = arith.constant 0 : index
    %c0_13 = arith.constant 0 : index
    %17 = vector.load %arg6[%c0_12, %c0_13] : memref<256x9xf32, #tpu.memory_space<vmem>>, vector<256x9xf32>
    %cst_14 = arith.constant dense<0.000000e+00> : vector<2x9xf32>
    %18 = tpu.matmul %16, %17, %cst_14 {dimension_numbers = #tpu.dot_dimension_numbers<[1], [0], [0], [1], [0, 0, 1, 1], [], []>} : vector<2x256xf32>, vector<256x9xf32>, vector<2x9xf32> -> vector<2x9xf32>
    %c0_15 = arith.constant 0 : index
    %c0_16 = arith.constant 0 : index
    %19 = vector.load %arg7[%c0_15, %c0_16] : memref<1x9xf32, #tpu.memory_space<vmem>>, vector<1x9xf32>
    %20 = vector.broadcast %19 : vector<1x9xf32> to vector<2x9xf32>
    %21 = arith.addf %18, %20 : vector<2x9xf32>
    %c0_17 = arith.constant 0 : index
    %c0_18 = arith.constant 0 : index
    %22 = vector.load %arg8[%c0_17, %c0_18] : memref<2x9xf32, #tpu.memory_space<vmem>>, vector<2x9xf32>
    tpu.vector_store %arg8[%c0_17, %c0_18], %21 {strides = array<i32>} : memref<2x9xf32, #tpu.memory_space<vmem>>, vector<2x9xf32>,
    return
  }
  func.func @transform_0(%arg0: i32) -> (i32, i32) {
    %c0_i32 = arith.constant 0 : i32
    %c0_i32_0 = arith.constant 0 : i32
    %c0_i32_1 = arith.constant 0 : i32
    return %c0_i32, %c0_i32_0 : i32, i32
  }
  func.func @transform_1(%arg0: i32) -> (i32, i32) {
    %c0_i32 = arith.constant 0 : i32
    %c0_i32_0 = arith.constant 0 : i32
    %c0_i32_1 = arith.constant 0 : i32
    return %c0_i32, %c0_i32_0 : i32, i32
  }
  func.func @transform_2(%arg0: i32) -> (i32, i32) {
    %c0_i32 = arith.constant 0 : i32
    %c0_i32_0 = arith.constant 0 : i32
    %c0_i32_1 = arith.constant 0 : i32
    return %c0_i32, %c0_i32_0 : i32, i32
  }
  func.func @transform_3(%arg0: i32) -> (i32, i32) {
    %c0_i32 = arith.constant 0 : i32
    %c0_i32_0 = arith.constant 0 : i32
    %c0_i32_1 = arith.constant 0 : i32
    return %c0_i32, %c0_i32_0 : i32, i32
  }
  func.func @transform_4(%arg0: i32) -> (i32, i32) {
    %c0_i32 = arith.constant 0 : i32
    %c0_i32_0 = arith.constant 0 : i32
    %c0_i32_1 = arith.constant 0 : i32
    return %c0_i32, %c0_i32_0 : i32, i32
  }
  func.func @transform_5(%arg0: i32) -> (i32, i32) {
    %c0_i32 = arith.constant 0 : i32
    %c0_i32_0 = arith.constant 0 : i32
    %c0_i32_1 = arith.constant 0 : i32
    return %c0_i32, %c0_i32_0 : i32, i32
  }
  func.func @transform_6(%arg0: i32) -> (i32, i32) {
    %c0_i32 = arith.constant 0 : i32
    %c0_i32_0 = arith.constant 0 : i32
    %c0_i32_1 = arith.constant 0 : i32
    return %c0_i32, %c0_i32_0 : i32, i32
  }
  func.func @transform_7(%arg0: i32) -> (i32, i32) {
    %c0_i32 = arith.constant 0 : i32
    %c0_i32_0 = arith.constant 0 : i32
    %c0_i32_1 = arith.constant 0 : i32
    return %c0_i32, %c0_i32_0 : i32, i32
  }
}

module attributes {stable_mosaic.version = 11 : i64} {
  func.func @_stn3d_conv_max_kernel(%arg0: i32, %arg1: i32, %arg2: memref<1x4x16xf32, #tpu.memory_space<vmem>>, %arg3: memref<4x64xf32, #tpu.memory_space<vmem>>, %arg4: memref<1x64xf32, #tpu.memory_space<vmem>>, %arg5: memref<64x128xbf16, #tpu.memory_space<vmem>>, %arg6: memref<1x128xf32, #tpu.memory_space<vmem>>, %arg7: memref<128x1024xbf16, #tpu.memory_space<vmem>>, %arg8: memref<1x1024xf32, #tpu.memory_space<vmem>>, %arg9: memref<1x1x1024xf32, #tpu.memory_space<vmem>>) attributes {dimension_semantics = [#tpu.dimension_semantics<parallel>, #tpu.dimension_semantics<arbitrary>], iteration_bounds = array<i64: 2, 1>, scalar_prefetch = 0 : i64, scratch_operands = 0 : i64, tpu.core_type = #tpu.core_type<tc>, window_params = [{transform_indices = @transform_0, window_bounds = array<i64: 1, 4, 16>}, {pipeline_mode = #tpu.pipeline_mode<synchronous>, transform_indices = @transform_1, window_bounds = array<i64: 4, 64>}, {pipeline_mode = #tpu.pipeline_mode<synchronous>, transform_indices = @transform_2, window_bounds = array<i64: 1, 64>}, {pipeline_mode = #tpu.pipeline_mode<synchronous>, transform_indices = @transform_3, window_bounds = array<i64: 64, 128>}, {pipeline_mode = #tpu.pipeline_mode<synchronous>, transform_indices = @transform_4, window_bounds = array<i64: 1, 128>}, {pipeline_mode = #tpu.pipeline_mode<synchronous>, transform_indices = @transform_5, window_bounds = array<i64: 128, 1024>}, {pipeline_mode = #tpu.pipeline_mode<synchronous>, transform_indices = @transform_6, window_bounds = array<i64: 1, 1024>}, {transform_indices = @transform_7, window_bounds = array<i64: 1, 1, 1024>}]} {
    %c0_i32 = arith.constant 0 : i32
    %0 = arith.cmpi eq, %arg1, %c0_i32 : i32
    %1 = arith.extui %0 : i1 to i32
    %c0_i32_0 = arith.constant 0 : i32
    %2 = arith.cmpi ne, %1, %c0_i32_0 : i32
    scf.if %2 {
      %cst_27 = arith.constant 0xFF800000 : f32
      %33 = vector.broadcast %cst_27 : f32 to vector<1x1x1024xf32>
      %c0_28 = arith.constant 0 : index
      %c0_29 = arith.constant 0 : index
      %c0_30 = arith.constant 0 : index
      %34 = vector.load %arg9[%c0_28, %c0_29, %c0_30] : memref<1x1x1024xf32, #tpu.memory_space<vmem>>, vector<1x1x1024xf32>
      tpu.vector_store %arg9[%c0_28, %c0_29, %c0_30], %33 {strides = array<i32>} : memref<1x1x1024xf32, #tpu.memory_space<vmem>>, vector<1x1x1024xf32>,
    } else {
    }
    %c0 = arith.constant 0 : index
    %c0_1 = arith.constant 0 : index
    %c0_2 = arith.constant 0 : index
    %3 = vector.load %arg2[%c0, %c0_1, %c0_2] : memref<1x4x16xf32, #tpu.memory_space<vmem>>, vector<1x4x16xf32>
    %4 = vector.shape_cast %3 : vector<1x4x16xf32> to vector<4x16xf32>
    %c0_3 = arith.constant 0 : index
    %c0_4 = arith.constant 0 : index
    %5 = vector.load %arg3[%c0_3, %c0_4] : memref<4x64xf32, #tpu.memory_space<vmem>>, vector<4x64xf32>
    %cst = arith.constant dense<0.000000e+00> : vector<16x64xf32>
    %6 = tpu.matmul %4, %5, %cst {dimension_numbers = #tpu.dot_dimension_numbers<[0], [0], [1], [1], [0, 1, 1, 1], [], []>} : vector<4x16xf32>, vector<4x64xf32>, vector<16x64xf32> -> vector<16x64xf32>
    %c0_5 = arith.constant 0 : index
    %c0_6 = arith.constant 0 : index
    %7 = vector.load %arg4[%c0_5, %c0_6] : memref<1x64xf32, #tpu.memory_space<vmem>>, vector<1x64xf32>
    %8 = vector.broadcast %7 : vector<1x64xf32> to vector<16x64xf32>
    %9 = arith.addf %6, %8 : vector<16x64xf32>
    %cst_7 = arith.constant 0.000000e+00 : f32
    %10 = vector.broadcast %cst_7 : f32 to vector<16x64xf32>
    %11 = arith.maximumf %9, %10 : vector<16x64xf32>
    %12 = arith.truncf %11 : vector<16x64xf32> to vector<16x64xbf16>
    %c0_8 = arith.constant 0 : index
    %c0_9 = arith.constant 0 : index
    %13 = vector.load %arg5[%c0_8, %c0_9] : memref<64x128xbf16, #tpu.memory_space<vmem>>, vector<64x128xbf16>
    %cst_10 = arith.constant dense<0.000000e+00> : vector<16x128xf32>
    %14 = tpu.matmul %12, %13, %cst_10 {dimension_numbers = #tpu.dot_dimension_numbers<[1], [0], [0], [1], [0, 0, 1, 1], [], []>} : vector<16x64xbf16>, vector<64x128xbf16>, vector<16x128xf32> -> vector<16x128xf32>
    %c0_11 = arith.constant 0 : index
    %c0_12 = arith.constant 0 : index
    %15 = vector.load %arg6[%c0_11, %c0_12] : memref<1x128xf32, #tpu.memory_space<vmem>>, vector<1x128xf32>
    %16 = vector.broadcast %15 : vector<1x128xf32> to vector<16x128xf32>
    %17 = arith.addf %14, %16 : vector<16x128xf32>
    %cst_13 = arith.constant 0.000000e+00 : f32
    %18 = vector.broadcast %cst_13 : f32 to vector<16x128xf32>
    %19 = arith.maximumf %17, %18 : vector<16x128xf32>
    %20 = arith.truncf %19 : vector<16x128xf32> to vector<16x128xbf16>
    %c0_14 = arith.constant 0 : index
    %c0_15 = arith.constant 0 : index
    %21 = vector.load %arg7[%c0_14, %c0_15] : memref<128x1024xbf16, #tpu.memory_space<vmem>>, vector<128x1024xbf16>
    %cst_16 = arith.constant dense<0.000000e+00> : vector<16x1024xf32>
    %22 = tpu.matmul %20, %21, %cst_16 {dimension_numbers = #tpu.dot_dimension_numbers<[1], [0], [0], [1], [0, 0, 1, 1], [], []>} : vector<16x128xbf16>, vector<128x1024xbf16>, vector<16x1024xf32> -> vector<16x1024xf32>
    %c0_17 = arith.constant 0 : index
    %c0_18 = arith.constant 0 : index
    %23 = vector.load %arg8[%c0_17, %c0_18] : memref<1x1024xf32, #tpu.memory_space<vmem>>, vector<1x1024xf32>
    %24 = vector.broadcast %23 : vector<1x1024xf32> to vector<16x1024xf32>
    %25 = arith.addf %22, %24 : vector<16x1024xf32>
    %cst_19 = arith.constant 0.000000e+00 : f32
    %26 = vector.broadcast %cst_19 : f32 to vector<16x1024xf32>
    %27 = arith.maximumf %25, %26 : vector<16x1024xf32>
    %c0_20 = arith.constant 0 : index
    %c0_21 = arith.constant 0 : index
    %c0_22 = arith.constant 0 : index
    %28 = vector.load %arg9[%c0_20, %c0_21, %c0_22] : memref<1x1x1024xf32, #tpu.memory_space<vmem>>, vector<1x1x1024xf32>
    %cst_23 = arith.constant dense<0xFF800000> : vector<1024xf32>
    %29 = vector.multi_reduction <maximumf>, %27, %cst_23 [0] : vector<16x1024xf32> to vector<1024xf32>
    %30 = vector.shape_cast %29 : vector<1024xf32> to vector<1x1x1024xf32>
    %31 = arith.maximumf %28, %30 : vector<1x1x1024xf32>
    %c0_24 = arith.constant 0 : index
    %c0_25 = arith.constant 0 : index
    %c0_26 = arith.constant 0 : index
    %32 = vector.load %arg9[%c0_24, %c0_25, %c0_26] : memref<1x1x1024xf32, #tpu.memory_space<vmem>>, vector<1x1x1024xf32>
    tpu.vector_store %arg9[%c0_24, %c0_25, %c0_26], %31 {strides = array<i32>} : memref<1x1x1024xf32, #tpu.memory_space<vmem>>, vector<1x1x1024xf32>,
    return
  }
  func.func @transform_0(%arg0: i32, %arg1: i32) -> (i32, i32, i32) {
    %c0_i32 = arith.constant 0 : i32
    %c0_i32_0 = arith.constant 0 : i32
    return %arg0, %c0_i32, %arg1 : i32, i32, i32
  }
  func.func @transform_1(%arg0: i32, %arg1: i32) -> (i32, i32) {
    %c0_i32 = arith.constant 0 : i32
    %c0_i32_0 = arith.constant 0 : i32
    %c0_i32_1 = arith.constant 0 : i32
    return %c0_i32, %c0_i32_0 : i32, i32
  }
  func.func @transform_2(%arg0: i32, %arg1: i32) -> (i32, i32) {
    %c0_i32 = arith.constant 0 : i32
    %c0_i32_0 = arith.constant 0 : i32
    %c0_i32_1 = arith.constant 0 : i32
    return %c0_i32, %c0_i32_0 : i32, i32
  }
  func.func @transform_3(%arg0: i32, %arg1: i32) -> (i32, i32) {
    %c0_i32 = arith.constant 0 : i32
    %c0_i32_0 = arith.constant 0 : i32
    %c0_i32_1 = arith.constant 0 : i32
    return %c0_i32, %c0_i32_0 : i32, i32
  }
  func.func @transform_4(%arg0: i32, %arg1: i32) -> (i32, i32) {
    %c0_i32 = arith.constant 0 : i32
    %c0_i32_0 = arith.constant 0 : i32
    %c0_i32_1 = arith.constant 0 : i32
    return %c0_i32, %c0_i32_0 : i32, i32
  }
  func.func @transform_5(%arg0: i32, %arg1: i32) -> (i32, i32) {
    %c0_i32 = arith.constant 0 : i32
    %c0_i32_0 = arith.constant 0 : i32
    %c0_i32_1 = arith.constant 0 : i32
    return %c0_i32, %c0_i32_0 : i32, i32
  }
  func.func @transform_6(%arg0: i32, %arg1: i32) -> (i32, i32) {
    %c0_i32 = arith.constant 0 : i32
    %c0_i32_0 = arith.constant 0 : i32
    %c0_i32_1 = arith.constant 0 : i32
    return %c0_i32, %c0_i32_0 : i32, i32
  }
  func.func @transform_7(%arg0: i32, %arg1: i32) -> (i32, i32, i32) {
    %c0_i32 = arith.constant 0 : i32
    %c0_i32_0 = arith.constant 0 : i32
    %c0_i32_1 = arith.constant 0 : i32
    return %arg0, %c0_i32, %c0_i32_0 : i32, i32, i32
  }
}

</mosaic_0001>

<llo_original>
// kernel: stn3d_forward.2
$region0: #{stn3d_forward.2}
  #allocation0 [shape = 'u32[]', space=smem, size = 0x4, offset = 0x4, fixed_abs, tag = 'smem constant byte address 0x4 - core index']
  #allocation1 [shape = 'u32[144,128]{1,0:T(1,128)}', space=vmem, size = 0x12000, scoped, tag = 'internal scratch']
  %s0 = inlined_call_operand.hbm [shape: f32[2,4,16], index: 0, kind: input, shape index: {}]
  %s1 = inlined_call_operand.hbm [shape: f32[4,64], index: 1, kind: input, shape index: {}]
  %s2 = inlined_call_operand.hbm [shape: f32[1,64], index: 2, kind: input, shape index: {}]
  %s3 = inlined_call_operand.hbm [shape: bf16[64,128], index: 3, kind: input, shape index: {}]
  %s4 = inlined_call_operand.hbm [shape: f32[1,128], index: 4, kind: input, shape index: {}]
  %s5 = inlined_call_operand.hbm [shape: bf16[128,1024], index: 5, kind: input, shape index: {}]
  %s6 = inlined_call_operand.hbm [shape: f32[1,1024], index: 6, kind: input, shape index: {}]
  %s7 = inlined_call_operand.vmem [shape: f32[2,1,1024], index: 7, kind: output, shape index: {}]
  %s8 = sld [smem:[#allocation0]]
  $region93: #{stn3d_forward.2} parent=0
    _
  %s10 = ssub.s32 1, %s8
  %s11 = scalar_select 0, %s10, %s8
  $region1: #{stn3d_forward.2} parent=0
    #allocation2 [shape = 'u8[4096]{0}', space=vmem, size = 0x1000, scoped, tag = 'input window, operand 0']
    #allocation3 [shape = 's32[2]{0}', space=sflag, size = 0x8, scoped, tag = 'scoped memory for stn3d_forward.2']
    #allocation4 [shape = 'u8[2048]{0}', space=vmem, size = 0x800, scoped, tag = 'input window, operand 1, single buffered']
    #allocation5 [shape = 's32[1]{0}', space=sflag, size = 0x4, scoped, tag = 'scoped memory for stn3d_forward.2']
    #allocation6 [shape = 'u8[512]{0}', space=vmem, size = 0x400, scoped, tag = 'input window, operand 2, single buffered']
    #allocation7 [shape = 'u8[16384]{0}', space=vmem, size = 0x4000, scoped, tag = 'input window, operand 3, single buffered']
    #allocation8 [shape = 's32[1]{0}', space=sflag, size = 0x4, scoped, tag = 'scoped memory for stn3d_forward.2']
    #allocation9 [shape = 'u8[512]{0}', space=vmem, size = 0x400, scoped, tag = 'input window, operand 4, single buffered']
    #allocation10 [shape = 'u8[262144]{0}', space=vmem, size = 0x40000, scoped, tag = 'input window, operand 5, single buffered']
    #allocation11 [shape = 's32[1]{0}', space=sflag, size = 0x4, scoped, tag = 'scoped memory for stn3d_forward.2']
    #allocation12 [shape = 'u8[4096]{0}', space=vmem, size = 0x1000, scoped, tag = 'input window, operand 6, single buffered']
    %12 = vsyncpa [#allocation3], 0
    %s13 = scalar_lea.sflag [#allocation3], 1
    %14 = vsyncpa %s13, 0
    %15 = vsyncpa [#allocation5], 0
    %16 = vsyncpa [#allocation8], 0
    %17 = vsyncpa [#allocation11], 0
    loop: start=0, step=1, limit=4
    $region2: #{stn3d_forward.2} parent=1 // loop_pre_header
      _
    $region3: #{stn3d_forward.2} parent=1 // loop_header
      %s19 = sphi 0, %s23
      %p20 = scmp.ge.s32.totalorder %s19, 4
      %s26 = sphi 0, %s38
      %s27 = sphi 0, %s34
      %s28 = sphi 0, %s26
      %s29 = sphi 0, %s27
      %s30 = sphi 0, %s28
      %s31 = sphi 0, %s29
      %s43 = sphi 0, %s45
      %s46 = sphi 0, %s43
      %s47 = sphi 0, %s46
      %s63 = sphi 0, %s47
      %s67 = sphi 0, %s67
      %s69 = sphi 0, %s67
      %s70 = sphi 0, %s69
      %s84 = sphi 0, %s70
      %s88 = sphi 0, %s88
      %s90 = sphi 0, %s88
      %s91 = sphi 0, %s90
      %s105 = sphi 0, %s91
      %s109 = sphi 0, %s109
      %s111 = sphi 0, %s109
      %s112 = sphi 0, %s111
      %s126 = sphi 0, %s112
      %s130 = sphi 0, %s130
      %s132 = sphi 0, %s130
      %s133 = sphi 0, %s132
      %s147 = sphi 0, %s133
      %s151 = sphi 0, %s151
      %s153 = sphi 0, %s151
      %s154 = sphi 0, %s153
      %s168 = sphi 0, %s154
      %s172 = sphi 0, %s172
      %s174 = sphi 0, %s172
      %s175 = sphi 0, %s174
      %s189 = sphi 0, %s175
      %s195 = sphi 0, %s197
      %s198 = sphi 0, %s195
      %s199 = sphi 0, %s198
      %s215 = sphi 0, %s199
    $region4: #{stn3d_forward.2} parent=1 // loop_header_branch
      %22 = sbr.rel (%p20) target = $region8
    $region5: #{stn3d_forward.2} parent=1 // loop_body
      %s24 = ssub.s32 %s19, 1
      %s25 = ssub.s32 %s19, 2
      %s32 = sadd.s32 1, %s27
      %p33 = scmp.ge.s32.totalorder %s32, 1
      %s34 = scalar_select %p33, 0, %s32
      %s35 = sadd.s32 1, %s26
      %s36 = scalar_select %p33, %s35, %s26
      %p37 = scmp.ge.s32.totalorder %s36, 2
      %s38 = scalar_select %p37, 0, %s36
      %s39 = ssub.s32 %s26, %s38
      %s40 = ssub.s32 %s27, %s34
      %s41 = sor.u32 %s39, %s40
      %p42 = scmp.eq.s32.totalorder %s41, 0
      %s44 = sadd.s32 %s43, 1
      %s45 = scalar_select %p42, %s43, %s44
      %p48 = pneg %p42
      %p49 = scmp.eq.s32.totalorder %s19, 1
      %p50 = por %p48, %p49
      %p51 = scmp.ne.s32.totalorder %s43, %s46
      %p52 = scmp.eq.s32.totalorder %s19, 0
      %p53 = por %p51, %p52
      %p54 = scmp.ne.s32.totalorder %s43, %s46
      %p55 = scmp.eq.s32.totalorder %s24, 1
      %p56 = por %p54, %p55
      %p57 = scmp.ne.s32.totalorder %s46, %s47
      %p58 = scmp.eq.s32.totalorder %s24, 0
      %p59 = por %p57, %p58
      %p60 = scmp.ne.s32.totalorder %s46, %s47
      %p61 = scmp.eq.s32.totalorder %s25, 1
      %p62 = por %p60, %p61
      %p64 = scmp.ne.s32.totalorder %s47, %s63
      %p65 = scmp.eq.s32.totalorder %s25, 0
      %p66 = por %p64, %p65
      %s68 = sadd.s32 %s67, 1
      %p71 = scmp.eq.s32.totalorder %s19, 1
      %p72 = scmp.ne.s32.totalorder %s67, %s69
      %p73 = scmp.eq.s32.totalorder %s19, 0
      %p74 = por %p72, %p73
      %p75 = scmp.ne.s32.totalorder %s67, %s69
      %p76 = scmp.eq.s32.totalorder %s24, 1
      %p77 = por %p75, %p76
      %p78 = scmp.ne.s32.totalorder %s69, %s70
      %p79 = scmp.eq.s32.totalorder %s24, 0
      %p80 = por %p78, %p79
      %p81 = scmp.ne.s32.totalorder %s69, %s70
      %p82 = scmp.eq.s32.totalorder %s25, 1
      %p83 = por %p81, %p82
      %p85 = scmp.ne.s32.totalorder %s70, %s84
      %p86 = scmp.eq.s32.totalorder %s25, 0
      %p87 = por %p85, %p86
      %s89 = sadd.s32 %s88, 1
      %p92 = scmp.eq.s32.totalorder %s19, 1
      %p93 = scmp.ne.s32.totalorder %s88, %s90
      %p94 = scmp.eq.s32.totalorder %s19, 0
      %p95 = por %p93, %p94
      %p96 = scmp.ne.s32.totalorder %s88, %s90
      %p97 = scmp.eq.s32.totalorder %s24, 1
      %p98 = por %p96, %p97
      %p99 = scmp.ne.s32.totalorder %s90, %s91
      %p100 = scmp.eq.s32.totalorder %s24, 0
      %p101 = por %p99, %p100
      %p102 = scmp.ne.s32.totalorder %s90, %s91
      %p103 = scmp.eq.s32.totalorder %s25, 1
      %p104 = por %p102, %p103
      %p106 = scmp.ne.s32.totalorder %s91, %s105
      %p107 = scmp.eq.s32.totalorder %s25, 0
      %p108 = por %p106, %p107
      %s110 = sadd.s32 %s109, 1
      %p113 = scmp.eq.s32.totalorder %s19, 1
      %p114 = scmp.ne.s32.totalorder %s109, %s111
      %p115 = scmp.eq.s32.totalorder %s19, 0
      %p116 = por %p114, %p115
      %p117 = scmp.ne.s32.totalorder %s109, %s111
      %p118 = scmp.eq.s32.totalorder %s24, 1
      %p119 = por %p117, %p118
      %p120 = scmp.ne.s32.totalorder %s111, %s112
      %p121 = scmp.eq.s32.totalorder %s24, 0
      %p122 = por %p120, %p121
      %p123 = scmp.ne.s32.totalorder %s111, %s112
      %p124 = scmp.eq.s32.totalorder %s25, 1
      %p125 = por %p123, %p124
      %p127 = scmp.ne.s32.totalorder %s112, %s126
      %p128 = scmp.eq.s32.totalorder %s25, 0
      %p129 = por %p127, %p128
      %s131 = sadd.s32 %s130, 1
      %p134 = scmp.eq.s32.totalorder %s19, 1
      %p135 = scmp.ne.s32.totalorder %s130, %s132
      %p136 = scmp.eq.s32.totalorder %s19, 0
      %p137 = por %p135, %p136
      %p138 = scmp.ne.s32.totalorder %s130, %s132
      %p139 = scmp.eq.s32.totalorder %s24, 1
      %p140 = por %p138, %p139
      %p141 = scmp.ne.s32.totalorder %s132, %s133
      %p142 = scmp.eq.s32.totalorder %s24, 0
      %p143 = por %p141, %p142
      %p144 = scmp.ne.s32.totalorder %s132, %s133
      %p145 = scmp.eq.s32.totalorder %s25, 1
      %p146 = por %p144, %p145
      %p148 = scmp.ne.s32.totalorder %s133, %s147
      %p149 = scmp.eq.s32.totalorder %s25, 0
      %p150 = por %p148, %p149
      %s152 = sadd.s32 %s151, 1
      %p155 = scmp.eq.s32.totalorder %s19, 1
      %p156 = scmp.ne.s32.totalorder %s151, %s153
      %p157 = scmp.eq.s32.totalorder %s19, 0
      %p158 = por %p156, %p157
      %p159 = scmp.ne.s32.totalorder %s151, %s153
      %p160 = scmp.eq.s32.totalorder %s24, 1
      %p161 = por %p159, %p160
      %p162 = scmp.ne.s32.totalorder %s153, %s154
      %p163 = scmp.eq.s32.totalorder %s24, 0
      %p164 = por %p162, %p163
      %p165 = scmp.ne.s32.totalorder %s153, %s154
      %p166 = scmp.eq.s32.totalorder %s25, 1
      %p167 = por %p165, %p166
      %p169 = scmp.ne.s32.totalorder %s154, %s168
      %p170 = scmp.eq.s32.totalorder %s25, 0
      %p171 = por %p169, %p170
      %s173 = sadd.s32 %s172, 1
      %p176 = scmp.eq.s32.totalorder %s19, 1
      %p177 = scmp.ne.s32.totalorder %s172, %s174
      %p178 = scmp.eq.s32.totalorder %s19, 0
      %p179 = por %p177, %p178
      %p180 = scmp.ne.s32.totalorder %s172, %s174
      %p181 = scmp.eq.s32.totalorder %s24, 1
      %p182 = por %p180, %p181
      %p183 = scmp.ne.s32.totalorder %s174, %s175
      %p184 = scmp.eq.s32.totalorder %s24, 0
      %p185 = por %p183, %p184
      %p186 = scmp.ne.s32.totalorder %s174, %s175
      %p187 = scmp.eq.s32.totalorder %s25, 1
      %p188 = por %p186, %p187
      %p190 = scmp.ne.s32.totalorder %s175, %s189
      %p191 = scmp.eq.s32.totalorder %s25, 0
      %p192 = por %p190, %p191
      %s193 = ssub.s32 %s26, %s38
      %p194 = scmp.eq.s32.totalorder %s193, 0
      %s196 = sadd.s32 %s195, 1
      %s197 = scalar_select %p194, %s195, %s196
      %p200 = pneg %p194
      %p201 = scmp.eq.s32.totalorder %s19, 1
      %p202 = por %p200, %p201
      %p203 = scmp.ne.s32.totalorder %s195, %s198
      %p204 = scmp.eq.s32.totalorder %s19, 0
      %p205 = por %p203, %p204
      %p206 = scmp.ne.s32.totalorder %s195, %s198
      %p207 = scmp.eq.s32.totalorder %s24, 1
      %p208 = por %p206, %p207
      %p209 = scmp.ne.s32.totalorder %s198, %s199
      %p210 = scmp.eq.s32.totalorder %s24, 0
      %p211 = por %p209, %p210
      %p212 = scmp.ne.s32.totalorder %s198, %s199
      %p213 = scmp.eq.s32.totalorder %s25, 1
      %p214 = por %p212, %p213
      %p216 = scmp.ne.s32.totalorder %s199, %s215
      %p217 = scmp.eq.s32.totalorder %s25, 0
      %p218 = por %p216, %p217
      %p219 = scmp.le.s32.totalorder 1, %s19
      %p220 = scmp.lt.s32.totalorder %s19, 3
      %p221 = pnand %p219, %p220
      %p222 = pneg %p221
      // Predicated region
      $region9: #{stn3d_forward.2} parent=5 // pred_check
        _
      $region10: #{stn3d_forward.2} parent=5 // pred_check_branch
        %224 = sbr.rel (%p221) target = $region12
      $region11: #{stn3d_forward.2} parent=5 // pred_region
        %s225 = ssub.s32 %s19, 1
        // Predicated region
        $region13: #{stn3d_forward.2} parent=11 // pred_check
          %p226 = pneg %p80
        $region14: #{stn3d_forward.2} parent=11 // pred_check_branch
          %228 = sbr.rel (%p226) target = $region16
        $region15: #{stn3d_forward.2} parent=11 // pred_region
          %s230 = ssub.s32 64, 64
          %231 = vsyncadd [#allocation5], %s230
          %s233 = sshll.u32 [#allocation4], 4
          %s234 = int_to_ptr.vmem [resolvable:$true] %s233
          %236 = dma.hbm_to_vmem [thread:$0]  %s1, 64, %s234, [#allocation5]
        $region16: #{stn3d_forward.2} parent=11 // pred_fallthru
          _
        // Predicated region
        $region17: #{stn3d_forward.2} parent=11 // pred_check
          %p237 = pneg %p101
        $region18: #{stn3d_forward.2} parent=11 // pred_check_branch
          %239 = sbr.rel (%p237) target = $region20
        $region19: #{stn3d_forward.2} parent=11 // pred_region
          %s241 = ssub.s32 16, 16
          %242 = vsyncadd [#allocation5], %s241
          %s244 = sshll.u32 [#allocation6], 4
          %s245 = int_to_ptr.vmem [resolvable:$true] %s244
          %247 = dma.hbm_to_vmem [thread:$0]  %s2, 16, %s245, [#allocation5]
        $region20: #{stn3d_forward.2} parent=11 // pred_fallthru
          _
        // Predicated region
        $region21: #{stn3d_forward.2} parent=11 // pred_check
          %p248 = pneg %p122
        $region22: #{stn3d_forward.2} parent=11 // pred_check_branch
          %250 = sbr.rel (%p248) target = $region24
        $region23: #{stn3d_forward.2} parent=11 // pred_region
          %s252 = ssub.s32 512, 512
          %253 = vsyncadd [#allocation8], %s252
          %s254 = sshll.u32 [#allocation7], 4
          %s255 = int_to_ptr.vmem [resolvable:$true] %s254
          %260 = dma.hbm_to_vmem [thread:$0]  %s3, 512, %s255, [#allocation8], 64, 64, 4
        $region24: #{stn3d_forward.2} parent=11 // pred_fallthru
          _
        // Predicated region
        $region25: #{stn3d_forward.2} parent=11 // pred_check
          %p261 = pneg %p143
        $region26: #{stn3d_forward.2} parent=11 // pred_check_branch
          %263 = sbr.rel (%p261) target = $region28
        $region27: #{stn3d_forward.2} parent=11 // pred_region
          %s265 = ssub.s32 16, 16
          %266 = vsyncadd [#allocation8], %s265
          %s268 = sshll.u32 [#allocation9], 4
          %s269 = int_to_ptr.vmem [resolvable:$true] %s268
          %271 = dma.hbm_to_vmem [thread:$0]  %s4, 16, %s269, [#allocation8]
        $region28: #{stn3d_forward.2} parent=11 // pred_fallthru
          _
        // Predicated region
        $region29: #{stn3d_forward.2} parent=11 // pred_check
          %p272 = pneg %p164
        $region30: #{stn3d_forward.2} parent=11 // pred_check_branch
          %274 = sbr.rel (%p272) target = $region32
        $region31: #{stn3d_forward.2} parent=11 // pred_region
          %s276 = ssub.s32 8192, 8192
          %277 = vsyncadd [#allocation11], %s276
          %s278 = sshll.u32 [#allocation10], 4
          %s279 = int_to_ptr.vmem [resolvable:$true] %s278
          %284 = dma.hbm_to_vmem [thread:$0]  %s5, 8192, %s279, [#allocation11], 512, 512, 32
        $region32: #{stn3d_forward.2} parent=11 // pred_fallthru
          _
        // Predicated region
        $region33: #{stn3d_forward.2} parent=11 // pred_check
          %p285 = pneg %p185
        $region34: #{stn3d_forward.2} parent=11 // pred_check_branch
          %287 = sbr.rel (%p285) target = $region36
        $region35: #{stn3d_forward.2} parent=11 // pred_region
          %s289 = ssub.s32 128, 128
          %290 = vsyncadd [#allocation11], %s289
          %s292 = sshll.u32 [#allocation12], 4
          %s293 = int_to_ptr.vmem [resolvable:$true] %s292
          %295 = dma.hbm_to_vmem [thread:$0]  %s6, 128, %s293, [#allocation11]
        $region36: #{stn3d_forward.2} parent=11 // pred_fallthru
          _
      $region12: #{stn3d_forward.2} parent=5 // pred_fallthru
        _
      %p296 = scmp.lt.s32.totalorder %s19, 2
      // Predicated region
      $region37: #{stn3d_forward.2} parent=5 // pred_check
        %p297 = pneg %p296
      $region38: #{stn3d_forward.2} parent=5 // pred_check_branch
        %299 = sbr.rel (%p297) target = $region40
      $region39: #{stn3d_forward.2} parent=5 // pred_region
        // Predicated region
        $region41: #{stn3d_forward.2} parent=39 // pred_check
          %p300 = pneg %p53
        $region42: #{stn3d_forward.2} parent=39 // pred_check_branch
          %302 = sbr.rel (%p300) target = $region44
        $region43: #{stn3d_forward.2} parent=39 // pred_region
          %s303 = sand.u32 %s43, 1
          %s304 = scalar_lea.sflag [#allocation3], %s303
          %s305 = sand.u32 %s43, 1
          %s306 = smul.addr %s305, 4
          %s307 = scalar_lea.vmem [#allocation2], %s306
          %s309 = ssub.s32 64, 64
          %310 = vsyncadd %s304, %s309
          %s311 = sadd.s32 %s27, %s26
          %s312 = smul.addr %s311, 64
          %s313 = scalar_lea.hbm %s0, %s312
          %s315 = sshll.u32 %s307, 4
          %s316 = int_to_ptr.vmem [resolvable:$true] %s315
          %318 = dma.hbm_to_vmem [thread:$0]  %s313, 64, %s316, %s304
        $region44: #{stn3d_forward.2} parent=39 // pred_fallthru
          _
      $region40: #{stn3d_forward.2} parent=5 // pred_fallthru
        _
      %p319 = scmp.le.s32.totalorder 1, %s19
      %p320 = scmp.lt.s32.totalorder %s19, 3
      %p321 = pnand %p319, %p320
      %p322 = pneg %p321
      // Predicated region
      $region45: #{stn3d_forward.2} parent=5 // pred_check
        _
      $region46: #{stn3d_forward.2} parent=5 // pred_check_branch
        %324 = sbr.rel (%p321) target = $region48
      $region47: #{stn3d_forward.2} parent=5 // pred_region
        %s325 = ssub.s32 %s19, 1
        %s326 = sand.u32 %s46, 1
        %s327 = scalar_lea.sflag [#allocation3], %s326
        %s328 = sand.u32 %s46, 1
        %s329 = smul.addr %s328, 4
        %s330 = scalar_lea.vmem [#allocation2], %s329
        // Predicated region
        $region49: #{stn3d_forward.2} parent=47 // pred_check
          %p331 = pneg %p59
        $region50: #{stn3d_forward.2} parent=47 // pred_check_branch
          %333 = sbr.rel (%p331) target = $region52
        $region51: #{stn3d_forward.2} parent=47 // pred_region
          %334 = dma.done %s327, 64
        $region52: #{stn3d_forward.2} parent=47 // pred_fallthru
          _
        // Predicated region
        $region53: #{stn3d_forward.2} parent=47 // pred_check
          %p335 = pneg %p80
        $region54: #{stn3d_forward.2} parent=47 // pred_check_branch
          %337 = sbr.rel (%p335) target = $region56
        $region55: #{stn3d_forward.2} parent=47 // pred_region
          %338 = dma.done [#allocation5], 64
        $region56: #{stn3d_forward.2} parent=47 // pred_fallthru
          _
        // Predicated region
        $region57: #{stn3d_forward.2} parent=47 // pred_check
          %p339 = pneg %p101
        $region58: #{stn3d_forward.2} parent=47 // pred_check_branch
          %341 = sbr.rel (%p339) target = $region60
        $region59: #{stn3d_forward.2} parent=47 // pred_region
          %342 = dma.done [#allocation5], 16
        $region60: #{stn3d_forward.2} parent=47 // pred_fallthru
          _
        // Predicated region
        $region61: #{stn3d_forward.2} parent=47 // pred_check
          %p343 = pneg %p122
        $region62: #{stn3d_forward.2} parent=47 // pred_check_branch
          %345 = sbr.rel (%p343) target = $region64
        $region63: #{stn3d_forward.2} parent=47 // pred_region
          %346 = dma.done [#allocation8], 512
        $region64: #{stn3d_forward.2} parent=47 // pred_fallthru
          _
        // Predicated region
        $region65: #{stn3d_forward.2} parent=47 // pred_check
          %p347 = pneg %p143
        $region66: #{stn3d_forward.2} parent=47 // pred_check_branch
          %349 = sbr.rel (%p347) target = $region68
        $region67: #{stn3d_forward.2} parent=47 // pred_region
          %350 = dma.done [#allocation8], 16
        $region68: #{stn3d_forward.2} parent=47 // pred_fallthru
          _
        // Predicated region
        $region69: #{stn3d_forward.2} parent=47 // pred_check
          %p351 = pneg %p164
        $region70: #{stn3d_forward.2} parent=47 // pred_check_branch
          %353 = sbr.rel (%p351) target = $region72
        $region71: #{stn3d_forward.2} parent=47 // pred_region
          %354 = dma.done [#allocation11], 8192
        $region72: #{stn3d_forward.2} parent=47 // pred_fallthru
          _
        // Predicated region
        $region73: #{stn3d_forward.2} parent=47 // pred_check
          %p355 = pneg %p185
        $region74: #{stn3d_forward.2} parent=47 // pred_check_branch
          %357 = sbr.rel (%p355) target = $region76
        $region75: #{stn3d_forward.2} parent=47 // pred_region
          %358 = dma.done [#allocation11], 128
        $region76: #{stn3d_forward.2} parent=47 // pred_fallthru
          _
        %s359 = sand.u32 %s46, 1
        %s360 = scalar_lea.sflag [#allocation3], %s359
        %s361 = sand.u32 %s46, 1
        %s362 = smul.addr %s361, 4
        %s363 = scalar_lea.vmem [#allocation2], %s362
        %p364 = pneg %p59
        %p365 = pneg %p56
        %p366 = pneg %p80
        %p367 = pneg %p77
        %p368 = pneg %p101
        %p369 = pneg %p98
        %p370 = pneg %p122
        %p371 = pneg %p119
        %p372 = pneg %p143
        %p373 = pneg %p140
        %p374 = pneg %p164
        %p375 = pneg %p161
        %p376 = pneg %p185
        %p377 = pneg %p182
        %p378 = pneg %p211
        %p379 = pneg %p208
        %p380 = scmp.lt.s32.totalorder %s28, 1
        %s381 = scalar_select %p380, %s28, 1
        %s382 = smul.addr %s381, 8
        %s383 = scalar_lea.vmem %s7, %s382
        %p384 = scmp.lt.s32.totalorder %s28, 1
        %s385 = scalar_select %p384, %s28, 1
        %s386 = smul.addr %s385, 8
        %s387 = scalar_lea.vmem %s7, %s386
        %p389 = scmp.eq.s32.totalorder %s29, 0
        // Predicated region
        $region77: #{stn3d_forward.2} parent=47 // pred_check
          %p390 = pneg %p389
        $region78: #{stn3d_forward.2} parent=47 // pred_check_branch
          %392 = sbr.rel (%p390) target = $region80
        $region79: #{stn3d_forward.2} parent=47 // pred_region
          %393 = vst [vmem:[%s387] sm:$0xff] -inf
        $region80: #{stn3d_forward.2} parent=47 // pred_fallthru
          _
        %v394 = vld [vmem:[%s330] sm:$0xf]
        %v395 = vld [vmem:[#allocation4] sm:$0xf]
        %v396 = vld [vmem:[#allocation6] sm:$0x1]
        %v398 = vlaneseq
        %v399 = vshrl.u32 %v398, 7
        %v400 = vsub.s32 0, %v399
        %v401 = vrot.slane %v396, %v400
        %403 = vxpose.xlu0.b32.start [1/16] %v394, 128
        %404 = vxpose.xlu0.b32.cont [2/16] 0.0, 128
        %405 = vxpose.xlu0.b32.cont [3/16] 0.0, 128
        %406 = vxpose.xlu0.b32.cont [4/16] 0.0, 128
        %407 = vxpose.xlu0.b32.cont [5/16] 0.0, 128
        %408 = vxpose.xlu0.b32.cont [6/16] 0.0, 128
        %409 = vxpose.xlu0.b32.cont [7/16] 0.0, 128
        %410 = vxpose.xlu0.b32.cont [8/16] 0.0, 128
        %411 = vxpose.xlu0.b32.cont [9/16] 0.0, 128
        %412 = vxpose.xlu0.b32.cont [10/16] 0.0, 128
        %413 = vxpose.xlu0.b32.cont [11/16] 0.0, 128
        %414 = vxpose.xlu0.b32.cont [12/16] 0.0, 128
        %415 = vxpose.xlu0.b32.cont [13/16] 0.0, 128
        %416 = vxpose.xlu0.b32.cont [14/16] 0.0, 128
        %417 = vxpose.xlu0.b32.cont [15/16] 0.0, 128
        %418 = vxpose.xlu0.b32.end [16/16] 0.0, 128
        %v419 = vpop.trf.xlu0
        %v420 = vpop.trf.xlu0
        %v421 = vpop.trf.xlu0
        %v422 = vpop.trf.xlu0
        %v423 = vpop.trf.xlu0
        %v424 = vpop.trf.xlu0
        %v425 = vpop.trf.xlu0
        %v426 = vpop.trf.xlu0
        %v427 = vpop.trf.xlu0
        %v428 = vpop.trf.xlu0
        %v429 = vpop.trf.xlu0
        %v430 = vpop.trf.xlu0
        %v431 = vpop.trf.xlu0
        %v432 = vpop.trf.xlu0
        %v433 = vpop.trf.xlu0
        %v434 = vpop.trf.xlu0
        %vm435 = vcmask 31744
        %v437 = vsel %vm435, %v419, 0
        %v440 = vsel %vm435, %v420, 0
        %vm442 = vcmask 1043456
        %v444 = vsel %vm442, %v395, 0
        %446 = vmatprep.subr.mxu0 0.0
        %447 = vmatpush1.msra.mxu0 0.0
        %448 = vmatprep.subr.mxu0 0.0
        %449 = vmatpush1.msra.mxu0 0.0
        %450 = vmatprep.subr.mxu0 0.0
        %451 = vmatpush1.msra.mxu0 0.0
        %452 = vmatprep.subr.mxu0 0.0
        %453 = vmatpush1.msra.mxu0 0.0
        %454 = vmatprep.subr.mxu0 0.0
        %455 = vmatpush1.msra.mxu0 0.0
        %456 = vmatprep.subr.mxu0 0.0
        %457 = vmatpush1.msra.mxu0 0.0
        %458 = vmatprep.subr.mxu0 0.0
        %459 = vmatpush1.msra.mxu0 0.0
        %460 = vmatprep.subr.mxu0 0.0
        %461 = vmatpush1.msra.mxu0 0.0
        %462 = vmatprep.subr.mxu0 0.0
        %463 = vmatpush1.msra.mxu0 0.0
        %464 = vmatprep.subr.mxu0 0.0
        %465 = vmatpush1.msra.mxu0 0.0
        %466 = vmatprep.subr.mxu0 0.0
        %467 = vmatpush1.msra.mxu0 0.0
        %468 = vmatprep.subr.mxu0 0.0
        %469 = vmatpush1.msra.mxu0 0.0
        %470 = vmatprep.subr.mxu0 0.0
        %471 = vmatpush1.msra.mxu0 0.0
        %472 = vmatprep.subr.mxu0 0.0
        %473 = vmatpush1.msra.mxu0 0.0
        %474 = vmatprep.subr.mxu0 0.0
        %475 = vmatpush1.msra.mxu0 0.0
        %476 = vmatprep.subr.mxu0 0.0
        %477 = vmatpush1.msra.mxu0 %v444
        %478 = vmatprep.subr.mxu0 0.0
        %479 = vmatpush2.msra.mxu0 0.0
        %480 = vmatprep.subr.mxu0 0.0
        %481 = vmatpush2.msra.mxu0 0.0
        %482 = vmatprep.subr.mxu0 0.0
        %483 = vmatpush2.msra.mxu0 0.0
        %484 = vmatprep.subr.mxu0 0.0
        %485 = vmatpush2.msra.mxu0 0.0
        %486 = vmatprep.subr.mxu0 0.0
        %487 = vmatpush2.msra.mxu0 0.0
        %488 = vmatprep.subr.mxu0 0.0
        %489 = vmatpush2.msra.mxu0 0.0
        %490 = vmatprep.subr.mxu0 0.0
        %491 = vmatpush2.msra.mxu0 0.0
        %492 = vmatprep.subr.mxu0 0.0
        %493 = vmatpush2.msra.mxu0 0.0
        %494 = vmatprep.subr.mxu0 0.0
        %495 = vmatpush2.msra.mxu0 0.0
        %496 = vmatprep.subr.mxu0 0.0
        %497 = vmatpush2.msra.mxu0 0.0
        %498 = vmatprep.subr.mxu0 0.0
        %499 = vmatpush2.msra.mxu0 0.0
        %500 = vmatprep.subr.mxu0 0.0
        %501 = vmatpush2.msra.mxu0 0.0
        %502 = vmatprep.subr.mxu0 0.0
        %503 = vmatpush2.msra.mxu0 0.0
        %504 = vmatprep.subr.mxu0 0.0
        %505 = vmatpush2.msra.mxu0 0.0
        %506 = vmatprep.subr.mxu0 0.0
        %507 = vmatpush2.msra.mxu0 0.0
        %508 = vmatprep.subr.mxu0 0.0
        %509 = vmatpush2.msra.mxu0 0.0
        %510 = vmatprep.mubr.f32.mxu0 0.0
        %511 = vmatmul.mubr.f32.gmra.mxu0 %v437
        %v512 = vpop.f32.mrf.mxu0
        %v513 = vadd.f32 %v401, %v512
        %v514 = vpop.f32.mrf.mxu0
        %515 = vmatprep.mubr.f32.mxu0 0.0
        %516 = vmatmul.mubr.f32.gmra.mxu0 %v440
        %v517 = vpop.f32.mrf.mxu0
        %v518 = vadd.f32 %v401, %v517
        %v519 = vpop.f32.mrf.mxu0
        %520 = vdwg.mxu0
        %v521 = vmax.f32 %v513, 0.0
        %v522 = vmax.f32 %v518, 0.0
        %v523 = vpack.c.bf16 %v522, %v521
        %v524 = vld [vmem:[#allocation7] sm:$0xf]
        %v525 = vld [vmem:[#allocation7 + $0x4] sm:$0xf]
        %v526 = vld [vmem:[#allocation7 + $0x8] sm:$0xf]
        %v527 = vld [vmem:[#allocation7 + $0xc] sm:$0xf]
        %v528 = vld [vmem:[#allocation7 + $0x10] sm:$0xf]
        %v529 = vld [vmem:[#allocation7 + $0x14] sm:$0xf]
        %v530 = vld [vmem:[#allocation7 + $0x18] sm:$0xf]
        %v531 = vld [vmem:[#allocation7 + $0x1c] sm:$0xf]
        %v532 = vld [vmem:[#allocation9] sm:$0x1]
        %v534 = vlaneseq
        %v535 = vshrl.u32 %v534, 7
        %v536 = vsub.s32 0, %v535
        %v537 = vrot.slane %v532, %v536
        %v547 = vunpack.c.l.b16 %v524
        %v548 = vunpack.c.l.b16 %v525
        %v549 = vunpack.c.l.b16 %v526
        %v550 = vunpack.c.l.b16 %v527
        %v551 = vunpack.c.l.b16 %v528
        %v552 = vunpack.c.l.b16 %v529
        %v553 = vunpack.c.l.b16 %v530
        %v554 = vunpack.c.l.b16 %v531
        %v555 = vpack.c.b16 %v548, %v547
        %v556 = vpack.c.b16 %v550, %v549
        %v557 = vpack.c.b16 %v552, %v551
        %v558 = vpack.c.b16 %v554, %v553
        %vm563 = vcmask 523264
        %v565 = vsel %vm563, %v523, 0
        %567 = vmatprep.subr.bf16.mxu0 0
        %568 = vmatpush1.bf16.msra.mxu0 0
        %569 = vmatprep.subr.bf16.mxu0 0
        %570 = vmatpush1.bf16.msra.mxu0 0
        %571 = vmatprep.subr.bf16.mxu0 0
        %572 = vmatpush1.bf16.msra.mxu0 0
        %573 = vmatprep.subr.bf16.mxu0 0
        %574 = vmatpush1.bf16.msra.mxu0 0
        %575 = vmatprep.subr.bf16.mxu0 0
        %576 = vmatpush1.bf16.msra.mxu0 %v558
        %577 = vmatprep.subr.bf16.mxu0 0
        %578 = vmatpush1.bf16.msra.mxu0 %v557
        %579 = vmatprep.subr.bf16.mxu0 0
        %580 = vmatpush1.bf16.msra.mxu0 %v556
        %581 = vmatprep.subr.bf16.mxu0 0
        %582 = vmatpush1.bf16.msra.mxu0 %v555
        %583 = vmatprep.subr.bf16.mxu0 0
        %584 = vmatpush2.bf16.msra.mxu0 0
        %585 = vmatprep.subr.bf16.mxu0 0
        %586 = vmatpush2.bf16.msra.mxu0 0
        %587 = vmatprep.subr.bf16.mxu0 0
        %588 = vmatpush2.bf16.msra.mxu0 0
        %589 = vmatprep.subr.bf16.mxu0 0
        %590 = vmatpush2.bf16.msra.mxu0 0
        %591 = vmatprep.subr.bf16.mxu0 0
        %592 = vmatpush2.bf16.msra.mxu0 0
        %593 = vmatprep.subr.bf16.mxu0 0
        %594 = vmatpush2.bf16.msra.mxu0 0
        %595 = vmatprep.subr.bf16.mxu0 0
        %596 = vmatpush2.bf16.msra.mxu0 0
        %597 = vmatprep.subr.bf16.mxu0 0
        %598 = vmatpush2.bf16.msra.mxu0 0
        %599 = vmatprep.mubr.bf16.mxu0 0
        %600 = vmatmul.mubr.bf16.gmra.mxu0 %v565
        %v601 = vpop.f32.mrf.mxu0
        %v602 = vadd.f32 %v537, %v601
        %v603 = vpop.f32.mrf.mxu0
        %v604 = vpop.f32.mrf.mxu0
        %v605 = vadd.f32 %v537, %v604
        %v606 = vpop.f32.mrf.mxu0
        %607 = vdwg.mxu0
        %v608 = vmax.f32 %v602, 0.0
        %v609 = vmax.f32 %v605, 0.0
        %v610 = vpack.c.bf16 %v609, %v608
        %v611 = vld [vmem:[#allocation10] sm:$0xff]
        %v612 = vld [vmem:[#allocation10 + $0x8] sm:$0xff]
        %v613 = vld [vmem:[#allocation10 + $0x10] sm:$0xff]
        %v614 = vld [vmem:[#allocation10 + $0x18] sm:$0xff]
        %v615 = vld [vmem:[#allocation10 + $0x20] sm:$0xff]
        %v616 = vld [vmem:[#allocation10 + $0x28] sm:$0xff]
        %v617 = vld [vmem:[#allocation10 + $0x30] sm:$0xff]
        %v618 = vld [vmem:[#allocation10 + $0x38] sm:$0xff]
        %v619 = vld [vmem:[#allocation10 + $0x40] sm:$0xff]
        %v620 = vld [vmem:[#allocation10 + $0x48] sm:$0xff]
        %v621 = vld [vmem:[#allocation10 + $0x50] sm:$0xff]
        %v622 = vld [vmem:[#allocation10 + $0x58] sm:$0xff]
        %v623 = vld [vmem:[#allocation10 + $0x60] sm:$0xff]
        %v624 = vld [vmem:[#allocation10 + $0x68] sm:$0xff]
        %v625 = vld [vmem:[#allocation10 + $0x70] sm:$0xff]
        %v626 = vld [vmem:[#allocation10 + $0x78] sm:$0xff]
        %v627 = vld [vmem:[#allocation10 + $0x80] sm:$0xff]
        %v628 = vld [vmem:[#allocation10 + $0x88] sm:$0xff]
        %v629 = vld [vmem:[#allocation10 + $0x90] sm:$0xff]
        %v630 = vld [vmem:[#allocation10 + $0x98] sm:$0xff]
        %v631 = vld [vmem:[#allocation10 + $0xa0] sm:$0xff]
        %v632 = vld [vmem:[#allocation10 + $0xa8] sm:$0xff]
        %v633 = vld [vmem:[#allocation10 + $0xb0] sm:$0xff]
        %v634 = vld [vmem:[#allocation10 + $0xb8] sm:$0xff]
        %v635 = vld [vmem:[#allocation10 + $0xc0] sm:$0xff]
        %v636 = vld [vmem:[#allocation10 + $0xc8] sm:$0xff]
        %v637 = vld [vmem:[#allocation10 + $0xd0] sm:$0xff]
        %v638 = vld [vmem:[#allocation10 + $0xd8] sm:$0xff]
        %v639 = vld [vmem:[#allocation10 + $0xe0] sm:$0xff]
        %v640 = vld [vmem:[#allocation10 + $0xe8] sm:$0xff]
        %v641 = vld [vmem:[#allocation10 + $0xf0] sm:$0xff]
        %v642 = vld [vmem:[#allocation10 + $0xf8] sm:$0xff]
        %v643 = vld [vmem:[#allocation10 + $0x100] sm:$0xff]
        %v644 = vld [vmem:[#allocation10 + $0x108] sm:$0xff]
        %v645 = vld [vmem:[#allocation10 + $0x110] sm:$0xff]
        %v646 = vld [vmem:[#allocation10 + $0x118] sm:$0xff]
        %v647 = vld [vmem:[#allocation10 + $0x120] sm:$0xff]
        %v648 = vld [vmem:[#allocation10 + $0x128] sm:$0xff]
        %v649 = vld [vmem:[#allocation10 + $0x130] sm:$0xff]
        %v650 = vld [vmem:[#allocation10 + $0x138] sm:$0xff]
        %v651 = vld [vmem:[#allocation10 + $0x140] sm:$0xff]
        %v652 = vld [vmem:[#allocation10 + $0x148] sm:$0xff]
        %v653 = vld [vmem:[#allocation10 + $0x150] sm:$0xff]
        %v654 = vld [vmem:[#allocation10 + $0x158] sm:$0xff]
        %v655 = vld [vmem:[#allocation10 + $0x160] sm:$0xff]
        %v656 = vld [vmem:[#allocation10 + $0x168] sm:$0xff]
        %v657 = vld [vmem:[#allocation10 + $0x170] sm:$0xff]
        %v658 = vld [vmem:[#allocation10 + $0x178] sm:$0xff]
        %v659 = vld [vmem:[#allocation10 + $0x180] sm:$0xff]
        %v660 = vld [vmem:[#allocation10 + $0x188] sm:$0xff]
        %v661 = vld [vmem:[#allocation10 + $0x190] sm:$0xff]
        %v662 = vld [vmem:[#allocation10 + $0x198] sm:$0xff]
        %v663 = vld [vmem:[#allocation10 + $0x1a0] sm:$0xff]
        %v664 = vld [vmem:[#allocation10 + $0x1a8] sm:$0xff]
        %v665 = vld [vmem:[#allocation10 + $0x1b0] sm:$0xff]
        %v666 = vld [vmem:[#allocation10 + $0x1b8] sm:$0xff]
        %v667 = vld [vmem:[#allocation10 + $0x1c0] sm:$0xff]
        %v668 = vld [vmem:[#allocation10 + $0x1c8] sm:$0xff]
        %v669 = vld [vmem:[#allocation10 + $0x1d0] sm:$0xff]
        %v670 = vld [vmem:[#allocation10 + $0x1d8] sm:$0xff]
        %v671 = vld [vmem:[#allocation10 + $0x1e0] sm:$0xff]
        %v672 = vld [vmem:[#allocation10 + $0x1e8] sm:$0xff]
        %v673 = vld [vmem:[#allocation10 + $0x1f0] sm:$0xff]
        %v674 = vld [vmem:[#allocation10 + $0x1f8] sm:$0xff]
        %v675 = vld [vmem:[#allocation12] sm:$0xff]
        %v677 = vlaneseq
        %v678 = vshrl.u32 %v677, 7
        %v679 = vsub.s32 0, %v678
        %v680 = vrot.slane %v675, %v679
        %v681 = vlaneseq
        %v682 = vshrl.u32 %v681, 7
        %v683 = vsub.s32 1, %v682
        %v684 = vrot.slane %v675, %v683
        %v685 = vlaneseq
        %v686 = vshrl.u32 %v685, 7
        %v687 = vsub.s32 2, %v686
        %v688 = vrot.slane %v675, %v687
        %v689 = vlaneseq
        %v690 = vshrl.u32 %v689, 7
        %v691 = vsub.s32 3, %v690
        %v692 = vrot.slane %v675, %v691
        %v693 = vlaneseq
        %v694 = vshrl.u32 %v693, 7
        %v695 = vsub.s32 4, %v694
        %v696 = vrot.slane %v675, %v695
        %v697 = vlaneseq
        %v698 = vshrl.u32 %v697, 7
        %v699 = vsub.s32 5, %v698
        %v700 = vrot.slane %v675, %v699
        %v701 = vlaneseq
        %v702 = vshrl.u32 %v701, 7
        %v703 = vsub.s32 6, %v702
        %v704 = vrot.slane %v675, %v703
        %v705 = vlaneseq
        %v706 = vshrl.u32 %v705, 7
        %v707 = vsub.s32 7, %v706
        %v708 = vrot.slane %v675, %v707
        %v781 = vunpack.c.l.b16 %v611
        %v782 = vunpack.c.h.b16 %v611
        %v783 = vunpack.c.l.b16 %v612
        %v784 = vunpack.c.h.b16 %v612
        %v785 = vunpack.c.l.b16 %v613
        %v786 = vunpack.c.h.b16 %v613
        %v787 = vunpack.c.l.b16 %v614
        %v788 = vunpack.c.h.b16 %v614
        %v789 = vunpack.c.l.b16 %v615
        %v790 = vunpack.c.h.b16 %v615
        %v791 = vunpack.c.l.b16 %v616
        %v792 = vunpack.c.h.b16 %v616
        %v793 = vunpack.c.l.b16 %v617
        %v794 = vunpack.c.h.b16 %v617
        %v795 = vunpack.c.l.b16 %v618
        %v796 = vunpack.c.h.b16 %v618
        %v797 = vunpack.c.l.b16 %v619
        %v798 = vunpack.c.h.b16 %v619
        %v799 = vunpack.c.l.b16 %v620
        %v800 = vunpack.c.h.b16 %v620
        %v801 = vunpack.c.l.b16 %v621
        %v802 = vunpack.c.h.b16 %v621
        %v803 = vunpack.c.l.b16 %v622
        %v804 = vunpack.c.h.b16 %v622
        %v805 = vunpack.c.l.b16 %v623
        %v806 = vunpack.c.h.b16 %v623
        %v807 = vunpack.c.l.b16 %v624
        %v808 = vunpack.c.h.b16 %v624
        %v809 = vunpack.c.l.b16 %v625
        %v810 = vunpack.c.h.b16 %v625
        %v811 = vunpack.c.l.b16 %v626
        %v812 = vunpack.c.h.b16 %v626
        %v813 = vunpack.c.l.b16 %v627
        %v814 = vunpack.c.h.b16 %v627
        %v815 = vunpack.c.l.b16 %v628
        %v816 = vunpack.c.h.b16 %v628
        %v817 = vunpack.c.l.b16 %v629
        %v818 = vunpack.c.h.b16 %v629
        %v819 = vunpack.c.l.b16 %v630
        %v820 = vunpack.c.h.b16 %v630
        %v821 = vunpack.c.l.b16 %v631
        %v822 = vunpack.c.h.b16 %v631
        %v823 = vunpack.c.l.b16 %v632
        %v824 = vunpack.c.h.b16 %v632
        %v825 = vunpack.c.l.b16 %v633
        %v826 = vunpack.c.h.b16 %v633
        %v827 = vunpack.c.l.b16 %v634
        %v828 = vunpack.c.h.b16 %v634
        %v829 = vunpack.c.l.b16 %v635
        %v830 = vunpack.c.h.b16 %v635
        %v831 = vunpack.c.l.b16 %v636
        %v832 = vunpack.c.h.b16 %v636
        %v833 = vunpack.c.l.b16 %v637
        %v834 = vunpack.c.h.b16 %v637
        %v835 = vunpack.c.l.b16 %v638
        %v836 = vunpack.c.h.b16 %v638
        %v837 = vunpack.c.l.b16 %v639
        %v838 = vunpack.c.h.b16 %v639
        %v839 = vunpack.c.l.b16 %v640
        %v840 = vunpack.c.h.b16 %v640
        %v841 = vunpack.c.l.b16 %v641
        %v842 = vunpack.c.h.b16 %v641
        %v843 = vunpack.c.l.b16 %v642
        %v844 = vunpack.c.h.b16 %v642
        %v845 = vunpack.c.l.b16 %v643
        %v846 = vunpack.c.h.b16 %v643
        %v847 = vunpack.c.l.b16 %v644
        %v848 = vunpack.c.h.b16 %v644
        %v849 = vunpack.c.l.b16 %v645
        %v850 = vunpack.c.h.b16 %v645
        %v851 = vunpack.c.l.b16 %v646
        %v852 = vunpack.c.h.b16 %v646
        %v853 = vunpack.c.l.b16 %v647
        %v854 = vunpack.c.h.b16 %v647
        %v855 = vunpack.c.l.b16 %v648
        %v856 = vunpack.c.h.b16 %v648
        %v857 = vunpack.c.l.b16 %v649
        %v858 = vunpack.c.h.b16 %v649
        %v859 = vunpack.c.l.b16 %v650
        %v860 = vunpack.c.h.b16 %v650
        %v861 = vunpack.c.l.b16 %v651
        %v862 = vunpack.c.h.b16 %v651
        %v863 = vunpack.c.l.b16 %v652
        %v864 = vunpack.c.h.b16 %v652
        %v865 = vunpack.c.l.b16 %v653
        %v866 = vunpack.c.h.b16 %v653
        %v867 = vunpack.c.l.b16 %v654
        %v868 = vunpack.c.h.b16 %v654
        %v869 = vunpack.c.l.b16 %v655
        %v870 = vunpack.c.h.b16 %v655
        %v871 = vunpack.c.l.b16 %v656
        %v872 = vunpack.c.h.b16 %v656
        %v873 = vunpack.c.l.b16 %v657
        %v874 = vunpack.c.h.b16 %v657
        %v875 = vunpack.c.l.b16 %v658
        %v876 = vunpack.c.h.b16 %v658
        %v877 = vunpack.c.l.b16 %v659
        %v878 = vunpack.c.h.b16 %v659
        %v879 = vunpack.c.l.b16 %v660
        %v880 = vunpack.c.h.b16 %v660
        %v881 = vunpack.c.l.b16 %v661
        %v882 = vunpack.c.h.b16 %v661
        %v883 = vunpack.c.l.b16 %v662
        %v884 = vunpack.c.h.b16 %v662
        %v885 = vunpack.c.l.b16 %v663
        %v886 = vunpack.c.h.b16 %v663
        %v887 = vunpack.c.l.b16 %v664
        %v888 = vunpack.c.h.b16 %v664
        %v889 = vunpack.c.l.b16 %v665
        %v890 = vunpack.c.h.b16 %v665
        %v891 = vunpack.c.l.b16 %v666
        %v892 = vunpack.c.h.b16 %v666
        %v893 = vunpack.c.l.b16 %v667
        %v894 = vunpack.c.h.b16 %v667
        %v895 = vunpack.c.l.b16 %v668
        %v896 = vunpack.c.h.b16 %v668
        %v897 = vunpack.c.l.b16 %v669
        %v898 = vunpack.c.h.b16 %v669
        %v899 = vunpack.c.l.b16 %v670
        %v900 = vunpack.c.h.b16 %v670
        %v901 = vunpack.c.l.b16 %v671
        %v902 = vunpack.c.h.b16 %v671
        %v903 = vunpack.c.l.b16 %v672
        %v904 = vunpack.c.h.b16 %v672
        %v905 = vunpack.c.l.b16 %v673
        %v906 = vunpack.c.h.b16 %v673
        %v907 = vunpack.c.l.b16 %v674
        %v908 = vunpack.c.h.b16 %v674
        %v909 = vpack.c.b16 %v789, %v781
        %v910 = vpack.c.b16 %v790, %v782
        %v911 = vpack.c.b16 %v791, %v783
        %v912 = vpack.c.b16 %v792, %v784
        %v913 = vpack.c.b16 %v793, %v785
        %v914 = vpack.c.b16 %v794, %v786
        %v915 = vpack.c.b16 %v795, %v787
        %v916 = vpack.c.b16 %v796, %v788
        %v917 = vpack.c.b16 %v805, %v797
        %v918 = vpack.c.b16 %v806, %v798
        %v919 = vpack.c.b16 %v807, %v799
        %v920 = vpack.c.b16 %v808, %v800
        %v921 = vpack.c.b16 %v809, %v801
        %v922 = vpack.c.b16 %v810, %v802
        %v923 = vpack.c.b16 %v811, %v803
        %v924 = vpack.c.b16 %v812, %v804
        %v925 = vpack.c.b16 %v821, %v813
        %v926 = vpack.c.b16 %v822, %v814
        %v927 = vpack.c.b16 %v823, %v815
        %v928 = vpack.c.b16 %v824, %v816
        %v929 = vpack.c.b16 %v825, %v817
        %v930 = vpack.c.b16 %v826, %v818
        %v931 = vpack.c.b16 %v827, %v819
        %v932 = vpack.c.b16 %v828, %v820
        %v933 = vpack.c.b16 %v837, %v829
        %v934 = vpack.c.b16 %v838, %v830
        %v935 = vpack.c.b16 %v839, %v831
        %v936 = vpack.c.b16 %v840, %v832
        %v937 = vpack.c.b16 %v841, %v833
        %v938 = vpack.c.b16 %v842, %v834
        %v939 = vpack.c.b16 %v843, %v835
        %v940 = vpack.c.b16 %v844, %v836
        %v941 = vpack.c.b16 %v853, %v845
        %v942 = vpack.c.b16 %v854, %v846
        %v943 = vpack.c.b16 %v855, %v847
        %v944 = vpack.c.b16 %v856, %v848
        %v945 = vpack.c.b16 %v857, %v849
        %v946 = vpack.c.b16 %v858, %v850
        %v947 = vpack.c.b16 %v859, %v851
        %v948 = vpack.c.b16 %v860, %v852
        %v949 = vpack.c.b16 %v869, %v861
        %v950 = vpack.c.b16 %v870, %v862
        %v951 = vpack.c.b16 %v871, %v863
        %v952 = vpack.c.b16 %v872, %v864
        %v953 = vpack.c.b16 %v873, %v865
        %v954 = vpack.c.b16 %v874, %v866
        %v955 = vpack.c.b16 %v875, %v867
        %v956 = vpack.c.b16 %v876, %v868
        %v957 = vpack.c.b16 %v885, %v877
        %v958 = vpack.c.b16 %v886, %v878
        %v959 = vpack.c.b16 %v887, %v879
        %v960 = vpack.c.b16 %v888, %v880
        %v961 = vpack.c.b16 %v889, %v881
        %v962 = vpack.c.b16 %v890, %v882
        %v963 = vpack.c.b16 %v891, %v883
        %v964 = vpack.c.b16 %v892, %v884
        %v965 = vpack.c.b16 %v901, %v893
        %v966 = vpack.c.b16 %v902, %v894
        %v967 = vpack.c.b16 %v903, %v895
        %v968 = vpack.c.b16 %v904, %v896
        %v969 = vpack.c.b16 %v905, %v897
        %v970 = vpack.c.b16 %v906, %v898
        %v971 = vpack.c.b16 %v907, %v899
        %v972 = vpack.c.b16 %v908, %v900
        %1037 = vmatprep.subr.bf16.mxu0 %v966
        %1038 = vmatpush1.bf16.msra.mxu0 %v965
        %1039 = vmatprep.subr.bf16.mxu0 %v958
        %1040 = vmatpush1.bf16.msra.mxu0 %v957
        %1041 = vmatprep.subr.bf16.mxu0 %v950
        %1042 = vmatpush1.bf16.msra.mxu0 %v949
        %1043 = vmatprep.subr.bf16.mxu0 %v942
        %1044 = vmatpush1.bf16.msra.mxu0 %v941
        %1045 = vmatprep.subr.bf16.mxu0 %v934
        %1046 = vmatpush1.bf16.msra.mxu0 %v933
        %1047 = vmatprep.subr.bf16.mxu0 %v926
        %1048 = vmatpush1.bf16.msra.mxu0 %v925
        %1049 = vmatprep.subr.bf16.mxu0 %v918
        %1050 = vmatpush1.bf16.msra.mxu0 %v917
        %1051 = vmatprep.subr.bf16.mxu0 %v910
        %1052 = vmatpush1.bf16.msra.mxu0 %v909
        %1053 = vmatprep.subr.bf16.mxu0 0
        %1054 = vmatpush2.bf16.msra.mxu0 0
        %1055 = vmatprep.subr.bf16.mxu0 0
        %1056 = vmatpush2.bf16.msra.mxu0 0
        %1057 = vmatprep.subr.bf16.mxu0 0
        %1058 = vmatpush2.bf16.msra.mxu0 0
        %1059 = vmatprep.subr.bf16.mxu0 0
        %1060 = vmatpush2.bf16.msra.mxu0 0
        %1061 = vmatprep.subr.bf16.mxu0 0
        %1062 = vmatpush2.bf16.msra.mxu0 0
        %1063 = vmatprep.subr.bf16.mxu0 0
        %1064 = vmatpush2.bf16.msra.mxu0 0
        %1065 = vmatprep.subr.bf16.mxu0 0
        %1066 = vmatpush2.bf16.msra.mxu0 0
        %1067 = vmatprep.subr.bf16.mxu0 0
        %1068 = vmatpush2.bf16.msra.mxu0 0
        %1069 = vmatprep.mubr.bf16.mxu0 0
        %1070 = vmatmul.mubr.bf16.gmra.mxu0 %v610
        %v1071 = vpop.f32.mrf.mxu0
        %v1072 = vadd.f32 %v680, %v1071
        %v1073 = vpop.f32.mrf.mxu0
        %v1074 = vadd.f32 %v684, %v1073
        %v1075 = vpop.f32.mrf.mxu0
        %v1076 = vadd.f32 %v680, %v1075
        %v1077 = vpop.f32.mrf.mxu0
        %v1078 = vadd.f32 %v684, %v1077
        %1079 = vdwg.mxu0
        %1080 = vmatprep.subr.bf16.mxu0 %v968
        %1081 = vmatpush1.bf16.msra.mxu0 %v967
        %1082 = vmatprep.subr.bf16.mxu0 %v960
        %1083 = vmatpush1.bf16.msra.mxu0 %v959
        %1084 = vmatprep.subr.bf16.mxu0 %v952
        %1085 = vmatpush1.bf16.msra.mxu0 %v951
        %1086 = vmatprep.subr.bf16.mxu0 %v944
        %1087 = vmatpush1.bf16.msra.mxu0 %v943
        %1088 = vmatprep.subr.bf16.mxu0 %v936
        %1089 = vmatpush1.bf16.msra.mxu0 %v935
        %1090 = vmatprep.subr.bf16.mxu0 %v928
        %1091 = vmatpush1.bf16.msra.mxu0 %v927
        %1092 = vmatprep.subr.bf16.mxu0 %v920
        %1093 = vmatpush1.bf16.msra.mxu0 %v919
        %1094 = vmatprep.subr.bf16.mxu0 %v912
        %1095 = vmatpush1.bf16.msra.mxu0 %v911
        %1096 = vmatprep.subr.bf16.mxu0 0
        %1097 = vmatpush2.bf16.msra.mxu0 0
        %1098 = vmatprep.subr.bf16.mxu0 0
        %1099 = vmatpush2.bf16.msra.mxu0 0
        %1100 = vmatprep.subr.bf16.mxu0 0
        %1101 = vmatpush2.bf16.msra.mxu0 0
        %1102 = vmatprep.subr.bf16.mxu0 0
        %1103 = vmatpush2.bf16.msra.mxu0 0
        %1104 = vmatprep.subr.bf16.mxu0 0
        %1105 = vmatpush2.bf16.msra.mxu0 0
        %1106 = vmatprep.subr.bf16.mxu0 0
        %1107 = vmatpush2.bf16.msra.mxu0 0
        %1108 = vmatprep.subr.bf16.mxu0 0
        %1109 = vmatpush2.bf16.msra.mxu0 0
        %1110 = vmatprep.subr.bf16.mxu0 0
        %1111 = vmatpush2.bf16.msra.mxu0 0
        %1112 = vmatprep.mubr.bf16.mxu0 0
        %1113 = vmatmul.mubr.bf16.gmra.mxu0 %v610
        %v1114 = vpop.f32.mrf.mxu0
        %v1115 = vadd.f32 %v688, %v1114
        %v1116 = vpop.f32.mrf.mxu0
        %v1117 = vadd.f32 %v692, %v1116
        %v1118 = vpop.f32.mrf.mxu0
        %v1119 = vadd.f32 %v688, %v1118
        %v1120 = vpop.f32.mrf.mxu0
        %v1121 = vadd.f32 %v692, %v1120
        %1122 = vdwg.mxu0
        %1123 = vmatprep.subr.bf16.mxu0 %v970
        %1124 = vmatpush1.bf16.msra.mxu0 %v969
        %1125 = vmatprep.subr.bf16.mxu0 %v962
        %1126 = vmatpush1.bf16.msra.mxu0 %v961
        %1127 = vmatprep.subr.bf16.mxu0 %v954
        %1128 = vmatpush1.bf16.msra.mxu0 %v953
        %1129 = vmatprep.subr.bf16.mxu0 %v946
        %1130 = vmatpush1.bf16.msra.mxu0 %v945
        %1131 = vmatprep.subr.bf16.mxu0 %v938
        %1132 = vmatpush1.bf16.msra.mxu0 %v937
        %1133 = vmatprep.subr.bf16.mxu0 %v930
        %1134 = vmatpush1.bf16.msra.mxu0 %v929
        %1135 = vmatprep.subr.bf16.mxu0 %v922
        %1136 = vmatpush1.bf16.msra.mxu0 %v921
        %1137 = vmatprep.subr.bf16.mxu0 %v914
        %1138 = vmatpush1.bf16.msra.mxu0 %v913
        %1139 = vmatprep.subr.bf16.mxu0 0
        %1140 = vmatpush2.bf16.msra.mxu0 0
        %1141 = vmatprep.subr.bf16.mxu0 0
        %1142 = vmatpush2.bf16.msra.mxu0 0
        %1143 = vmatprep.subr.bf16.mxu0 0
        %1144 = vmatpush2.bf16.msra.mxu0 0
        %1145 = vmatprep.subr.bf16.mxu0 0
        %1146 = vmatpush2.bf16.msra.mxu0 0
        %1147 = vmatprep.subr.bf16.mxu0 0
        %1148 = vmatpush2.bf16.msra.mxu0 0
        %1149 = vmatprep.subr.bf16.mxu0 0
        %1150 = vmatpush2.bf16.msra.mxu0 0
        %1151 = vmatprep.subr.bf16.mxu0 0
        %1152 = vmatpush2.bf16.msra.mxu0 0
        %1153 = vmatprep.subr.bf16.mxu0 0
        %1154 = vmatpush2.bf16.msra.mxu0 0
        %1155 = vmatprep.mubr.bf16.mxu0 0
        %1156 = vmatmul.mubr.bf16.gmra.mxu0 %v610
        %v1157 = vpop.f32.mrf.mxu0
        %v1158 = vadd.f32 %v696, %v1157
        %v1159 = vpop.f32.mrf.mxu0
        %v1160 = vadd.f32 %v700, %v1159
        %v1161 = vpop.f32.mrf.mxu0
        %v1162 = vadd.f32 %v696, %v1161
        %v1163 = vpop.f32.mrf.mxu0
        %v1164 = vadd.f32 %v700, %v1163
        %1165 = vdwg.mxu0
        %1166 = vmatprep.subr.bf16.mxu0 %v972
        %1167 = vmatpush1.bf16.msra.mxu0 %v971
        %1168 = vmatprep.subr.bf16.mxu0 %v964
        %1169 = vmatpush1.bf16.msra.mxu0 %v963
        %1170 = vmatprep.subr.bf16.mxu0 %v956
        %1171 = vmatpush1.bf16.msra.mxu0 %v955
        %1172 = vmatprep.subr.bf16.mxu0 %v948
        %1173 = vmatpush1.bf16.msra.mxu0 %v947
        %1174 = vmatprep.subr.bf16.mxu0 %v940
        %1175 = vmatpush1.bf16.msra.mxu0 %v939
        %1176 = vmatprep.subr.bf16.mxu0 %v932
        %1177 = vmatpush1.bf16.msra.mxu0 %v931
        %1178 = vmatprep.subr.bf16.mxu0 %v924
        %1179 = vmatpush1.bf16.msra.mxu0 %v923
        %1180 = vmatprep.subr.bf16.mxu0 %v916
        %1181 = vmatpush1.bf16.msra.mxu0 %v915
        %1182 = vmatprep.subr.bf16.mxu0 0
        %1183 = vmatpush2.bf16.msra.mxu0 0
        %1184 = vmatprep.subr.bf16.mxu0 0
        %1185 = vmatpush2.bf16.msra.mxu0 0
        %1186 = vmatprep.subr.bf16.mxu0 0
        %1187 = vmatpush2.bf16.msra.mxu0 0
        %1188 = vmatprep.subr.bf16.mxu0 0
        %1189 = vmatpush2.bf16.msra.mxu0 0
        %1190 = vmatprep.subr.bf16.mxu0 0
        %1191 = vmatpush2.bf16.msra.mxu0 0
        %1192 = vmatprep.subr.bf16.mxu0 0
        %1193 = vmatpush2.bf16.msra.mxu0 0
        %1194 = vmatprep.subr.bf16.mxu0 0
        %1195 = vmatpush2.bf16.msra.mxu0 0
        %1196 = vmatprep.subr.bf16.mxu0 0
        %1197 = vmatpush2.bf16.msra.mxu0 0
        %1198 = vmatprep.mubr.bf16.mxu0 0
        %1199 = vmatmul.mubr.bf16.gmra.mxu0 %v610
        %v1200 = vpop.f32.mrf.mxu0
        %v1201 = vadd.f32 %v704, %v1200
        %v1202 = vpop.f32.mrf.mxu0
        %v1203 = vadd.f32 %v708, %v1202
        %v1204 = vpop.f32.mrf.mxu0
        %v1205 = vadd.f32 %v704, %v1204
        %v1206 = vpop.f32.mrf.mxu0
        %v1207 = vadd.f32 %v708, %v1206
        %1208 = vdwg.mxu0
        %v1209 = vmax.f32 %v1072, 0.0
        %v1210 = vmax.f32 %v1074, 0.0
        %v1211 = vmax.f32 %v1115, 0.0
        %v1212 = vmax.f32 %v1117, 0.0
        %v1213 = vmax.f32 %v1158, 0.0
        %v1214 = vmax.f32 %v1160, 0.0
        %v1215 = vmax.f32 %v1201, 0.0
        %v1216 = vmax.f32 %v1203, 0.0
        %v1217 = vmax.f32 %v1076, 0.0
        %v1218 = vmax.f32 %v1078, 0.0
        %v1219 = vmax.f32 %v1119, 0.0
        %v1220 = vmax.f32 %v1121, 0.0
        %v1221 = vmax.f32 %v1162, 0.0
        %v1222 = vmax.f32 %v1164, 0.0
        %v1223 = vmax.f32 %v1205, 0.0
        %v1224 = vmax.f32 %v1207, 0.0
        %v1225 = vld [vmem:[%s387] sm:$0xff]
        %v1226 = vmax.f32 %v1209, %v1217
        %v1227 = vrot.slane %v1226, 4
        %v1228 = vmax.f32 %v1226, %v1227
        %v1229 = vrot.slane %v1228, 2
        %v1230 = vmax.f32 %v1228, %v1229
        %v1231 = vrot.slane %v1230, 1
        %v1232 = vmax.f32 %v1230, %v1231
        %v1233 = vmax.f32 %v1210, %v1218
        %v1234 = vrot.slane %v1233, 4
        %v1235 = vmax.f32 %v1233, %v1234
        %v1236 = vrot.slane %v1235, 2
        %v1237 = vmax.f32 %v1235, %v1236
        %v1238 = vrot.slane %v1237, 1
        %v1239 = vmax.f32 %v1237, %v1238
        %v1240 = vmax.f32 %v1211, %v1219
        %v1241 = vrot.slane %v1240, 4
        %v1242 = vmax.f32 %v1240, %v1241
        %v1243 = vrot.slane %v1242, 2
        %v1244 = vmax.f32 %v1242, %v1243
        %v1245 = vrot.slane %v1244, 1
        %v1246 = vmax.f32 %v1244, %v1245
        %v1247 = vmax.f32 %v1212, %v1220
        %v1248 = vrot.slane %v1247, 4
        %v1249 = vmax.f32 %v1247, %v1248
        %v1250 = vrot.slane %v1249, 2
        %v1251 = vmax.f32 %v1249, %v1250
        %v1252 = vrot.slane %v1251, 1
        %v1253 = vmax.f32 %v1251, %v1252
        %v1254 = vmax.f32 %v1213, %v1221
        %v1255 = vrot.slane %v1254, 4
        %v1256 = vmax.f32 %v1254, %v1255
        %v1257 = vrot.slane %v1256, 2
        %v1258 = vmax.f32 %v1256, %v1257
        %v1259 = vrot.slane %v1258, 1
        %v1260 = vmax.f32 %v1258, %v1259
        %v1261 = vmax.f32 %v1214, %v1222
        %v1262 = vrot.slane %v1261, 4
        %v1263 = vmax.f32 %v1261, %v1262
        %v1264 = vrot.slane %v1263, 2
        %v1265 = vmax.f32 %v1263, %v1264
        %v1266 = vrot.slane %v1265, 1
        %v1267 = vmax.f32 %v1265, %v1266
        %v1268 = vmax.f32 %v1215, %v1223
        %v1269 = vrot.slane %v1268, 4
        %v1270 = vmax.f32 %v1268, %v1269
        %v1271 = vrot.slane %v1270, 2
        %v1272 = vmax.f32 %v1270, %v1271
        %v1273 = vrot.slane %v1272, 1
        %v1274 = vmax.f32 %v1272, %v1273
        %v1275 = vmax.f32 %v1216, %v1224
        %v1276 = vrot.slane %v1275, 4
        %v1277 = vmax.f32 %v1275, %v1276
        %v1278 = vrot.slane %v1277, 2
        %v1279 = vmax.f32 %v1277, %v1278
        %v1280 = vrot.slane %v1279, 1
        %v1281 = vmax.f32 %v1279, %v1280
        %v1290 = vcombine.low %v1232, %v1239
        %v1291 = vcombine.low %v1246, %v1253
        %v1292 = vcombine.low %v1260, %v1267
        %v1293 = vcombine.low %v1274, %v1281
        %v1295 = vunpack.c.l.s4 1966171168
        %v1296 = vunpack.c.0.s8 %v1295
        %v1297 = vlaneseq
        %v1298 = vshrl.u32 %v1297, 7
        %v1299 = vsub.s32 %v1296, %v1298
        %v1300 = vrot.slane %v1290, %v1299
        %v1302 = vunpack.c.l.s4 1966171168
        %v1303 = vunpack.c.0.s8 %v1302
        %v1304 = vlaneseq
        %v1305 = vshrl.u32 %v1304, 7
        %v1306 = vsub.s32 %v1303, %v1305
        %v1307 = vrot.slane %v1291, %v1306
        %v1309 = vunpack.c.l.s4 1966171168
        %v1310 = vunpack.c.0.s8 %v1309
        %v1311 = vlaneseq
        %v1312 = vshrl.u32 %v1311, 7
        %v1313 = vsub.s32 %v1310, %v1312
        %v1314 = vrot.slane %v1292, %v1313
        %v1316 = vunpack.c.l.s4 1966171168
        %v1317 = vunpack.c.0.s8 %v1316
        %v1318 = vlaneseq
        %v1319 = vshrl.u32 %v1318, 7
        %v1320 = vsub.s32 %v1317, %v1319
        %v1321 = vrot.slane %v1293, %v1320
        %v1322 = vcombine.low %v1300, %v1307
        %v1323 = vcombine.low %v1314, %v1321
        %v1325 = vunpack.c.l.s4 1966171168
        %v1326 = vunpack.c.0.s8 %v1325
        %v1327 = vlaneseq
        %v1328 = vshrl.u32 %v1327, 7
        %v1329 = vsub.s32 %v1326, %v1328
        %v1330 = vrot.slane %v1322, %v1329
        %v1332 = vunpack.c.l.s4 1966171168
        %v1333 = vunpack.c.0.s8 %v1332
        %v1334 = vlaneseq
        %v1335 = vshrl.u32 %v1334, 7
        %v1336 = vsub.s32 %v1333, %v1335
        %v1337 = vrot.slane %v1323, %v1336
        %v1338 = vcombine.low %v1330, %v1337
        %v1340 = vmax.f32 %v1225, %v1338
        %1341 = vst [vmem:[%s387] sm:$0xff] %v1340
        %p1342 = scmp.lt.s32.totalorder %s28, 1
        %s1343 = scalar_select %p1342, %s28, 1
        %s1344 = smul.addr %s1343, 8
        %s1345 = scalar_lea.vmem %s7, %s1344
        // Predicated region
        $region81: #{stn3d_forward.2} parent=47 // pred_check
          %p1346 = pneg %p208
        $region82: #{stn3d_forward.2} parent=47 // pred_check_branch
          %1348 = sbr.rel (%p1346) target = $region84
        $region83: #{stn3d_forward.2} parent=47 // pred_region
          _
        $region84: #{stn3d_forward.2} parent=47 // pred_fallthru
          _
      $region48: #{stn3d_forward.2} parent=5 // pred_fallthru
        _
      %p1349 = scmp.le.s32.totalorder 2, %s19
      // Predicated region
      $region85: #{stn3d_forward.2} parent=5 // pred_check
        %p1350 = pneg %p1349
      $region86: #{stn3d_forward.2} parent=5 // pred_check_branch
        %1352 = sbr.rel (%p1350) target = $region88
      $region87: #{stn3d_forward.2} parent=5 // pred_region
        %s1353 = ssub.s32 %s19, 2
        // Predicated region
        $region89: #{stn3d_forward.2} parent=87 // pred_check
          %p1354 = pneg %p214
        $region90: #{stn3d_forward.2} parent=87 // pred_check_branch
          %1356 = sbr.rel (%p1354) target = $region92
        $region91: #{stn3d_forward.2} parent=87 // pred_region
          %p1357 = scmp.lt.s32.totalorder %s30, 1
          %s1358 = scalar_select %p1357, %s30, 1
          %s1359 = smul.addr %s1358, 8
          %s1360 = scalar_lea.vmem %s7, %s1359
        $region92: #{stn3d_forward.2} parent=87 // pred_fallthru
          _
      $region88: #{stn3d_forward.2} parent=5 // pred_fallthru
        _
    $region6: #{stn3d_forward.2} parent=1 // loop_footer
      %s23 = sadd.s32 1, %s19
    $region7: #{stn3d_forward.2} parent=1 // loop_footer_branch
      %18 = sbr.rel target = $region3
    $region8: #{stn3d_forward.2} parent=1 // loop_exit
      _
    %1361 = vsyncpa [#allocation3], 1
    %s1362 = scalar_lea.sflag [#allocation3], 1
    %1363 = vsyncpa %s1362, 1
    %1364 = vsyncpa [#allocation5], 1
    %1365 = vsyncpa [#allocation8], 1
    %1366 = vsyncpa [#allocation11], 1

// kernel: stn3d_forward.3
$region0: #{stn3d_forward.3}
  #allocation0 [shape = 'u32[]', space=smem, size = 0x4, offset = 0x4, fixed_abs, tag = 'smem constant byte address 0x4 - core index']
  #allocation1 [shape = 'u32[144,128]{1,0:T(1,128)}', space=vmem, size = 0x12000, scoped, tag = 'internal scratch']
  %s0 = inlined_call_operand.vmem [shape: f32[2,1024], index: 0, kind: input, shape index: {}]
  %s1 = inlined_call_operand.hbm [shape: bf16[1024,512], index: 1, kind: input, shape index: {}]
  %s2 = inlined_call_operand.vmem [shape: f32[1,512], index: 2, kind: input, shape index: {}]
  %s3 = inlined_call_operand.vmem [shape: bf16[512,256], index: 3, kind: input, shape index: {}]
  %s4 = inlined_call_operand.vmem [shape: f32[1,256], index: 4, kind: input, shape index: {}]
  %s5 = inlined_call_operand.vmem [shape: f32[256,9], index: 5, kind: input, shape index: {}]
  %s6 = inlined_call_operand.vmem [shape: f32[1,9], index: 6, kind: input, shape index: {}]
  %s7 = inlined_call_operand.vmem [shape: f32[2,9], index: 7, kind: output, shape index: {}]
  %s8 = sld [smem:[#allocation0]]
  $region42: #{stn3d_forward.3} parent=0
    _
  %s10 = ssub.s32 1, %s8
  %s11 = scalar_select 0, %s10, %s8
  $region1: #{stn3d_forward.3} parent=0
    #allocation2 [shape = 'u8[1048576]{0}', space=vmem, size = 0x100000, scoped, tag = 'input window, operand 1, single buffered']
    #allocation3 [shape = 's32[1]{0}', space=sflag, size = 0x4, scoped, tag = 'scoped memory for stn3d_forward.3']
    %12 = vsyncpa [#allocation3], 0
    // Predicated region
    $region2: #{stn3d_forward.3} parent=1 // pred_check
      _
    $region3: #{stn3d_forward.3} parent=1 // pred_check_branch
      %14 = sbr.rel (0) target = $region5
    $region4: #{stn3d_forward.3} parent=1 // pred_region
      _
    $region5: #{stn3d_forward.3} parent=1 // pred_fallthru
      _
    // Predicated region
    $region6: #{stn3d_forward.3} parent=1 // pred_check
      _
    $region7: #{stn3d_forward.3} parent=1 // pred_check_branch
      %16 = sbr.rel (0) target = $region9
    $region8: #{stn3d_forward.3} parent=1 // pred_region
      %s18 = ssub.s32 32768, 32768
      %19 = vsyncadd [#allocation3], %s18
      %s20 = sshll.u32 [#allocation2], 4
      %s21 = int_to_ptr.vmem [resolvable:$true] %s20
      %26 = dma.hbm_to_vmem [thread:$0]  %s1, 32768, %s21, [#allocation3], 256, 256, 16
    $region9: #{stn3d_forward.3} parent=1 // pred_fallthru
      _
    // Predicated region
    $region10: #{stn3d_forward.3} parent=1 // pred_check
      _
    $region11: #{stn3d_forward.3} parent=1 // pred_check_branch
      %28 = sbr.rel (0) target = $region13
    $region12: #{stn3d_forward.3} parent=1 // pred_region
      _
    $region13: #{stn3d_forward.3} parent=1 // pred_fallthru
      _
    // Predicated region
    $region14: #{stn3d_forward.3} parent=1 // pred_check
      _
    $region15: #{stn3d_forward.3} parent=1 // pred_check_branch
      %30 = sbr.rel (0) target = $region17
    $region16: #{stn3d_forward.3} parent=1 // pred_region
      _
    $region17: #{stn3d_forward.3} parent=1 // pred_fallthru
      _
    // Predicated region
    $region18: #{stn3d_forward.3} parent=1 // pred_check
      _
    $region19: #{stn3d_forward.3} parent=1 // pred_check_branch
      %32 = sbr.rel (0) target = $region21
    $region20: #{stn3d_forward.3} parent=1 // pred_region
      _
    $region21: #{stn3d_forward.3} parent=1 // pred_fallthru
      _
    // Predicated region
    $region22: #{stn3d_forward.3} parent=1 // pred_check
      _
    $region23: #{stn3d_forward.3} parent=1 // pred_check_branch
      %34 = sbr.rel (0) target = $region25
    $region24: #{stn3d_forward.3} parent=1 // pred_region
      _
    $region25: #{stn3d_forward.3} parent=1 // pred_fallthru
      _
    // Predicated region
    $region26: #{stn3d_forward.3} parent=1 // pred_check
      _
    $region27: #{stn3d_forward.3} parent=1 // pred_check_branch
      %36 = sbr.rel (0) target = $region29
    $region28: #{stn3d_forward.3} parent=1 // pred_region
      _
    $region29: #{stn3d_forward.3} parent=1 // pred_fallthru
      _
    // Predicated region
    $region30: #{stn3d_forward.3} parent=1 // pred_check
      _
    $region31: #{stn3d_forward.3} parent=1 // pred_check_branch
      %38 = sbr.rel (0) target = $region33
    $region32: #{stn3d_forward.3} parent=1 // pred_region
      %39 = dma.done [#allocation3], 32768
    $region33: #{stn3d_forward.3} parent=1 // pred_fallthru
      _
    %v40 = vld [vmem:[%s0] sm:$0xff]
    %v41 = vld [vmem:[%s0 + $0x8] sm:$0xff]
    %v44 = vcombine.high %v40, %v40
    %v46 = vunpack.c.l.s4 1983009808
    %v47 = vunpack.c.0.s8 %v46
    %v48 = vlaneseq
    %v49 = vshrl.u32 %v48, 7
    %v50 = vsub.s32 %v47, %v49
    %v51 = vrot.slane %v40, %v50
    %v53 = vunpack.c.l.s4 1983009808
    %v54 = vunpack.c.0.s8 %v53
    %v55 = vlaneseq
    %v56 = vshrl.u32 %v55, 7
    %v57 = vsub.s32 %v54, %v56
    %v58 = vrot.slane %v44, %v57
    %v59 = vcombine.high %v51, %v51
    %v60 = vcombine.high %v58, %v58
    %v61 = vcombine.high %v41, %v41
    %v63 = vunpack.c.l.s4 1983009808
    %v64 = vunpack.c.0.s8 %v63
    %v65 = vlaneseq
    %v66 = vshrl.u32 %v65, 7
    %v67 = vsub.s32 %v64, %v66
    %v68 = vrot.slane %v41, %v67
    %v70 = vunpack.c.l.s4 1983009808
    %v71 = vunpack.c.0.s8 %v70
    %v72 = vlaneseq
    %v73 = vshrl.u32 %v72, 7
    %v74 = vsub.s32 %v71, %v73
    %v75 = vrot.slane %v61, %v74
    %v76 = vcombine.high %v68, %v68
    %v77 = vcombine.high %v75, %v75
    %v86 = vpack.c.bf16 %v51, %v51
    %v87 = vpack.c.bf16 %v59, %v59
    %v88 = vpack.c.bf16 %v58, %v58
    %v89 = vpack.c.bf16 %v60, %v60
    %v90 = vpack.c.bf16 %v68, %v68
    %v91 = vpack.c.bf16 %v76, %v76
    %v92 = vpack.c.bf16 %v75, %v75
    %v93 = vpack.c.bf16 %v77, %v77
    %v94 = vld [vmem:[#allocation2] sm:$0xff]
    %v95 = vld [vmem:[#allocation2 + $0x8] sm:$0xff]
    %v96 = vld [vmem:[#allocation2 + $0x10] sm:$0xff]
    %v97 = vld [vmem:[#allocation2 + $0x18] sm:$0xff]
    %v98 = vld [vmem:[#allocation2 + $0x20] sm:$0xff]
    %v99 = vld [vmem:[#allocation2 + $0x28] sm:$0xff]
    %v100 = vld [vmem:[#allocation2 + $0x30] sm:$0xff]
    %v101 = vld [vmem:[#allocation2 + $0x38] sm:$0xff]
    %v102 = vld [vmem:[#allocation2 + $0x40] sm:$0xff]
    %v103 = vld [vmem:[#allocation2 + $0x48] sm:$0xff]
    %v104 = vld [vmem:[#allocation2 + $0x50] sm:$0xff]
    %v105 = vld [vmem:[#allocation2 + $0x58] sm:$0xff]
    %v106 = vld [vmem:[#allocation2 + $0x60] sm:$0xff]
    %v107 = vld [vmem:[#allocation2 + $0x68] sm:$0xff]
    %v108 = vld [vmem:[#allocation2 + $0x70] sm:$0xff]
    %v109 = vld [vmem:[#allocation2 + $0x78] sm:$0xff]
    %v110 = vld [vmem:[#allocation2 + $0x80] sm:$0xff]
    %v111 = vld [vmem:[#allocation2 + $0x88] sm:$0xff]
    %v112 = vld [vmem:[#allocation2 + $0x90] sm:$0xff]
    %v113 = vld [vmem:[#allocation2 + $0x98] sm:$0xff]
    %v114 = vld [vmem:[#allocation2 + $0xa0] sm:$0xff]
    %v115 = vld [vmem:[#allocation2 + $0xa8] sm:$0xff]
    %v116 = vld [vmem:[#allocation2 + $0xb0] sm:$0xff]
    %v117 = vld [vmem:[#allocation2 + $0xb8] sm:$0xff]
    %v118 = vld [vmem:[#allocation2 + $0xc0] sm:$0xff]
    %v119 = vld [vmem:[#allocation2 + $0xc8] sm:$0xff]
    %v120 = vld [vmem:[#allocation2 + $0xd0] sm:$0xff]
    %v121 = vld [vmem:[#allocation2 + $0xd8] sm:$0xff]
    %v122 = vld [vmem:[#allocation2 + $0xe0] sm:$0xff]
    %v123 = vld [vmem:[#allocation2 + $0xe8] sm:$0xff]
    %v124 = vld [vmem:[#allocation2 + $0xf0] sm:$0xff]
    %v125 = vld [vmem:[#allocation2 + $0xf8] sm:$0xff]
    %v126 = vld [vmem:[#allocation2 + $0x100] sm:$0xff]
    %v127 = vld [vmem:[#allocation2 + $0x108] sm:$0xff]
    %v128 = vld [vmem:[#allocation2 + $0x110] sm:$0xff]
    %v129 = vld [vmem:[#allocation2 + $0x118] sm:$0xff]
    %v130 = vld [vmem:[#allocation2 + $0x120] sm:$0xff]
    %v131 = vld [vmem:[#allocation2 + $0x128] sm:$0xff]
    %v132 = vld [vmem:[#allocation2 + $0x130] sm:$0xff]
    %v133 = vld [vmem:[#allocation2 + $0x138] sm:$0xff]
    %v134 = vld [vmem:[#allocation2 + $0x140] sm:$0xff]
    %v135 = vld [vmem:[#allocation2 + $0x148] sm:$0xff]
    %v136 = vld [vmem:[#allocation2 + $0x150] sm:$0xff]
    %v137 = vld [vmem:[#allocation2 + $0x158] sm:$0xff]
    %v138 = vld [vmem:[#allocation2 + $0x160] sm:$0xff]
    %v139 = vld [vmem:[#allocation2 + $0x168] sm:$0xff]
    %v140 = vld [vmem:[#allocation2 + $0x170] sm:$0xff]
    %v141 = vld [vmem:[#allocation2 + $0x178] sm:$0xff]
    %v142 = vld [vmem:[#allocation2 + $0x180] sm:$0xff]
    %v143 = vld [vmem:[#allocation2 + $0x188] sm:$0xff]
    %v144 = vld [vmem:[#allocation2 + $0x190] sm:$0xff]
    %v145 = vld [vmem:[#allocation2 + $0x198] sm:$0xff]
    %v146 = vld [vmem:[#allocation2 + $0x1a0] sm:$0xff]
    %v147 = vld [vmem:[#allocation2 + $0x1a8] sm:$0xff]
    %v148 = vld [vmem:[#allocation2 + $0x1b0] sm:$0xff]
    %v149 = vld [vmem:[#allocation2 + $0x1b8] sm:$0xff]
    %v150 = vld [vmem:[#allocation2 + $0x1c0] sm:$0xff]
    %v151 = vld [vmem:[#allocation2 + $0x1c8] sm:$0xff]
    %v152 = vld [vmem:[#allocation2 + $0x1d0] sm:$0xff]
    %v153 = vld [vmem:[#allocation2 + $0x1d8] sm:$0xff]
    %v154 = vld [vmem:[#allocation2 + $0x1e0] sm:$0xff]
    %v155 = vld [vmem:[#allocation2 + $0x1e8] sm:$0xff]
    %v156 = vld [vmem:[#allocation2 + $0x1f0] sm:$0xff]
    %v157 = vld [vmem:[#allocation2 + $0x1f8] sm:$0xff]
    %v158 = vld [vmem:[#allocation2 + $0x200] sm:$0xff]
    %v159 = vld [vmem:[#allocation2 + $0x208] sm:$0xff]
    %v160 = vld [vmem:[#allocation2 + $0x210] sm:$0xff]
    %v161 = vld [vmem:[#allocation2 + $0x218] sm:$0xff]
    %v162 = vld [vmem:[#allocation2 + $0x220] sm:$0xff]
    %v163 = vld [vmem:[#allocation2 + $0x228] sm:$0xff]
    %v164 = vld [vmem:[#allocation2 + $0x230] sm:$0xff]
    %v165 = vld [vmem:[#allocation2 + $0x238] sm:$0xff]
    %v166 = vld [vmem:[#allocation2 + $0x240] sm:$0xff]
    %v167 = vld [vmem:[#allocation2 + $0x248] sm:$0xff]
    %v168 = vld [vmem:[#allocation2 + $0x250] sm:$0xff]
    %v169 = vld [vmem:[#allocation2 + $0x258] sm:$0xff]
    %v170 = vld [vmem:[#allocation2 + $0x260] sm:$0xff]
    %v171 = vld [vmem:[#allocation2 + $0x268] sm:$0xff]
    %v172 = vld [vmem:[#allocation2 + $0x270] sm:$0xff]
    %v173 = vld [vmem:[#allocation2 + $0x278] sm:$0xff]
    %v174 = vld [vmem:[#allocation2 + $0x280] sm:$0xff]
    %v175 = vld [vmem:[#allocation2 + $0x288] sm:$0xff]
    %v176 = vld [vmem:[#allocation2 + $0x290] sm:$0xff]
    %v177 = vld [vmem:[#allocation2 + $0x298] sm:$0xff]
    %v178 = vld [vmem:[#allocation2 + $0x2a0] sm:$0xff]
    %v179 = vld [vmem:[#allocation2 + $0x2a8] sm:$0xff]
    %v180 = vld [vmem:[#allocation2 + $0x2b0] sm:$0xff]
    %v181 = vld [vmem:[#allocation2 + $0x2b8] sm:$0xff]
    %v182 = vld [vmem:[#allocation2 + $0x2c0] sm:$0xff]
    %v183 = vld [vmem:[#allocation2 + $0x2c8] sm:$0xff]
    %v184 = vld [vmem:[#allocation2 + $0x2d0] sm:$0xff]
    %v185 = vld [vmem:[#allocation2 + $0x2d8] sm:$0xff]
    %v186 = vld [vmem:[#allocation2 + $0x2e0] sm:$0xff]
    %v187 = vld [vmem:[#allocation2 + $0x2e8] sm:$0xff]
    %v188 = vld [vmem:[#allocation2 + $0x2f0] sm:$0xff]
    %v189 = vld [vmem:[#allocation2 + $0x2f8] sm:$0xff]
    %v190 = vld [vmem:[#allocation2 + $0x300] sm:$0xff]
    %v191 = vld [vmem:[#allocation2 + $0x308] sm:$0xff]
    %v192 = vld [vmem:[#allocation2 + $0x310] sm:$0xff]
    %v193 = vld [vmem:[#allocation2 + $0x318] sm:$0xff]
    %v194 = vld [vmem:[#allocation2 + $0x320] sm:$0xff]
    %v195 = vld [vmem:[#allocation2 + $0x328] sm:$0xff]
    %v196 = vld [vmem:[#allocation2 + $0x330] sm:$0xff]
    %v197 = vld [vmem:[#allocation2 + $0x338] sm:$0xff]
    %v198 = vld [vmem:[#allocation2 + $0x340] sm:$0xff]
    %v199 = vld [vmem:[#allocation2 + $0x348] sm:$0xff]
    %v200 = vld [vmem:[#allocation2 + $0x350] sm:$0xff]
    %v201 = vld [vmem:[#allocation2 + $0x358] sm:$0xff]
    %v202 = vld [vmem:[#allocation2 + $0x360] sm:$0xff]
    %v203 = vld [vmem:[#allocation2 + $0x368] sm:$0xff]
    %v204 = vld [vmem:[#allocation2 + $0x370] sm:$0xff]
    %v205 = vld [vmem:[#allocation2 + $0x378] sm:$0xff]
    %v206 = vld [vmem:[#allocation2 + $0x380] sm:$0xff]
    %v207 = vld [vmem:[#allocation2 + $0x388] sm:$0xff]
    %v208 = vld [vmem:[#allocation2 + $0x390] sm:$0xff]
    %v209 = vld [vmem:[#allocation2 + $0x398] sm:$0xff]
    %v210 = vld [vmem:[#allocation2 + $0x3a0] sm:$0xff]
    %v211 = vld [vmem:[#allocation2 + $0x3a8] sm:$0xff]
    %v212 = vld [vmem:[#allocation2 + $0x3b0] sm:$0xff]
    %v213 = vld [vmem:[#allocation2 + $0x3b8] sm:$0xff]
    %v214 = vld [vmem:[#allocation2 + $0x3c0] sm:$0xff]
    %v215 = vld [vmem:[#allocation2 + $0x3c8] sm:$0xff]
    %v216 = vld [vmem:[#allocation2 + $0x3d0] sm:$0xff]
    %v217 = vld [vmem:[#allocation2 + $0x3d8] sm:$0xff]
    %v218 = vld [vmem:[#allocation2 + $0x3e0] sm:$0xff]
    %v219 = vld [vmem:[#allocation2 + $0x3e8] sm:$0xff]
    %v220 = vld [vmem:[#allocation2 + $0x3f0] sm:$0xff]
    %v221 = vld [vmem:[#allocation2 + $0x3f8] sm:$0xff]
    %v222 = vld [vmem:[#allocation2 + $0x400] sm:$0xff]
    %v223 = vld [vmem:[#allocation2 + $0x408] sm:$0xff]
    %v224 = vld [vmem:[#allocation2 + $0x410] sm:$0xff]
    %v225 = vld [vmem:[#allocation2 + $0x418] sm:$0xff]
    %v226 = vld [vmem:[#allocation2 + $0x420] sm:$0xff]
    %v227 = vld [vmem:[#allocation2 + $0x428] sm:$0xff]
    %v228 = vld [vmem:[#allocation2 + $0x430] sm:$0xff]
    %v229 = vld [vmem:[#allocation2 + $0x438] sm:$0xff]
    %v230 = vld [vmem:[#allocation2 + $0x440] sm:$0xff]
    %v231 = vld [vmem:[#allocation2 + $0x448] sm:$0xff]
    %v232 = vld [vmem:[#allocation2 + $0x450] sm:$0xff]
    %v233 = vld [vmem:[#allocation2 + $0x458] sm:$0xff]
    %v234 = vld [vmem:[#allocation2 + $0x460] sm:$0xff]
    %v235 = vld [vmem:[#allocation2 + $0x468] sm:$0xff]
    %v236 = vld [vmem:[#allocation2 + $0x470] sm:$0xff]
    %v237 = vld [vmem:[#allocation2 + $0x478] sm:$0xff]
    %v238 = vld [vmem:[#allocation2 + $0x480] sm:$0xff]
    %v239 = vld [vmem:[#allocation2 + $0x488] sm:$0xff]
    %v240 = vld [vmem:[#allocation2 + $0x490] sm:$0xff]
    %v241 = vld [vmem:[#allocation2 + $0x498] sm:$0xff]
    %v242 = vld [vmem:[#allocation2 + $0x4a0] sm:$0xff]
    %v243 = vld [vmem:[#allocation2 + $0x4a8] sm:$0xff]
    %v244 = vld [vmem:[#allocation2 + $0x4b0] sm:$0xff]
    %v245 = vld [vmem:[#allocation2 + $0x4b8] sm:$0xff]
    %v246 = vld [vmem:[#allocation2 + $0x4c0] sm:$0xff]
    %v247 = vld [vmem:[#allocation2 + $0x4c8] sm:$0xff]
    %v248 = vld [vmem:[#allocation2 + $0x4d0] sm:$0xff]
    %v249 = vld [vmem:[#allocation2 + $0x4d8] sm:$0xff]
    %v250 = vld [vmem:[#allocation2 + $0x4e0] sm:$0xff]
    %v251 = vld [vmem:[#allocation2 + $0x4e8] sm:$0xff]
    %v252 = vld [vmem:[#allocation2 + $0x4f0] sm:$0xff]
    %v253 = vld [vmem:[#allocation2 + $0x4f8] sm:$0xff]
    %v254 = vld [vmem:[#allocation2 + $0x500] sm:$0xff]
    %v255 = vld [vmem:[#allocation2 + $0x508] sm:$0xff]
    %v256 = vld [vmem:[#allocation2 + $0x510] sm:$0xff]
    %v257 = vld [vmem:[#allocation2 + $0x518] sm:$0xff]
    %v258 = vld [vmem:[#allocation2 + $0x520] sm:$0xff]
    %v259 = vld [vmem:[#allocation2 + $0x528] sm:$0xff]
    %v260 = vld [vmem:[#allocation2 + $0x530] sm:$0xff]
    %v261 = vld [vmem:[#allocation2 + $0x538] sm:$0xff]
    %v262 = vld [vmem:[#allocation2 + $0x540] sm:$0xff]
    %v263 = vld [vmem:[#allocation2 + $0x548] sm:$0xff]
    %v264 = vld [vmem:[#allocation2 + $0x550] sm:$0xff]
    %v265 = vld [vmem:[#allocation2 + $0x558] sm:$0xff]
    %v266 = vld [vmem:[#allocation2 + $0x560] sm:$0xff]
    %v267 = vld [vmem:[#allocation2 + $0x568] sm:$0xff]
    %v268 = vld [vmem:[#allocation2 + $0x570] sm:$0xff]
    %v269 = vld [vmem:[#allocation2 + $0x578] sm:$0xff]
    %v270 = vld [vmem:[#allocation2 + $0x580] sm:$0xff]
    %v271 = vld [vmem:[#allocation2 + $0x588] sm:$0xff]
    %v272 = vld [vmem:[#allocation2 + $0x590] sm:$0xff]
    %v273 = vld [vmem:[#allocation2 + $0x598] sm:$0xff]
    %v274 = vld [vmem:[#allocation2 + $0x5a0] sm:$0xff]
    %v275 = vld [vmem:[#allocation2 + $0x5a8] sm:$0xff]
    %v276 = vld [vmem:[#allocation2 + $0x5b0] sm:$0xff]
    %v277 = vld [vmem:[#allocation2 + $0x5b8] sm:$0xff]
    %v278 = vld [vmem:[#allocation2 + $0x5c0] sm:$0xff]
    %v279 = vld [vmem:[#allocation2 + $0x5c8] sm:$0xff]
    %v280 = vld [vmem:[#allocation2 + $0x5d0] sm:$0xff]
    %v281 = vld [vmem:[#allocation2 + $0x5d8] sm:$0xff]
    %v282 = vld [vmem:[#allocation2 + $0x5e0] sm:$0xff]
    %v283 = vld [vmem:[#allocation2 + $0x5e8] sm:$0xff]
    %v284 = vld [vmem:[#allocation2 + $0x5f0] sm:$0xff]
    %v285 = vld [vmem:[#allocation2 + $0x5f8] sm:$0xff]
    %v286 = vld [vmem:[#allocation2 + $0x600] sm:$0xff]
    %v287 = vld [vmem:[#allocation2 + $0x608] sm:$0xff]
    %v288 = vld [vmem:[#allocation2 + $0x610] sm:$0xff]
    %v289 = vld [vmem:[#allocation2 + $0x618] sm:$0xff]
    %v290 = vld [vmem:[#allocation2 + $0x620] sm:$0xff]
    %v291 = vld [vmem:[#allocation2 + $0x628] sm:$0xff]
    %v292 = vld [vmem:[#allocation2 + $0x630] sm:$0xff]
    %v293 = vld [vmem:[#allocation2 + $0x638] sm:$0xff]
    %v294 = vld [vmem:[#allocation2 + $0x640] sm:$0xff]
    %v295 = vld [vmem:[#allocation2 + $0x648] sm:$0xff]
    %v296 = vld [vmem:[#allocation2 + $0x650] sm:$0xff]
    %v297 = vld [vmem:[#allocation2 + $0x658] sm:$0xff]
    %v298 = vld [vmem:[#allocation2 + $0x660] sm:$0xff]
    %v299 = vld [vmem:[#allocation2 + $0x668] sm:$0xff]
    %v300 = vld [vmem:[#allocation2 + $0x670] sm:$0xff]
    %v301 = vld [vmem:[#allocation2 + $0x678] sm:$0xff]
    %v302 = vld [vmem:[#allocation2 + $0x680] sm:$0xff]
    %v303 = vld [vmem:[#allocation2 + $0x688] sm:$0xff]
    %v304 = vld [vmem:[#allocation2 + $0x690] sm:$0xff]
    %v305 = vld [vmem:[#allocation2 + $0x698] sm:$0xff]
    %v306 = vld [vmem:[#allocation2 + $0x6a0] sm:$0xff]
    %v307 = vld [vmem:[#allocation2 + $0x6a8] sm:$0xff]
    %v308 = vld [vmem:[#allocation2 + $0x6b0] sm:$0xff]
    %v309 = vld [vmem:[#allocation2 + $0x6b8] sm:$0xff]
    %v310 = vld [vmem:[#allocation2 + $0x6c0] sm:$0xff]
    %v311 = vld [vmem:[#allocation2 + $0x6c8] sm:$0xff]
    %v312 = vld [vmem:[#allocation2 + $0x6d0] sm:$0xff]
    %v313 = vld [vmem:[#allocation2 + $0x6d8] sm:$0xff]
    %v314 = vld [vmem:[#allocation2 + $0x6e0] sm:$0xff]
    %v315 = vld [vmem:[#allocation2 + $0x6e8] sm:$0xff]
    %v316 = vld [vmem:[#allocation2 + $0x6f0] sm:$0xff]
    %v317 = vld [vmem:[#allocation2 + $0x6f8] sm:$0xff]
    %v318 = vld [vmem:[#allocation2 + $0x700] sm:$0xff]
    %v319 = vld [vmem:[#allocation2 + $0x708] sm:$0xff]
    %v320 = vld [vmem:[#allocation2 + $0x710] sm:$0xff]
    %v321 = vld [vmem:[#allocation2 + $0x718] sm:$0xff]
    %v322 = vld [vmem:[#allocation2 + $0x720] sm:$0xff]
    %v323 = vld [vmem:[#allocation2 + $0x728] sm:$0xff]
    %v324 = vld [vmem:[#allocation2 + $0x730] sm:$0xff]
    %v325 = vld [vmem:[#allocation2 + $0x738] sm:$0xff]
    %v326 = vld [vmem:[#allocation2 + $0x740] sm:$0xff]
    %v327 = vld [vmem:[#allocation2 + $0x748] sm:$0xff]
    %v328 = vld [vmem:[#allocation2 + $0x750] sm:$0xff]
    %v329 = vld [vmem:[#allocation2 + $0x758] sm:$0xff]
    %v330 = vld [vmem:[#allocation2 + $0x760] sm:$0xff]
    %v331 = vld [vmem:[#allocation2 + $0x768] sm:$0xff]
    %v332 = vld [vmem:[#allocation2 + $0x770] sm:$0xff]
    %v333 = vld [vmem:[#allocation2 + $0x778] sm:$0xff]
    %v334 = vld [vmem:[#allocation2 + $0x780] sm:$0xff]
    %v335 = vld [vmem:[#allocation2 + $0x788] sm:$0xff]
    %v336 = vld [vmem:[#allocation2 + $0x790] sm:$0xff]
    %v337 = vld [vmem:[#allocation2 + $0x798] sm:$0xff]
    %v338 = vld [vmem:[#allocation2 + $0x7a0] sm:$0xff]
    %v339 = vld [vmem:[#allocation2 + $0x7a8] sm:$0xff]
    %v340 = vld [vmem:[#allocation2 + $0x7b0] sm:$0xff]
    %v341 = vld [vmem:[#allocation2 + $0x7b8] sm:$0xff]
    %v342 = vld [vmem:[#allocation2 + $0x7c0] sm:$0xff]
    %v343 = vld [vmem:[#allocation2 + $0x7c8] sm:$0xff]
    %v344 = vld [vmem:[#allocation2 + $0x7d0] sm:$0xff]
    %v345 = vld [vmem:[#allocation2 + $0x7d8] sm:$0xff]
    %v346 = vld [vmem:[#allocation2 + $0x7e0] sm:$0xff]
    %v347 = vld [vmem:[#allocation2 + $0x7e8] sm:$0xff]
    %v348 = vld [vmem:[#allocation2 + $0x7f0] sm:$0xff]
    %v349 = vld [vmem:[#allocation2 + $0x7f8] sm:$0xff]
    %v350 = vld [vmem:[%s2] sm:$0xf]
    %v352 = vlaneseq
    %v353 = vshrl.u32 %v352, 7
    %v354 = vsub.s32 0, %v353
    %v355 = vrot.slane %v350, %v354
    %v356 = vlaneseq
    %v357 = vshrl.u32 %v356, 7
    %v358 = vsub.s32 1, %v357
    %v359 = vrot.slane %v350, %v358
    %v360 = vlaneseq
    %v361 = vshrl.u32 %v360, 7
    %v362 = vsub.s32 2, %v361
    %v363 = vrot.slane %v350, %v362
    %v364 = vlaneseq
    %v365 = vshrl.u32 %v364, 7
    %v366 = vsub.s32 3, %v365
    %v367 = vrot.slane %v350, %v366
    %v628 = vunpack.c.l.b16 %v94
    %v629 = vunpack.c.h.b16 %v94
    %v630 = vunpack.c.l.b16 %v95
    %v631 = vunpack.c.h.b16 %v95
    %v632 = vunpack.c.l.b16 %v96
    %v633 = vunpack.c.h.b16 %v96
    %v634 = vunpack.c.l.b16 %v97
    %v635 = vunpack.c.h.b16 %v97
    %v636 = vunpack.c.l.b16 %v98
    %v637 = vunpack.c.h.b16 %v98
    %v638 = vunpack.c.l.b16 %v99
    %v639 = vunpack.c.h.b16 %v99
    %v640 = vunpack.c.l.b16 %v100
    %v641 = vunpack.c.h.b16 %v100
    %v642 = vunpack.c.l.b16 %v101
    %v643 = vunpack.c.h.b16 %v101
    %v644 = vunpack.c.l.b16 %v102
    %v645 = vunpack.c.h.b16 %v102
    %v646 = vunpack.c.l.b16 %v103
    %v647 = vunpack.c.h.b16 %v103
    %v648 = vunpack.c.l.b16 %v104
    %v649 = vunpack.c.h.b16 %v104
    %v650 = vunpack.c.l.b16 %v105
    %v651 = vunpack.c.h.b16 %v105
    %v652 = vunpack.c.l.b16 %v106
    %v653 = vunpack.c.h.b16 %v106
    %v654 = vunpack.c.l.b16 %v107
    %v655 = vunpack.c.h.b16 %v107
    %v656 = vunpack.c.l.b16 %v108
    %v657 = vunpack.c.h.b16 %v108
    %v658 = vunpack.c.l.b16 %v109
    %v659 = vunpack.c.h.b16 %v109
    %v660 = vunpack.c.l.b16 %v110
    %v661 = vunpack.c.h.b16 %v110
    %v662 = vunpack.c.l.b16 %v111
    %v663 = vunpack.c.h.b16 %v111
    %v664 = vunpack.c.l.b16 %v112
    %v665 = vunpack.c.h.b16 %v112
    %v666 = vunpack.c.l.b16 %v113
    %v667 = vunpack.c.h.b16 %v113
    %v668 = vunpack.c.l.b16 %v114
    %v669 = vunpack.c.h.b16 %v114
    %v670 = vunpack.c.l.b16 %v115
    %v671 = vunpack.c.h.b16 %v115
    %v672 = vunpack.c.l.b16 %v116
    %v673 = vunpack.c.h.b16 %v116
    %v674 = vunpack.c.l.b16 %v117
    %v675 = vunpack.c.h.b16 %v117
    %v676 = vunpack.c.l.b16 %v118
    %v677 = vunpack.c.h.b16 %v118
    %v678 = vunpack.c.l.b16 %v119
    %v679 = vunpack.c.h.b16 %v119
    %v680 = vunpack.c.l.b16 %v120
    %v681 = vunpack.c.h.b16 %v120
    %v682 = vunpack.c.l.b16 %v121
    %v683 = vunpack.c.h.b16 %v121
    %v684 = vunpack.c.l.b16 %v122
    %v685 = vunpack.c.h.b16 %v122
    %v686 = vunpack.c.l.b16 %v123
    %v687 = vunpack.c.h.b16 %v123
    %v688 = vunpack.c.l.b16 %v124
    %v689 = vunpack.c.h.b16 %v124
    %v690 = vunpack.c.l.b16 %v125
    %v691 = vunpack.c.h.b16 %v125
    %v692 = vunpack.c.l.b16 %v126
    %v693 = vunpack.c.h.b16 %v126
    %v694 = vunpack.c.l.b16 %v127
    %v695 = vunpack.c.h.b16 %v127
    %v696 = vunpack.c.l.b16 %v128
    %v697 = vunpack.c.h.b16 %v128
    %v698 = vunpack.c.l.b16 %v129
    %v699 = vunpack.c.h.b16 %v129
    %v700 = vunpack.c.l.b16 %v130
    %v701 = vunpack.c.h.b16 %v130
    %v702 = vunpack.c.l.b16 %v131
    %v703 = vunpack.c.h.b16 %v131
    %v704 = vunpack.c.l.b16 %v132
    %v705 = vunpack.c.h.b16 %v132
    %v706 = vunpack.c.l.b16 %v133
    %v707 = vunpack.c.h.b16 %v133
    %v708 = vunpack.c.l.b16 %v134
    %v709 = vunpack.c.h.b16 %v134
    %v710 = vunpack.c.l.b16 %v135
    %v711 = vunpack.c.h.b16 %v135
    %v712 = vunpack.c.l.b16 %v136
    %v713 = vunpack.c.h.b16 %v136
    %v714 = vunpack.c.l.b16 %v137
    %v715 = vunpack.c.h.b16 %v137
    %v716 = vunpack.c.l.b16 %v138
    %v717 = vunpack.c.h.b16 %v138
    %v718 = vunpack.c.l.b16 %v139
    %v719 = vunpack.c.h.b16 %v139
    %v720 = vunpack.c.l.b16 %v140
    %v721 = vunpack.c.h.b16 %v140
    %v722 = vunpack.c.l.b16 %v141
    %v723 = vunpack.c.h.b16 %v141
    %v724 = vunpack.c.l.b16 %v142
    %v725 = vunpack.c.h.b16 %v142
    %v726 = vunpack.c.l.b16 %v143
    %v727 = vunpack.c.h.b16 %v143
    %v728 = vunpack.c.l.b16 %v144
    %v729 = vunpack.c.h.b16 %v144
    %v730 = vunpack.c.l.b16 %v145
    %v731 = vunpack.c.h.b16 %v145
    %v732 = vunpack.c.l.b16 %v146
    %v733 = vunpack.c.h.b16 %v146
    %v734 = vunpack.c.l.b16 %v147
    %v735 = vunpack.c.h.b16 %v147
    %v736 = vunpack.c.l.b16 %v148
    %v737 = vunpack.c.h.b16 %v148
    %v738 = vunpack.c.l.b16 %v149
    %v739 = vunpack.c.h.b16 %v149
    %v740 = vunpack.c.l.b16 %v150
    %v741 = vunpack.c.h.b16 %v150
    %v742 = vunpack.c.l.b16 %v151
    %v743 = vunpack.c.h.b16 %v151
    %v744 = vunpack.c.l.b16 %v152
    %v745 = vunpack.c.h.b16 %v152
    %v746 = vunpack.c.l.b16 %v153
    %v747 = vunpack.c.h.b16 %v153
    %v748 = vunpack.c.l.b16 %v154
    %v749 = vunpack.c.h.b16 %v154
    %v750 = vunpack.c.l.b16 %v155
    %v751 = vunpack.c.h.b16 %v155
    %v752 = vunpack.c.l.b16 %v156
    %v753 = vunpack.c.h.b16 %v156
    %v754 = vunpack.c.l.b16 %v157
    %v755 = vunpack.c.h.b16 %v157
    %v756 = vunpack.c.l.b16 %v158
    %v757 = vunpack.c.h.b16 %v158
    %v758 = vunpack.c.l.b16 %v159
    %v759 = vunpack.c.h.b16 %v159
    %v760 = vunpack.c.l.b16 %v160
    %v761 = vunpack.c.h.b16 %v160
    %v762 = vunpack.c.l.b16 %v161
    %v763 = vunpack.c.h.b16 %v161
    %v764 = vunpack.c.l.b16 %v162
    %v765 = vunpack.c.h.b16 %v162
    %v766 = vunpack.c.l.b16 %v163
    %v767 = vunpack.c.h.b16 %v163
    %v768 = vunpack.c.l.b16 %v164
    %v769 = vunpack.c.h.b16 %v164
    %v770 = vunpack.c.l.b16 %v165
    %v771 = vunpack.c.h.b16 %v165
    %v772 = vunpack.c.l.b16 %v166
    %v773 = vunpack.c.h.b16 %v166
    %v774 = vunpack.c.l.b16 %v167
    %v775 = vunpack.c.h.b16 %v167
    %v776 = vunpack.c.l.b16 %v168
    %v777 = vunpack.c.h.b16 %v168
    %v778 = vunpack.c.l.b16 %v169
    %v779 = vunpack.c.h.b16 %v169
    %v780 = vunpack.c.l.b16 %v170
    %v781 = vunpack.c.h.b16 %v170
    %v782 = vunpack.c.l.b16 %v171
    %v783 = vunpack.c.h.b16 %v171
    %v784 = vunpack.c.l.b16 %v172
    %v785 = vunpack.c.h.b16 %v172
    %v786 = vunpack.c.l.b16 %v173
    %v787 = vunpack.c.h.b16 %v173
    %v788 = vunpack.c.l.b16 %v174
    %v789 = vunpack.c.h.b16 %v174
    %v790 = vunpack.c.l.b16 %v175
    %v791 = vunpack.c.h.b16 %v175
    %v792 = vunpack.c.l.b16 %v176
    %v793 = vunpack.c.h.b16 %v176
    %v794 = vunpack.c.l.b16 %v177
    %v795 = vunpack.c.h.b16 %v177
    %v796 = vunpack.c.l.b16 %v178
    %v797 = vunpack.c.h.b16 %v178
    %v798 = vunpack.c.l.b16 %v179
    %v799 = vunpack.c.h.b16 %v179
    %v800 = vunpack.c.l.b16 %v180
    %v801 = vunpack.c.h.b16 %v180
    %v802 = vunpack.c.l.b16 %v181
    %v803 = vunpack.c.h.b16 %v181
    %v804 = vunpack.c.l.b16 %v182
    %v805 = vunpack.c.h.b16 %v182
    %v806 = vunpack.c.l.b16 %v183
    %v807 = vunpack.c.h.b16 %v183
    %v808 = vunpack.c.l.b16 %v184
    %v809 = vunpack.c.h.b16 %v184
    %v810 = vunpack.c.l.b16 %v185
    %v811 = vunpack.c.h.b16 %v185
    %v812 = vunpack.c.l.b16 %v186
    %v813 = vunpack.c.h.b16 %v186
    %v814 = vunpack.c.l.b16 %v187
    %v815 = vunpack.c.h.b16 %v187
    %v816 = vunpack.c.l.b16 %v188
    %v817 = vunpack.c.h.b16 %v188
    %v818 = vunpack.c.l.b16 %v189
    %v819 = vunpack.c.h.b16 %v189
    %v820 = vunpack.c.l.b16 %v190
    %v821 = vunpack.c.h.b16 %v190
    %v822 = vunpack.c.l.b16 %v191
    %v823 = vunpack.c.h.b16 %v191
    %v824 = vunpack.c.l.b16 %v192
    %v825 = vunpack.c.h.b16 %v192
    %v826 = vunpack.c.l.b16 %v193
    %v827 = vunpack.c.h.b16 %v193
    %v828 = vunpack.c.l.b16 %v194
    %v829 = vunpack.c.h.b16 %v194
    %v830 = vunpack.c.l.b16 %v195
    %v831 = vunpack.c.h.b16 %v195
    %v832 = vunpack.c.l.b16 %v196
    %v833 = vunpack.c.h.b16 %v196
    %v834 = vunpack.c.l.b16 %v197
    %v835 = vunpack.c.h.b16 %v197
    %v836 = vunpack.c.l.b16 %v198
    %v837 = vunpack.c.h.b16 %v198
    %v838 = vunpack.c.l.b16 %v199
    %v839 = vunpack.c.h.b16 %v199
    %v840 = vunpack.c.l.b16 %v200
    %v841 = vunpack.c.h.b16 %v200
    %v842 = vunpack.c.l.b16 %v201
    %v843 = vunpack.c.h.b16 %v201
    %v844 = vunpack.c.l.b16 %v202
    %v845 = vunpack.c.h.b16 %v202
    %v846 = vunpack.c.l.b16 %v203
    %v847 = vunpack.c.h.b16 %v203
    %v848 = vunpack.c.l.b16 %v204
    %v849 = vunpack.c.h.b16 %v204
    %v850 = vunpack.c.l.b16 %v205
    %v851 = vunpack.c.h.b16 %v205
    %v852 = vunpack.c.l.b16 %v206
    %v853 = vunpack.c.h.b16 %v206
    %v854 = vunpack.c.l.b16 %v207
    %v855 = vunpack.c.h.b16 %v207
    %v856 = vunpack.c.l.b16 %v208
    %v857 = vunpack.c.h.b16 %v208
    %v858 = vunpack.c.l.b16 %v209
    %v859 = vunpack.c.h.b16 %v209
    %v860 = vunpack.c.l.b16 %v210
    %v861 = vunpack.c.h.b16 %v210
    %v862 = vunpack.c.l.b16 %v211
    %v863 = vunpack.c.h.b16 %v211
    %v864 = vunpack.c.l.b16 %v212
    %v865 = vunpack.c.h.b16 %v212
    %v866 = vunpack.c.l.b16 %v213
    %v867 = vunpack.c.h.b16 %v213
    %v868 = vunpack.c.l.b16 %v214
    %v869 = vunpack.c.h.b16 %v214
    %v870 = vunpack.c.l.b16 %v215
    %v871 = vunpack.c.h.b16 %v215
    %v872 = vunpack.c.l.b16 %v216
    %v873 = vunpack.c.h.b16 %v216
    %v874 = vunpack.c.l.b16 %v217
    %v875 = vunpack.c.h.b16 %v217
    %v876 = vunpack.c.l.b16 %v218
    %v877 = vunpack.c.h.b16 %v218
    %v878 = vunpack.c.l.b16 %v219
    %v879 = vunpack.c.h.b16 %v219
    %v880 = vunpack.c.l.b16 %v220
    %v881 = vunpack.c.h.b16 %v220
    %v882 = vunpack.c.l.b16 %v221
    %v883 = vunpack.c.h.b16 %v221
    %v884 = vunpack.c.l.b16 %v222
    %v885 = vunpack.c.h.b16 %v222
    %v886 = vunpack.c.l.b16 %v223
    %v887 = vunpack.c.h.b16 %v223
    %v888 = vunpack.c.l.b16 %v224
    %v889 = vunpack.c.h.b16 %v224
    %v890 = vunpack.c.l.b16 %v225
    %v891 = vunpack.c.h.b16 %v225
    %v892 = vunpack.c.l.b16 %v226
    %v893 = vunpack.c.h.b16 %v226
    %v894 = vunpack.c.l.b16 %v227
    %v895 = vunpack.c.h.b16 %v227
    %v896 = vunpack.c.l.b16 %v228
    %v897 = vunpack.c.h.b16 %v228
    %v898 = vunpack.c.l.b16 %v229
    %v899 = vunpack.c.h.b16 %v229
    %v900 = vunpack.c.l.b16 %v230
    %v901 = vunpack.c.h.b16 %v230
    %v902 = vunpack.c.l.b16 %v231
    %v903 = vunpack.c.h.b16 %v231
    %v904 = vunpack.c.l.b16 %v232
    %v905 = vunpack.c.h.b16 %v232
    %v906 = vunpack.c.l.b16 %v233
    %v907 = vunpack.c.h.b16 %v233
    %v908 = vunpack.c.l.b16 %v234
    %v909 = vunpack.c.h.b16 %v234
    %v910 = vunpack.c.l.b16 %v235
    %v911 = vunpack.c.h.b16 %v235
    %v912 = vunpack.c.l.b16 %v236
    %v913 = vunpack.c.h.b16 %v236
    %v914 = vunpack.c.l.b16 %v237
    %v915 = vunpack.c.h.b16 %v237
    %v916 = vunpack.c.l.b16 %v238
    %v917 = vunpack.c.h.b16 %v238
    %v918 = vunpack.c.l.b16 %v239
    %v919 = vunpack.c.h.b16 %v239
    %v920 = vunpack.c.l.b16 %v240
    %v921 = vunpack.c.h.b16 %v240
    %v922 = vunpack.c.l.b16 %v241
    %v923 = vunpack.c.h.b16 %v241
    %v924 = vunpack.c.l.b16 %v242
    %v925 = vunpack.c.h.b16 %v242
    %v926 = vunpack.c.l.b16 %v243
    %v927 = vunpack.c.h.b16 %v243
    %v928 = vunpack.c.l.b16 %v244
    %v929 = vunpack.c.h.b16 %v244
    %v930 = vunpack.c.l.b16 %v245
    %v931 = vunpack.c.h.b16 %v245
    %v932 = vunpack.c.l.b16 %v246
    %v933 = vunpack.c.h.b16 %v246
    %v934 = vunpack.c.l.b16 %v247
    %v935 = vunpack.c.h.b16 %v247
    %v936 = vunpack.c.l.b16 %v248
    %v937 = vunpack.c.h.b16 %v248
    %v938 = vunpack.c.l.b16 %v249
    %v939 = vunpack.c.h.b16 %v249
    %v940 = vunpack.c.l.b16 %v250
    %v941 = vunpack.c.h.b16 %v250
    %v942 = vunpack.c.l.b16 %v251
    %v943 = vunpack.c.h.b16 %v251
    %v944 = vunpack.c.l.b16 %v252
    %v945 = vunpack.c.h.b16 %v252
    %v946 = vunpack.c.l.b16 %v253
    %v947 = vunpack.c.h.b16 %v253
    %v948 = vunpack.c.l.b16 %v254
    %v949 = vunpack.c.h.b16 %v254
    %v950 = vunpack.c.l.b16 %v255
    %v951 = vunpack.c.h.b16 %v255
    %v952 = vunpack.c.l.b16 %v256
    %v953 = vunpack.c.h.b16 %v256
    %v954 = vunpack.c.l.b16 %v257
    %v955 = vunpack.c.h.b16 %v257
    %v956 = vunpack.c.l.b16 %v258
    %v957 = vunpack.c.h.b16 %v258
    %v958 = vunpack.c.l.b16 %v259
    %v959 = vunpack.c.h.b16 %v259
    %v960 = vunpack.c.l.b16 %v260
    %v961 = vunpack.c.h.b16 %v260
    %v962 = vunpack.c.l.b16 %v261
    %v963 = vunpack.c.h.b16 %v261
    %v964 = vunpack.c.l.b16 %v262
    %v965 = vunpack.c.h.b16 %v262
    %v966 = vunpack.c.l.b16 %v263
    %v967 = vunpack.c.h.b16 %v263
    %v968 = vunpack.c.l.b16 %v264
    %v969 = vunpack.c.h.b16 %v264
    %v970 = vunpack.c.l.b16 %v265
    %v971 = vunpack.c.h.b16 %v265
    %v972 = vunpack.c.l.b16 %v266
    %v973 = vunpack.c.h.b16 %v266
    %v974 = vunpack.c.l.b16 %v267
    %v975 = vunpack.c.h.b16 %v267
    %v976 = vunpack.c.l.b16 %v268
    %v977 = vunpack.c.h.b16 %v268
    %v978 = vunpack.c.l.b16 %v269
    %v979 = vunpack.c.h.b16 %v269
    %v980 = vunpack.c.l.b16 %v270
    %v981 = vunpack.c.h.b16 %v270
    %v982 = vunpack.c.l.b16 %v271
    %v983 = vunpack.c.h.b16 %v271
    %v984 = vunpack.c.l.b16 %v272
    %v985 = vunpack.c.h.b16 %v272
    %v986 = vunpack.c.l.b16 %v273
    %v987 = vunpack.c.h.b16 %v273
    %v988 = vunpack.c.l.b16 %v274
    %v989 = vunpack.c.h.b16 %v274
    %v990 = vunpack.c.l.b16 %v275
    %v991 = vunpack.c.h.b16 %v275
    %v992 = vunpack.c.l.b16 %v276
    %v993 = vunpack.c.h.b16 %v276
    %v994 = vunpack.c.l.b16 %v277
    %v995 = vunpack.c.h.b16 %v277
    %v996 = vunpack.c.l.b16 %v278
    %v997 = vunpack.c.h.b16 %v278
    %v998 = vunpack.c.l.b16 %v279
    %v999 = vunpack.c.h.b16 %v279
    %v1000 = vunpack.c.l.b16 %v280
    %v1001 = vunpack.c.h.b16 %v280
    %v1002 = vunpack.c.l.b16 %v281
    %v1003 = vunpack.c.h.b16 %v281
    %v1004 = vunpack.c.l.b16 %v282
    %v1005 = vunpack.c.h.b16 %v282
    %v1006 = vunpack.c.l.b16 %v283
    %v1007 = vunpack.c.h.b16 %v283
    %v1008 = vunpack.c.l.b16 %v284
    %v1009 = vunpack.c.h.b16 %v284
    %v1010 = vunpack.c.l.b16 %v285
    %v1011 = vunpack.c.h.b16 %v285
    %v1012 = vunpack.c.l.b16 %v286
    %v1013 = vunpack.c.h.b16 %v286
    %v1014 = vunpack.c.l.b16 %v287
    %v1015 = vunpack.c.h.b16 %v287
    %v1016 = vunpack.c.l.b16 %v288
    %v1017 = vunpack.c.h.b16 %v288
    %v1018 = vunpack.c.l.b16 %v289
    %v1019 = vunpack.c.h.b16 %v289
    %v1020 = vunpack.c.l.b16 %v290
    %v1021 = vunpack.c.h.b16 %v290
    %v1022 = vunpack.c.l.b16 %v291
    %v1023 = vunpack.c.h.b16 %v291
    %v1024 = vunpack.c.l.b16 %v292
    %v1025 = vunpack.c.h.b16 %v292
    %v1026 = vunpack.c.l.b16 %v293
    %v1027 = vunpack.c.h.b16 %v293
    %v1028 = vunpack.c.l.b16 %v294
    %v1029 = vunpack.c.h.b16 %v294
    %v1030 = vunpack.c.l.b16 %v295
    %v1031 = vunpack.c.h.b16 %v295
    %v1032 = vunpack.c.l.b16 %v296
    %v1033 = vunpack.c.h.b16 %v296
    %v1034 = vunpack.c.l.b16 %v297
    %v1035 = vunpack.c.h.b16 %v297
    %v1036 = vunpack.c.l.b16 %v298
    %v1037 = vunpack.c.h.b16 %v298
    %v1038 = vunpack.c.l.b16 %v299
    %v1039 = vunpack.c.h.b16 %v299
    %v1040 = vunpack.c.l.b16 %v300
    %v1041 = vunpack.c.h.b16 %v300
    %v1042 = vunpack.c.l.b16 %v301
    %v1043 = vunpack.c.h.b16 %v301
    %v1044 = vunpack.c.l.b16 %v302
    %v1045 = vunpack.c.h.b16 %v302
    %v1046 = vunpack.c.l.b16 %v303
    %v1047 = vunpack.c.h.b16 %v303
    %v1048 = vunpack.c.l.b16 %v304
    %v1049 = vunpack.c.h.b16 %v304
    %v1050 = vunpack.c.l.b16 %v305
    %v1051 = vunpack.c.h.b16 %v305
    %v1052 = vunpack.c.l.b16 %v306
    %v1053 = vunpack.c.h.b16 %v306
    %v1054 = vunpack.c.l.b16 %v307
    %v1055 = vunpack.c.h.b16 %v307
    %v1056 = vunpack.c.l.b16 %v308
    %v1057 = vunpack.c.h.b16 %v308
    %v1058 = vunpack.c.l.b16 %v309
    %v1059 = vunpack.c.h.b16 %v309
    %v1060 = vunpack.c.l.b16 %v310
    %v1061 = vunpack.c.h.b16 %v310
    %v1062 = vunpack.c.l.b16 %v311
    %v1063 = vunpack.c.h.b16 %v311
    %v1064 = vunpack.c.l.b16 %v312
    %v1065 = vunpack.c.h.b16 %v312
    %v1066 = vunpack.c.l.b16 %v313
    %v1067 = vunpack.c.h.b16 %v313
    %v1068 = vunpack.c.l.b16 %v314
    %v1069 = vunpack.c.h.b16 %v314
    %v1070 = vunpack.c.l.b16 %v315
    %v1071 = vunpack.c.h.b16 %v315
    %v1072 = vunpack.c.l.b16 %v316
    %v1073 = vunpack.c.h.b16 %v316
    %v1074 = vunpack.c.l.b16 %v317
    %v1075 = vunpack.c.h.b16 %v317
    %v1076 = vunpack.c.l.b16 %v318
    %v1077 = vunpack.c.h.b16 %v318
    %v1078 = vunpack.c.l.b16 %v319
    %v1079 = vunpack.c.h.b16 %v319
    %v1080 = vunpack.c.l.b16 %v320
    %v1081 = vunpack.c.h.b16 %v320
    %v1082 = vunpack.c.l.b16 %v321
    %v1083 = vunpack.c.h.b16 %v321
    %v1084 = vunpack.c.l.b16 %v322
    %v1085 = vunpack.c.h.b16 %v322
    %v1086 = vunpack.c.l.b16 %v323
    %v1087 = vunpack.c.h.b16 %v323
    %v1088 = vunpack.c.l.b16 %v324
    %v1089 = vunpack.c.h.b16 %v324
    %v1090 = vunpack.c.l.b16 %v325
    %v1091 = vunpack.c.h.b16 %v325
    %v1092 = vunpack.c.l.b16 %v326
    %v1093 = vunpack.c.h.b16 %v326
    %v1094 = vunpack.c.l.b16 %v327
    %v1095 = vunpack.c.h.b16 %v327
    %v1096 = vunpack.c.l.b16 %v328
    %v1097 = vunpack.c.h.b16 %v328
    %v1098 = vunpack.c.l.b16 %v329
    %v1099 = vunpack.c.h.b16 %v329
    %v1100 = vunpack.c.l.b16 %v330
    %v1101 = vunpack.c.h.b16 %v330
    %v1102 = vunpack.c.l.b16 %v331
    %v1103 = vunpack.c.h.b16 %v331
    %v1104 = vunpack.c.l.b16 %v332
    %v1105 = vunpack.c.h.b16 %v332
    %v1106 = vunpack.c.l.b16 %v333
    %v1107 = vunpack.c.h.b16 %v333
    %v1108 = vunpack.c.l.b16 %v334
    %v1109 = vunpack.c.h.b16 %v334
    %v1110 = vunpack.c.l.b16 %v335
    %v1111 = vunpack.c.h.b16 %v335
    %v1112 = vunpack.c.l.b16 %v336
    %v1113 = vunpack.c.h.b16 %v336
    %v1114 = vunpack.c.l.b16 %v337
    %v1115 = vunpack.c.h.b16 %v337
    %v1116 = vunpack.c.l.b16 %v338
    %v1117 = vunpack.c.h.b16 %v338
    %v1118 = vunpack.c.l.b16 %v339
    %v1119 = vunpack.c.h.b16 %v339
    %v1120 = vunpack.c.l.b16 %v340
    %v1121 = vunpack.c.h.b16 %v340
    %v1122 = vunpack.c.l.b16 %v341
    %v1123 = vunpack.c.h.b16 %v341
    %v1124 = vunpack.c.l.b16 %v342
    %v1125 = vunpack.c.h.b16 %v342
    %v1126 = vunpack.c.l.b16 %v343
    %v1127 = vunpack.c.h.b16 %v343
    %v1128 = vunpack.c.l.b16 %v344
    %v1129 = vunpack.c.h.b16 %v344
    %v1130 = vunpack.c.l.b16 %v345
    %v1131 = vunpack.c.h.b16 %v345
    %v1132 = vunpack.c.l.b16 %v346
    %v1133 = vunpack.c.h.b16 %v346
    %v1134 = vunpack.c.l.b16 %v347
    %v1135 = vunpack.c.h.b16 %v347
    %v1136 = vunpack.c.l.b16 %v348
    %v1137 = vunpack.c.h.b16 %v348
    %v1138 = vunpack.c.l.b16 %v349
    %v1139 = vunpack.c.h.b16 %v349
    %v1140 = vpack.c.b16 %v632, %v628
    %v1141 = vpack.c.b16 %v633, %v629
    %v1142 = vpack.c.b16 %v634, %v630
    %v1143 = vpack.c.b16 %v635, %v631
    %v1144 = vpack.c.b16 %v640, %v636
    %v1145 = vpack.c.b16 %v641, %v637
    %v1146 = vpack.c.b16 %v642, %v638
    %v1147 = vpack.c.b16 %v643, %v639
    %v1148 = vpack.c.b16 %v648, %v644
    %v1149 = vpack.c.b16 %v649, %v645
    %v1150 = vpack.c.b16 %v650, %v646
    %v1151 = vpack.c.b16 %v651, %v647
    %v1152 = vpack.c.b16 %v656, %v652
    %v1153 = vpack.c.b16 %v657, %v653
    %v1154 = vpack.c.b16 %v658, %v654
    %v1155 = vpack.c.b16 %v659, %v655
    %v1156 = vpack.c.b16 %v664, %v660
    %v1157 = vpack.c.b16 %v665, %v661
    %v1158 = vpack.c.b16 %v666, %v662
    %v1159 = vpack.c.b16 %v667, %v663
    %v1160 = vpack.c.b16 %v672, %v668
    %v1161 = vpack.c.b16 %v673, %v669
    %v1162 = vpack.c.b16 %v674, %v670
    %v1163 = vpack.c.b16 %v675, %v671
    %v1164 = vpack.c.b16 %v680, %v676
    %v1165 = vpack.c.b16 %v681, %v677
    %v1166 = vpack.c.b16 %v682, %v678
    %v1167 = vpack.c.b16 %v683, %v679
    %v1168 = vpack.c.b16 %v688, %v684
    %v1169 = vpack.c.b16 %v689, %v685
    %v1170 = vpack.c.b16 %v690, %v686
    %v1171 = vpack.c.b16 %v691, %v687
    %v1172 = vpack.c.b16 %v696, %v692
    %v1173 = vpack.c.b16 %v697, %v693
    %v1174 = vpack.c.b16 %v698, %v694
    %v1175 = vpack.c.b16 %v699, %v695
    %v1176 = vpack.c.b16 %v704, %v700
    %v1177 = vpack.c.b16 %v705, %v701
    %v1178 = vpack.c.b16 %v706, %v702
    %v1179 = vpack.c.b16 %v707, %v703
    %v1180 = vpack.c.b16 %v712, %v708
    %v1181 = vpack.c.b16 %v713, %v709
    %v1182 = vpack.c.b16 %v714, %v710
    %v1183 = vpack.c.b16 %v715, %v711
    %v1184 = vpack.c.b16 %v720, %v716
    %v1185 = vpack.c.b16 %v721, %v717
    %v1186 = vpack.c.b16 %v722, %v718
    %v1187 = vpack.c.b16 %v723, %v719
    %v1188 = vpack.c.b16 %v728, %v724
    %v1189 = vpack.c.b16 %v729, %v725
    %v1190 = vpack.c.b16 %v730, %v726
    %v1191 = vpack.c.b16 %v731, %v727
    %v1192 = vpack.c.b16 %v736, %v732
    %v1193 = vpack.c.b16 %v737, %v733
    %v1194 = vpack.c.b16 %v738, %v734
    %v1195 = vpack.c.b16 %v739, %v735
    %v1196 = vpack.c.b16 %v744, %v740
    %v1197 = vpack.c.b16 %v745, %v741
    %v1198 = vpack.c.b16 %v746, %v742
    %v1199 = vpack.c.b16 %v747, %v743
    %v1200 = vpack.c.b16 %v752, %v748
    %v1201 = vpack.c.b16 %v753, %v749
    %v1202 = vpack.c.b16 %v754, %v750
    %v1203 = vpack.c.b16 %v755, %v751
    %v1204 = vpack.c.b16 %v760, %v756
    %v1205 = vpack.c.b16 %v761, %v757
    %v1206 = vpack.c.b16 %v762, %v758
    %v1207 = vpack.c.b16 %v763, %v759
    %v1208 = vpack.c.b16 %v768, %v764
    %v1209 = vpack.c.b16 %v769, %v765
    %v1210 = vpack.c.b16 %v770, %v766
    %v1211 = vpack.c.b16 %v771, %v767
    %v1212 = vpack.c.b16 %v776, %v772
    %v1213 = vpack.c.b16 %v777, %v773
    %v1214 = vpack.c.b16 %v778, %v774
    %v1215 = vpack.c.b16 %v779, %v775
    %v1216 = vpack.c.b16 %v784, %v780
    %v1217 = vpack.c.b16 %v785, %v781
    %v1218 = vpack.c.b16 %v786, %v782
    %v1219 = vpack.c.b16 %v787, %v783
    %v1220 = vpack.c.b16 %v792, %v788
    %v1221 = vpack.c.b16 %v793, %v789
    %v1222 = vpack.c.b16 %v794, %v790
    %v1223 = vpack.c.b16 %v795, %v791
    %v1224 = vpack.c.b16 %v800, %v796
    %v1225 = vpack.c.b16 %v801, %v797
    %v1226 = vpack.c.b16 %v802, %v798
    %v1227 = vpack.c.b16 %v803, %v799
    %v1228 = vpack.c.b16 %v808, %v804
    %v1229 = vpack.c.b16 %v809, %v805
    %v1230 = vpack.c.b16 %v810, %v806
    %v1231 = vpack.c.b16 %v811, %v807
    %v1232 = vpack.c.b16 %v816, %v812
    %v1233 = vpack.c.b16 %v817, %v813
    %v1234 = vpack.c.b16 %v818, %v814
    %v1235 = vpack.c.b16 %v819, %v815
    %v1236 = vpack.c.b16 %v824, %v820
    %v1237 = vpack.c.b16 %v825, %v821
    %v1238 = vpack.c.b16 %v826, %v822
    %v1239 = vpack.c.b16 %v827, %v823
    %v1240 = vpack.c.b16 %v832, %v828
    %v1241 = vpack.c.b16 %v833, %v829
    %v1242 = vpack.c.b16 %v834, %v830
    %v1243 = vpack.c.b16 %v835, %v831
    %v1244 = vpack.c.b16 %v840, %v836
    %v1245 = vpack.c.b16 %v841, %v837
    %v1246 = vpack.c.b16 %v842, %v838
    %v1247 = vpack.c.b16 %v843, %v839
    %v1248 = vpack.c.b16 %v848, %v844
    %v1249 = vpack.c.b16 %v849, %v845
    %v1250 = vpack.c.b16 %v850, %v846
    %v1251 = vpack.c.b16 %v851, %v847
    %v1252 = vpack.c.b16 %v856, %v852
    %v1253 = vpack.c.b16 %v857, %v853
    %v1254 = vpack.c.b16 %v858, %v854
    %v1255 = vpack.c.b16 %v859, %v855
    %v1256 = vpack.c.b16 %v864, %v860
    %v1257 = vpack.c.b16 %v865, %v861
    %v1258 = vpack.c.b16 %v866, %v862
    %v1259 = vpack.c.b16 %v867, %v863
    %v1260 = vpack.c.b16 %v872, %v868
    %v1261 = vpack.c.b16 %v873, %v869
    %v1262 = vpack.c.b16 %v874, %v870
    %v1263 = vpack.c.b16 %v875, %v871
    %v1264 = vpack.c.b16 %v880, %v876
    %v1265 = vpack.c.b16 %v881, %v877
    %v1266 = vpack.c.b16 %v882, %v878
    %v1267 = vpack.c.b16 %v883, %v879
    %v1268 = vpack.c.b16 %v888, %v884
    %v1269 = vpack.c.b16 %v889, %v885
    %v1270 = vpack.c.b16 %v890, %v886
    %v1271 = vpack.c.b16 %v891, %v887
    %v1272 = vpack.c.b16 %v896, %v892
    %v1273 = vpack.c.b16 %v897, %v893
    %v1274 = vpack.c.b16 %v898, %v894
    %v1275 = vpack.c.b16 %v899, %v895
    %v1276 = vpack.c.b16 %v904, %v900
    %v1277 = vpack.c.b16 %v905, %v901
    %v1278 = vpack.c.b16 %v906, %v902
    %v1279 = vpack.c.b16 %v907, %v903
    %v1280 = vpack.c.b16 %v912, %v908
    %v1281 = vpack.c.b16 %v913, %v909
    %v1282 = vpack.c.b16 %v914, %v910
    %v1283 = vpack.c.b16 %v915, %v911
    %v1284 = vpack.c.b16 %v920, %v916
    %v1285 = vpack.c.b16 %v921, %v917
    %v1286 = vpack.c.b16 %v922, %v918
    %v1287 = vpack.c.b16 %v923, %v919
    %v1288 = vpack.c.b16 %v928, %v924
    %v1289 = vpack.c.b16 %v929, %v925
    %v1290 = vpack.c.b16 %v930, %v926
    %v1291 = vpack.c.b16 %v931, %v927
    %v1292 = vpack.c.b16 %v936, %v932
    %v1293 = vpack.c.b16 %v937, %v933
    %v1294 = vpack.c.b16 %v938, %v934
    %v1295 = vpack.c.b16 %v939, %v935
    %v1296 = vpack.c.b16 %v944, %v940
    %v1297 = vpack.c.b16 %v945, %v941
    %v1298 = vpack.c.b16 %v946, %v942
    %v1299 = vpack.c.b16 %v947, %v943
    %v1300 = vpack.c.b16 %v952, %v948
    %v1301 = vpack.c.b16 %v953, %v949
    %v1302 = vpack.c.b16 %v954, %v950
    %v1303 = vpack.c.b16 %v955, %v951
    %v1304 = vpack.c.b16 %v960, %v956
    %v1305 = vpack.c.b16 %v961, %v957
    %v1306 = vpack.c.b16 %v962, %v958
    %v1307 = vpack.c.b16 %v963, %v959
    %v1308 = vpack.c.b16 %v968, %v964
    %v1309 = vpack.c.b16 %v969, %v965
    %v1310 = vpack.c.b16 %v970, %v966
    %v1311 = vpack.c.b16 %v971, %v967
    %v1312 = vpack.c.b16 %v976, %v972
    %v1313 = vpack.c.b16 %v977, %v973
    %v1314 = vpack.c.b16 %v978, %v974
    %v1315 = vpack.c.b16 %v979, %v975
    %v1316 = vpack.c.b16 %v984, %v980
    %v1317 = vpack.c.b16 %v985, %v981
    %v1318 = vpack.c.b16 %v986, %v982
    %v1319 = vpack.c.b16 %v987, %v983
    %v1320 = vpack.c.b16 %v992, %v988
    %v1321 = vpack.c.b16 %v993, %v989
    %v1322 = vpack.c.b16 %v994, %v990
    %v1323 = vpack.c.b16 %v995, %v991
    %v1324 = vpack.c.b16 %v1000, %v996
    %v1325 = vpack.c.b16 %v1001, %v997
    %v1326 = vpack.c.b16 %v1002, %v998
    %v1327 = vpack.c.b16 %v1003, %v999
    %v1328 = vpack.c.b16 %v1008, %v1004
    %v1329 = vpack.c.b16 %v1009, %v1005
    %v1330 = vpack.c.b16 %v1010, %v1006
    %v1331 = vpack.c.b16 %v1011, %v1007
    %v1332 = vpack.c.b16 %v1016, %v1012
    %v1333 = vpack.c.b16 %v1017, %v1013
    %v1334 = vpack.c.b16 %v1018, %v1014
    %v1335 = vpack.c.b16 %v1019, %v1015
    %v1336 = vpack.c.b16 %v1024, %v1020
    %v1337 = vpack.c.b16 %v1025, %v1021
    %v1338 = vpack.c.b16 %v1026, %v1022
    %v1339 = vpack.c.b16 %v1027, %v1023
    %v1340 = vpack.c.b16 %v1032, %v1028
    %v1341 = vpack.c.b16 %v1033, %v1029
    %v1342 = vpack.c.b16 %v1034, %v1030
    %v1343 = vpack.c.b16 %v1035, %v1031
    %v1344 = vpack.c.b16 %v1040, %v1036
    %v1345 = vpack.c.b16 %v1041, %v1037
    %v1346 = vpack.c.b16 %v1042, %v1038
    %v1347 = vpack.c.b16 %v1043, %v1039
    %v1348 = vpack.c.b16 %v1048, %v1044
    %v1349 = vpack.c.b16 %v1049, %v1045
    %v1350 = vpack.c.b16 %v1050, %v1046
    %v1351 = vpack.c.b16 %v1051, %v1047
    %v1352 = vpack.c.b16 %v1056, %v1052
    %v1353 = vpack.c.b16 %v1057, %v1053
    %v1354 = vpack.c.b16 %v1058, %v1054
    %v1355 = vpack.c.b16 %v1059, %v1055
    %v1356 = vpack.c.b16 %v1064, %v1060
    %v1357 = vpack.c.b16 %v1065, %v1061
    %v1358 = vpack.c.b16 %v1066, %v1062
    %v1359 = vpack.c.b16 %v1067, %v1063
    %v1360 = vpack.c.b16 %v1072, %v1068
    %v1361 = vpack.c.b16 %v1073, %v1069
    %v1362 = vpack.c.b16 %v1074, %v1070
    %v1363 = vpack.c.b16 %v1075, %v1071
    %v1364 = vpack.c.b16 %v1080, %v1076
    %v1365 = vpack.c.b16 %v1081, %v1077
    %v1366 = vpack.c.b16 %v1082, %v1078
    %v1367 = vpack.c.b16 %v1083, %v1079
    %v1368 = vpack.c.b16 %v1088, %v1084
    %v1369 = vpack.c.b16 %v1089, %v1085
    %v1370 = vpack.c.b16 %v1090, %v1086
    %v1371 = vpack.c.b16 %v1091, %v1087
    %v1372 = vpack.c.b16 %v1096, %v1092
    %v1373 = vpack.c.b16 %v1097, %v1093
    %v1374 = vpack.c.b16 %v1098, %v1094
    %v1375 = vpack.c.b16 %v1099, %v1095
    %v1376 = vpack.c.b16 %v1104, %v1100
    %v1377 = vpack.c.b16 %v1105, %v1101
    %v1378 = vpack.c.b16 %v1106, %v1102
    %v1379 = vpack.c.b16 %v1107, %v1103
    %v1380 = vpack.c.b16 %v1112, %v1108
    %v1381 = vpack.c.b16 %v1113, %v1109
    %v1382 = vpack.c.b16 %v1114, %v1110
    %v1383 = vpack.c.b16 %v1115, %v1111
    %v1384 = vpack.c.b16 %v1120, %v1116
    %v1385 = vpack.c.b16 %v1121, %v1117
    %v1386 = vpack.c.b16 %v1122, %v1118
    %v1387 = vpack.c.b16 %v1123, %v1119
    %v1388 = vpack.c.b16 %v1128, %v1124
    %v1389 = vpack.c.b16 %v1129, %v1125
    %v1390 = vpack.c.b16 %v1130, %v1126
    %v1391 = vpack.c.b16 %v1131, %v1127
    %v1392 = vpack.c.b16 %v1136, %v1132
    %v1393 = vpack.c.b16 %v1137, %v1133
    %v1394 = vpack.c.b16 %v1138, %v1134
    %v1395 = vpack.c.b16 %v1139, %v1135
    %1652 = vmatprep.subr.bf16.mxu0 %v1169
    %1653 = vmatpush1.bf16.msra.mxu0 %v1168
    %1654 = vmatprep.subr.bf16.mxu0 %v1165
    %1655 = vmatpush1.bf16.msra.mxu0 %v1164
    %1656 = vmatprep.subr.bf16.mxu0 %v1161
    %1657 = vmatpush1.bf16.msra.mxu0 %v1160
    %1658 = vmatprep.subr.bf16.mxu0 %v1157
    %1659 = vmatpush1.bf16.msra.mxu0 %v1156
    %1660 = vmatprep.subr.bf16.mxu0 %v1153
    %1661 = vmatpush1.bf16.msra.mxu0 %v1152
    %1662 = vmatprep.subr.bf16.mxu0 %v1149
    %1663 = vmatpush1.bf16.msra.mxu0 %v1148
    %1664 = vmatprep.subr.bf16.mxu0 %v1145
    %1665 = vmatpush1.bf16.msra.mxu0 %v1144
    %1666 = vmatprep.subr.bf16.mxu0 %v1141
    %1667 = vmatpush1.bf16.msra.mxu0 %v1140
    %1668 = vmatprep.subr.bf16.mxu0 %v1201
    %1669 = vmatpush2.bf16.msra.mxu0 %v1200
    %1670 = vmatprep.subr.bf16.mxu0 %v1197
    %1671 = vmatpush2.bf16.msra.mxu0 %v1196
    %1672 = vmatprep.subr.bf16.mxu0 %v1193
    %1673 = vmatpush2.bf16.msra.mxu0 %v1192
    %1674 = vmatprep.subr.bf16.mxu0 %v1189
    %1675 = vmatpush2.bf16.msra.mxu0 %v1188
    %1676 = vmatprep.subr.bf16.mxu0 %v1185
    %1677 = vmatpush2.bf16.msra.mxu0 %v1184
    %1678 = vmatprep.subr.bf16.mxu0 %v1181
    %1679 = vmatpush2.bf16.msra.mxu0 %v1180
    %1680 = vmatprep.subr.bf16.mxu0 %v1177
    %1681 = vmatpush2.bf16.msra.mxu0 %v1176
    %1682 = vmatprep.subr.bf16.mxu0 %v1173
    %1683 = vmatpush2.bf16.msra.mxu0 %v1172
    %1684 = vmatprep.mubr.bf16.mxu0 %v87
    %1685 = vmatmul.mubr.bf16.gmra.mxu0 %v86
    %v1686 = vpop.f32.mrf.mxu0
    %v1687 = vadd.f32 %v355, %v1686
    %v1688 = vpop.f32.mrf.mxu0
    %v1689 = vadd.f32 %v359, %v1688
    %v1690 = vpop.f32.mrf.mxu0
    %v1691 = vpop.f32.mrf.mxu0
    %1692 = vdwg.mxu0
    %1693 = vmatprep.subr.bf16.mxu0 %v1233
    %1694 = vmatpush1.bf16.msra.mxu0 %v1232
    %1695 = vmatprep.subr.bf16.mxu0 %v1229
    %1696 = vmatpush1.bf16.msra.mxu0 %v1228
    %1697 = vmatprep.subr.bf16.mxu0 %v1225
    %1698 = vmatpush1.bf16.msra.mxu0 %v1224
    %1699 = vmatprep.subr.bf16.mxu0 %v1221
    %1700 = vmatpush1.bf16.msra.mxu0 %v1220
    %1701 = vmatprep.subr.bf16.mxu0 %v1217
    %1702 = vmatpush1.bf16.msra.mxu0 %v1216
    %1703 = vmatprep.subr.bf16.mxu0 %v1213
    %1704 = vmatpush1.bf16.msra.mxu0 %v1212
    %1705 = vmatprep.subr.bf16.mxu0 %v1209
    %1706 = vmatpush1.bf16.msra.mxu0 %v1208
    %1707 = vmatprep.subr.bf16.mxu0 %v1205
    %1708 = vmatpush1.bf16.msra.mxu0 %v1204
    %1709 = vmatprep.subr.bf16.mxu0 %v1265
    %1710 = vmatpush2.bf16.msra.mxu0 %v1264
    %1711 = vmatprep.subr.bf16.mxu0 %v1261
    %1712 = vmatpush2.bf16.msra.mxu0 %v1260
    %1713 = vmatprep.subr.bf16.mxu0 %v1257
    %1714 = vmatpush2.bf16.msra.mxu0 %v1256
    %1715 = vmatprep.subr.bf16.mxu0 %v1253
    %1716 = vmatpush2.bf16.msra.mxu0 %v1252
    %1717 = vmatprep.subr.bf16.mxu0 %v1249
    %1718 = vmatpush2.bf16.msra.mxu0 %v1248
    %1719 = vmatprep.subr.bf16.mxu0 %v1245
    %1720 = vmatpush2.bf16.msra.mxu0 %v1244
    %1721 = vmatprep.subr.bf16.mxu0 %v1241
    %1722 = vmatpush2.bf16.msra.mxu0 %v1240
    %1723 = vmatprep.subr.bf16.mxu0 %v1237
    %1724 = vmatpush2.bf16.msra.mxu0 %v1236
    %1725 = vmatprep.mubr.bf16.mxu0 %v89
    %1726 = vmatmul.mubr.bf16.gmra.mxu0 %v88
    %v1727 = vpop.f32.mrf.mxu0
    %v1728 = vadd.f32 %v1687, %v1727
    %v1729 = vpop.f32.mrf.mxu0
    %v1730 = vadd.f32 %v1689, %v1729
    %v1731 = vpop.f32.mrf.mxu0
    %v1732 = vpop.f32.mrf.mxu0
    %1733 = vdwg.mxu0
    %1734 = vmatprep.subr.bf16.mxu0 %v1297
    %1735 = vmatpush1.bf16.msra.mxu0 %v1296
    %1736 = vmatprep.subr.bf16.mxu0 %v1293
    %1737 = vmatpush1.bf16.msra.mxu0 %v1292
    %1738 = vmatprep.subr.bf16.mxu0 %v1289
    %1739 = vmatpush1.bf16.msra.mxu0 %v1288
    %1740 = vmatprep.subr.bf16.mxu0 %v1285
    %1741 = vmatpush1.bf16.msra.mxu0 %v1284
    %1742 = vmatprep.subr.bf16.mxu0 %v1281
    %1743 = vmatpush1.bf16.msra.mxu0 %v1280
    %1744 = vmatprep.subr.bf16.mxu0 %v1277
    %1745 = vmatpush1.bf16.msra.mxu0 %v1276
    %1746 = vmatprep.subr.bf16.mxu0 %v1273
    %1747 = vmatpush1.bf16.msra.mxu0 %v1272
    %1748 = vmatprep.subr.bf16.mxu0 %v1269
    %1749 = vmatpush1.bf16.msra.mxu0 %v1268
    %1750 = vmatprep.subr.bf16.mxu0 %v1329
    %1751 = vmatpush2.bf16.msra.mxu0 %v1328
    %1752 = vmatprep.subr.bf16.mxu0 %v1325
    %1753 = vmatpush2.bf16.msra.mxu0 %v1324
    %1754 = vmatprep.subr.bf16.mxu0 %v1321
    %1755 = vmatpush2.bf16.msra.mxu0 %v1320
    %1756 = vmatprep.subr.bf16.mxu0 %v1317
    %1757 = vmatpush2.bf16.msra.mxu0 %v1316
    %1758 = vmatprep.subr.bf16.mxu0 %v1313
    %1759 = vmatpush2.bf16.msra.mxu0 %v1312
    %1760 = vmatprep.subr.bf16.mxu0 %v1309
    %1761 = vmatpush2.bf16.msra.mxu0 %v1308
    %1762 = vmatprep.subr.bf16.mxu0 %v1305
    %1763 = vmatpush2.bf16.msra.mxu0 %v1304
    %1764 = vmatprep.subr.bf16.mxu0 %v1301
    %1765 = vmatpush2.bf16.msra.mxu0 %v1300
    %1766 = vmatprep.mubr.bf16.mxu0 %v91
    %1767 = vmatmul.mubr.bf16.gmra.mxu0 %v90
    %v1768 = vpop.f32.mrf.mxu0
    %v1769 = vadd.f32 %v1728, %v1768
    %v1770 = vpop.f32.mrf.mxu0
    %v1771 = vadd.f32 %v1730, %v1770
    %v1772 = vpop.f32.mrf.mxu0
    %v1773 = vpop.f32.mrf.mxu0
    %1774 = vdwg.mxu0
    %1775 = vmatprep.subr.bf16.mxu0 %v1361
    %1776 = vmatpush1.bf16.msra.mxu0 %v1360
    %1777 = vmatprep.subr.bf16.mxu0 %v1357
    %1778 = vmatpush1.bf16.msra.mxu0 %v1356
    %1779 = vmatprep.subr.bf16.mxu0 %v1353
    %1780 = vmatpush1.bf16.msra.mxu0 %v1352
    %1781 = vmatprep.subr.bf16.mxu0 %v1349
    %1782 = vmatpush1.bf16.msra.mxu0 %v1348
    %1783 = vmatprep.subr.bf16.mxu0 %v1345
    %1784 = vmatpush1.bf16.msra.mxu0 %v1344
    %1785 = vmatprep.subr.bf16.mxu0 %v1341
    %1786 = vmatpush1.bf16.msra.mxu0 %v1340
    %1787 = vmatprep.subr.bf16.mxu0 %v1337
    %1788 = vmatpush1.bf16.msra.mxu0 %v1336
    %1789 = vmatprep.subr.bf16.mxu0 %v1333
    %1790 = vmatpush1.bf16.msra.mxu0 %v1332
    %1791 = vmatprep.subr.bf16.mxu0 %v1393
    %1792 = vmatpush2.bf16.msra.mxu0 %v1392
    %1793 = vmatprep.subr.bf16.mxu0 %v1389
    %1794 = vmatpush2.bf16.msra.mxu0 %v1388
    %1795 = vmatprep.subr.bf16.mxu0 %v1385
    %1796 = vmatpush2.bf16.msra.mxu0 %v1384
    %1797 = vmatprep.subr.bf16.mxu0 %v1381
    %1798 = vmatpush2.bf16.msra.mxu0 %v1380
    %1799 = vmatprep.subr.bf16.mxu0 %v1377
    %1800 = vmatpush2.bf16.msra.mxu0 %v1376
    %1801 = vmatprep.subr.bf16.mxu0 %v1373
    %1802 = vmatpush2.bf16.msra.mxu0 %v1372
    %1803 = vmatprep.subr.bf16.mxu0 %v1369
    %1804 = vmatpush2.bf16.msra.mxu0 %v1368
    %1805 = vmatprep.subr.bf16.mxu0 %v1365
    %1806 = vmatpush2.bf16.msra.mxu0 %v1364
    %1807 = vmatprep.mubr.bf16.mxu0 %v93
    %1808 = vmatmul.mubr.bf16.gmra.mxu0 %v92
    %v1809 = vpop.f32.mrf.mxu0
    %v1810 = vadd.f32 %v1769, %v1809
    %v1811 = vpop.f32.mrf.mxu0
    %v1812 = vadd.f32 %v1771, %v1811
    %v1813 = vpop.f32.mrf.mxu0
    %v1814 = vpop.f32.mrf.mxu0
    %1815 = vdwg.mxu0
    %1816 = vmatprep.subr.bf16.mxu0 %v1171
    %1817 = vmatpush1.bf16.msra.mxu0 %v1170
    %1818 = vmatprep.subr.bf16.mxu0 %v1167
    %1819 = vmatpush1.bf16.msra.mxu0 %v1166
    %1820 = vmatprep.subr.bf16.mxu0 %v1163
    %1821 = vmatpush1.bf16.msra.mxu0 %v1162
    %1822 = vmatprep.subr.bf16.mxu0 %v1159
    %1823 = vmatpush1.bf16.msra.mxu0 %v1158
    %1824 = vmatprep.subr.bf16.mxu0 %v1155
    %1825 = vmatpush1.bf16.msra.mxu0 %v1154
    %1826 = vmatprep.subr.bf16.mxu0 %v1151
    %1827 = vmatpush1.bf16.msra.mxu0 %v1150
    %1828 = vmatprep.subr.bf16.mxu0 %v1147
    %1829 = vmatpush1.bf16.msra.mxu0 %v1146
    %1830 = vmatprep.subr.bf16.mxu0 %v1143
    %1831 = vmatpush1.bf16.msra.mxu0 %v1142
    %1832 = vmatprep.subr.bf16.mxu0 %v1203
    %1833 = vmatpush2.bf16.msra.mxu0 %v1202
    %1834 = vmatprep.subr.bf16.mxu0 %v1199
    %1835 = vmatpush2.bf16.msra.mxu0 %v1198
    %1836 = vmatprep.subr.bf16.mxu0 %v1195
    %1837 = vmatpush2.bf16.msra.mxu0 %v1194
    %1838 = vmatprep.subr.bf16.mxu0 %v1191
    %1839 = vmatpush2.bf16.msra.mxu0 %v1190
    %1840 = vmatprep.subr.bf16.mxu0 %v1187
    %1841 = vmatpush2.bf16.msra.mxu0 %v1186
    %1842 = vmatprep.subr.bf16.mxu0 %v1183
    %1843 = vmatpush2.bf16.msra.mxu0 %v1182
    %1844 = vmatprep.subr.bf16.mxu0 %v1179
    %1845 = vmatpush2.bf16.msra.mxu0 %v1178
    %1846 = vmatprep.subr.bf16.mxu0 %v1175
    %1847 = vmatpush2.bf16.msra.mxu0 %v1174
    %1848 = vmatprep.mubr.bf16.mxu0 %v87
    %1849 = vmatmul.mubr.bf16.gmra.mxu0 %v86
    %v1850 = vpop.f32.mrf.mxu0
    %v1851 = vadd.f32 %v363, %v1850
    %v1852 = vpop.f32.mrf.mxu0
    %v1853 = vadd.f32 %v367, %v1852
    %v1854 = vpop.f32.mrf.mxu0
    %v1855 = vpop.f32.mrf.mxu0
    %1856 = vdwg.mxu0
    %1857 = vmatprep.subr.bf16.mxu0 %v1235
    %1858 = vmatpush1.bf16.msra.mxu0 %v1234
    %1859 = vmatprep.subr.bf16.mxu0 %v1231
    %1860 = vmatpush1.bf16.msra.mxu0 %v1230
    %1861 = vmatprep.subr.bf16.mxu0 %v1227
    %1862 = vmatpush1.bf16.msra.mxu0 %v1226
    %1863 = vmatprep.subr.bf16.mxu0 %v1223
    %1864 = vmatpush1.bf16.msra.mxu0 %v1222
    %1865 = vmatprep.subr.bf16.mxu0 %v1219
    %1866 = vmatpush1.bf16.msra.mxu0 %v1218
    %1867 = vmatprep.subr.bf16.mxu0 %v1215
    %1868 = vmatpush1.bf16.msra.mxu0 %v1214
    %1869 = vmatprep.subr.bf16.mxu0 %v1211
    %1870 = vmatpush1.bf16.msra.mxu0 %v1210
    %1871 = vmatprep.subr.bf16.mxu0 %v1207
    %1872 = vmatpush1.bf16.msra.mxu0 %v1206
    %1873 = vmatprep.subr.bf16.mxu0 %v1267
    %1874 = vmatpush2.bf16.msra.mxu0 %v1266
    %1875 = vmatprep.subr.bf16.mxu0 %v1263
    %1876 = vmatpush2.bf16.msra.mxu0 %v1262
    %1877 = vmatprep.subr.bf16.mxu0 %v1259
    %1878 = vmatpush2.bf16.msra.mxu0 %v1258
    %1879 = vmatprep.subr.bf16.mxu0 %v1255
    %1880 = vmatpush2.bf16.msra.mxu0 %v1254
    %1881 = vmatprep.subr.bf16.mxu0 %v1251
    %1882 = vmatpush2.bf16.msra.mxu0 %v1250
    %1883 = vmatprep.subr.bf16.mxu0 %v1247
    %1884 = vmatpush2.bf16.msra.mxu0 %v1246
    %1885 = vmatprep.subr.bf16.mxu0 %v1243
    %1886 = vmatpush2.bf16.msra.mxu0 %v1242
    %1887 = vmatprep.subr.bf16.mxu0 %v1239
    %1888 = vmatpush2.bf16.msra.mxu0 %v1238
    %1889 = vmatprep.mubr.bf16.mxu0 %v89
    %1890 = vmatmul.mubr.bf16.gmra.mxu0 %v88
    %v1891 = vpop.f32.mrf.mxu0
    %v1892 = vadd.f32 %v1851, %v1891
    %v1893 = vpop.f32.mrf.mxu0
    %v1894 = vadd.f32 %v1853, %v1893
    %v1895 = vpop.f32.mrf.mxu0
    %v1896 = vpop.f32.mrf.mxu0
    %1897 = vdwg.mxu0
    %1898 = vmatprep.subr.bf16.mxu0 %v1299
    %1899 = vmatpush1.bf16.msra.mxu0 %v1298
    %1900 = vmatprep.subr.bf16.mxu0 %v1295
    %1901 = vmatpush1.bf16.msra.mxu0 %v1294
    %1902 = vmatprep.subr.bf16.mxu0 %v1291
    %1903 = vmatpush1.bf16.msra.mxu0 %v1290
    %1904 = vmatprep.subr.bf16.mxu0 %v1287
    %1905 = vmatpush1.bf16.msra.mxu0 %v1286
    %1906 = vmatprep.subr.bf16.mxu0 %v1283
    %1907 = vmatpush1.bf16.msra.mxu0 %v1282
    %1908 = vmatprep.subr.bf16.mxu0 %v1279
    %1909 = vmatpush1.bf16.msra.mxu0 %v1278
    %1910 = vmatprep.subr.bf16.mxu0 %v1275
    %1911 = vmatpush1.bf16.msra.mxu0 %v1274
    %1912 = vmatprep.subr.bf16.mxu0 %v1271
    %1913 = vmatpush1.bf16.msra.mxu0 %v1270
    %1914 = vmatprep.subr.bf16.mxu0 %v1331
    %1915 = vmatpush2.bf16.msra.mxu0 %v1330
    %1916 = vmatprep.subr.bf16.mxu0 %v1327
    %1917 = vmatpush2.bf16.msra.mxu0 %v1326
    %1918 = vmatprep.subr.bf16.mxu0 %v1323
    %1919 = vmatpush2.bf16.msra.mxu0 %v1322
    %1920 = vmatprep.subr.bf16.mxu0 %v1319
    %1921 = vmatpush2.bf16.msra.mxu0 %v1318
    %1922 = vmatprep.subr.bf16.mxu0 %v1315
    %1923 = vmatpush2.bf16.msra.mxu0 %v1314
    %1924 = vmatprep.subr.bf16.mxu0 %v1311
    %1925 = vmatpush2.bf16.msra.mxu0 %v1310
    %1926 = vmatprep.subr.bf16.mxu0 %v1307
    %1927 = vmatpush2.bf16.msra.mxu0 %v1306
    %1928 = vmatprep.subr.bf16.mxu0 %v1303
    %1929 = vmatpush2.bf16.msra.mxu0 %v1302
    %1930 = vmatprep.mubr.bf16.mxu0 %v91
    %1931 = vmatmul.mubr.bf16.gmra.mxu0 %v90
    %v1932 = vpop.f32.mrf.mxu0
    %v1933 = vadd.f32 %v1892, %v1932
    %v1934 = vpop.f32.mrf.mxu0
    %v1935 = vadd.f32 %v1894, %v1934
    %v1936 = vpop.f32.mrf.mxu0
    %v1937 = vpop.f32.mrf.mxu0
    %1938 = vdwg.mxu0
    %1939 = vmatprep.subr.bf16.mxu0 %v1363
    %1940 = vmatpush1.bf16.msra.mxu0 %v1362
    %1941 = vmatprep.subr.bf16.mxu0 %v1359
    %1942 = vmatpush1.bf16.msra.mxu0 %v1358
    %1943 = vmatprep.subr.bf16.mxu0 %v1355
    %1944 = vmatpush1.bf16.msra.mxu0 %v1354
    %1945 = vmatprep.subr.bf16.mxu0 %v1351
    %1946 = vmatpush1.bf16.msra.mxu0 %v1350
    %1947 = vmatprep.subr.bf16.mxu0 %v1347
    %1948 = vmatpush1.bf16.msra.mxu0 %v1346
    %1949 = vmatprep.subr.bf16.mxu0 %v1343
    %1950 = vmatpush1.bf16.msra.mxu0 %v1342
    %1951 = vmatprep.subr.bf16.mxu0 %v1339
    %1952 = vmatpush1.bf16.msra.mxu0 %v1338
    %1953 = vmatprep.subr.bf16.mxu0 %v1335
    %1954 = vmatpush1.bf16.msra.mxu0 %v1334
    %1955 = vmatprep.subr.bf16.mxu0 %v1395
    %1956 = vmatpush2.bf16.msra.mxu0 %v1394
    %1957 = vmatprep.subr.bf16.mxu0 %v1391
    %1958 = vmatpush2.bf16.msra.mxu0 %v1390
    %1959 = vmatprep.subr.bf16.mxu0 %v1387
    %1960 = vmatpush2.bf16.msra.mxu0 %v1386
    %1961 = vmatprep.subr.bf16.mxu0 %v1383
    %1962 = vmatpush2.bf16.msra.mxu0 %v1382
    %1963 = vmatprep.subr.bf16.mxu0 %v1379
    %1964 = vmatpush2.bf16.msra.mxu0 %v1378
    %1965 = vmatprep.subr.bf16.mxu0 %v1375
    %1966 = vmatpush2.bf16.msra.mxu0 %v1374
    %1967 = vmatprep.subr.bf16.mxu0 %v1371
    %1968 = vmatpush2.bf16.msra.mxu0 %v1370
    %1969 = vmatprep.subr.bf16.mxu0 %v1367
    %1970 = vmatpush2.bf16.msra.mxu0 %v1366
    %1971 = vmatprep.mubr.bf16.mxu0 %v93
    %1972 = vmatmul.mubr.bf16.gmra.mxu0 %v92
    %v1973 = vpop.f32.mrf.mxu0
    %v1974 = vadd.f32 %v1933, %v1973
    %v1975 = vpop.f32.mrf.mxu0
    %v1976 = vadd.f32 %v1935, %v1975
    %v1977 = vpop.f32.mrf.mxu0
    %v1978 = vpop.f32.mrf.mxu0
    %1979 = vdwg.mxu0
    %v1980 = vmax.f32 %v1810, 0.0
    %v1981 = vmax.f32 %v1812, 0.0
    %v1982 = vmax.f32 %v1974, 0.0
    %v1983 = vmax.f32 %v1976, 0.0
    %v1984 = vpack.c.bf16 %v1980, %v1980
    %v1985 = vpack.c.bf16 %v1981, %v1981
    %v1986 = vpack.c.bf16 %v1982, %v1982
    %v1987 = vpack.c.bf16 %v1983, %v1983
    %v1988 = vld [vmem:[%s3] sm:$0xff]
    %v1989 = vld [vmem:[%s3 + $0x8] sm:$0xff]
    %v1990 = vld [vmem:[%s3 + $0x10] sm:$0xff]
    %v1991 = vld [vmem:[%s3 + $0x18] sm:$0xff]
    %v1992 = vld [vmem:[%s3 + $0x20] sm:$0xff]
    %v1993 = vld [vmem:[%s3 + $0x28] sm:$0xff]
    %v1994 = vld [vmem:[%s3 + $0x30] sm:$0xff]
    %v1995 = vld [vmem:[%s3 + $0x38] sm:$0xff]
    %v1996 = vld [vmem:[%s3 + $0x40] sm:$0xff]
    %v1997 = vld [vmem:[%s3 + $0x48] sm:$0xff]
    %v1998 = vld [vmem:[%s3 + $0x50] sm:$0xff]
    %v1999 = vld [vmem:[%s3 + $0x58] sm:$0xff]
    %v2000 = vld [vmem:[%s3 + $0x60] sm:$0xff]
    %v2001 = vld [vmem:[%s3 + $0x68] sm:$0xff]
    %v2002 = vld [vmem:[%s3 + $0x70] sm:$0xff]
    %v2003 = vld [vmem:[%s3 + $0x78] sm:$0xff]
    %v2004 = vld [vmem:[%s3 + $0x80] sm:$0xff]
    %v2005 = vld [vmem:[%s3 + $0x88] sm:$0xff]
    %v2006 = vld [vmem:[%s3 + $0x90] sm:$0xff]
    %v2007 = vld [vmem:[%s3 + $0x98] sm:$0xff]
    %v2008 = vld [vmem:[%s3 + $0xa0] sm:$0xff]
    %v2009 = vld [vmem:[%s3 + $0xa8] sm:$0xff]
    %v2010 = vld [vmem:[%s3 + $0xb0] sm:$0xff]
    %v2011 = vld [vmem:[%s3 + $0xb8] sm:$0xff]
    %v2012 = vld [vmem:[%s3 + $0xc0] sm:$0xff]
    %v2013 = vld [vmem:[%s3 + $0xc8] sm:$0xff]
    %v2014 = vld [vmem:[%s3 + $0xd0] sm:$0xff]
    %v2015 = vld [vmem:[%s3 + $0xd8] sm:$0xff]
    %v2016 = vld [vmem:[%s3 + $0xe0] sm:$0xff]
    %v2017 = vld [vmem:[%s3 + $0xe8] sm:$0xff]
    %v2018 = vld [vmem:[%s3 + $0xf0] sm:$0xff]
    %v2019 = vld [vmem:[%s3 + $0xf8] sm:$0xff]
    %v2020 = vld [vmem:[%s3 + $0x100] sm:$0xff]
    %v2021 = vld [vmem:[%s3 + $0x108] sm:$0xff]
    %v2022 = vld [vmem:[%s3 + $0x110] sm:$0xff]
    %v2023 = vld [vmem:[%s3 + $0x118] sm:$0xff]
    %v2024 = vld [vmem:[%s3 + $0x120] sm:$0xff]
    %v2025 = vld [vmem:[%s3 + $0x128] sm:$0xff]
    %v2026 = vld [vmem:[%s3 + $0x130] sm:$0xff]
    %v2027 = vld [vmem:[%s3 + $0x138] sm:$0xff]
    %v2028 = vld [vmem:[%s3 + $0x140] sm:$0xff]
    %v2029 = vld [vmem:[%s3 + $0x148] sm:$0xff]
    %v2030 = vld [vmem:[%s3 + $0x150] sm:$0xff]
    %v2031 = vld [vmem:[%s3 + $0x158] sm:$0xff]
    %v2032 = vld [vmem:[%s3 + $0x160] sm:$0xff]
    %v2033 = vld [vmem:[%s3 + $0x168] sm:$0xff]
    %v2034 = vld [vmem:[%s3 + $0x170] sm:$0xff]
    %v2035 = vld [vmem:[%s3 + $0x178] sm:$0xff]
    %v2036 = vld [vmem:[%s3 + $0x180] sm:$0xff]
    %v2037 = vld [vmem:[%s3 + $0x188] sm:$0xff]
    %v2038 = vld [vmem:[%s3 + $0x190] sm:$0xff]
    %v2039 = vld [vmem:[%s3 + $0x198] sm:$0xff]
    %v2040 = vld [vmem:[%s3 + $0x1a0] sm:$0xff]
    %v2041 = vld [vmem:[%s3 + $0x1a8] sm:$0xff]
    %v2042 = vld [vmem:[%s3 + $0x1b0] sm:$0xff]
    %v2043 = vld [vmem:[%s3 + $0x1b8] sm:$0xff]
    %v2044 = vld [vmem:[%s3 + $0x1c0] sm:$0xff]
    %v2045 = vld [vmem:[%s3 + $0x1c8] sm:$0xff]
    %v2046 = vld [vmem:[%s3 + $0x1d0] sm:$0xff]
    %v2047 = vld [vmem:[%s3 + $0x1d8] sm:$0xff]
    %v2048 = vld [vmem:[%s3 + $0x1e0] sm:$0xff]
    %v2049 = vld [vmem:[%s3 + $0x1e8] sm:$0xff]
    %v2050 = vld [vmem:[%s3 + $0x1f0] sm:$0xff]
    %v2051 = vld [vmem:[%s3 + $0x1f8] sm:$0xff]
    %v2052 = vld [vmem:[%s4] sm:$0x3]
    %v2054 = vlaneseq
    %v2055 = vshrl.u32 %v2054, 7
    %v2056 = vsub.s32 0, %v2055
    %v2057 = vrot.slane %v2052, %v2056
    %v2058 = vlaneseq
    %v2059 = vshrl.u32 %v2058, 7
    %v2060 = vsub.s32 1, %v2059
    %v2061 = vrot.slane %v2052, %v2060
    %v2128 = vunpack.c.l.b16 %v1988
    %v2129 = vunpack.c.h.b16 %v1988
    %v2130 = vunpack.c.l.b16 %v1989
    %v2131 = vunpack.c.h.b16 %v1989
    %v2132 = vunpack.c.l.b16 %v1990
    %v2133 = vunpack.c.h.b16 %v1990
    %v2134 = vunpack.c.l.b16 %v1991
    %v2135 = vunpack.c.h.b16 %v1991
    %v2136 = vunpack.c.l.b16 %v1992
    %v2137 = vunpack.c.h.b16 %v1992
    %v2138 = vunpack.c.l.b16 %v1993
    %v2139 = vunpack.c.h.b16 %v1993
    %v2140 = vunpack.c.l.b16 %v1994
    %v2141 = vunpack.c.h.b16 %v1994
    %v2142 = vunpack.c.l.b16 %v1995
    %v2143 = vunpack.c.h.b16 %v1995
    %v2144 = vunpack.c.l.b16 %v1996
    %v2145 = vunpack.c.h.b16 %v1996
    %v2146 = vunpack.c.l.b16 %v1997
    %v2147 = vunpack.c.h.b16 %v1997
    %v2148 = vunpack.c.l.b16 %v1998
    %v2149 = vunpack.c.h.b16 %v1998
    %v2150 = vunpack.c.l.b16 %v1999
    %v2151 = vunpack.c.h.b16 %v1999
    %v2152 = vunpack.c.l.b16 %v2000
    %v2153 = vunpack.c.h.b16 %v2000
    %v2154 = vunpack.c.l.b16 %v2001
    %v2155 = vunpack.c.h.b16 %v2001
    %v2156 = vunpack.c.l.b16 %v2002
    %v2157 = vunpack.c.h.b16 %v2002
    %v2158 = vunpack.c.l.b16 %v2003
    %v2159 = vunpack.c.h.b16 %v2003
    %v2160 = vunpack.c.l.b16 %v2004
    %v2161 = vunpack.c.h.b16 %v2004
    %v2162 = vunpack.c.l.b16 %v2005
    %v2163 = vunpack.c.h.b16 %v2005
    %v2164 = vunpack.c.l.b16 %v2006
    %v2165 = vunpack.c.h.b16 %v2006
    %v2166 = vunpack.c.l.b16 %v2007
    %v2167 = vunpack.c.h.b16 %v2007
    %v2168 = vunpack.c.l.b16 %v2008
    %v2169 = vunpack.c.h.b16 %v2008
    %v2170 = vunpack.c.l.b16 %v2009
    %v2171 = vunpack.c.h.b16 %v2009
    %v2172 = vunpack.c.l.b16 %v2010
    %v2173 = vunpack.c.h.b16 %v2010
    %v2174 = vunpack.c.l.b16 %v2011
    %v2175 = vunpack.c.h.b16 %v2011
    %v2176 = vunpack.c.l.b16 %v2012
    %v2177 = vunpack.c.h.b16 %v2012
    %v2178 = vunpack.c.l.b16 %v2013
    %v2179 = vunpack.c.h.b16 %v2013
    %v2180 = vunpack.c.l.b16 %v2014
    %v2181 = vunpack.c.h.b16 %v2014
    %v2182 = vunpack.c.l.b16 %v2015
    %v2183 = vunpack.c.h.b16 %v2015
    %v2184 = vunpack.c.l.b16 %v2016
    %v2185 = vunpack.c.h.b16 %v2016
    %v2186 = vunpack.c.l.b16 %v2017
    %v2187 = vunpack.c.h.b16 %v2017
    %v2188 = vunpack.c.l.b16 %v2018
    %v2189 = vunpack.c.h.b16 %v2018
    %v2190 = vunpack.c.l.b16 %v2019
    %v2191 = vunpack.c.h.b16 %v2019
    %v2192 = vunpack.c.l.b16 %v2020
    %v2193 = vunpack.c.h.b16 %v2020
    %v2194 = vunpack.c.l.b16 %v2021
    %v2195 = vunpack.c.h.b16 %v2021
    %v2196 = vunpack.c.l.b16 %v2022
    %v2197 = vunpack.c.h.b16 %v2022
    %v2198 = vunpack.c.l.b16 %v2023
    %v2199 = vunpack.c.h.b16 %v2023
    %v2200 = vunpack.c.l.b16 %v2024
    %v2201 = vunpack.c.h.b16 %v2024
    %v2202 = vunpack.c.l.b16 %v2025
    %v2203 = vunpack.c.h.b16 %v2025
    %v2204 = vunpack.c.l.b16 %v2026
    %v2205 = vunpack.c.h.b16 %v2026
    %v2206 = vunpack.c.l.b16 %v2027
    %v2207 = vunpack.c.h.b16 %v2027
    %v2208 = vunpack.c.l.b16 %v2028
    %v2209 = vunpack.c.h.b16 %v2028
    %v2210 = vunpack.c.l.b16 %v2029
    %v2211 = vunpack.c.h.b16 %v2029
    %v2212 = vunpack.c.l.b16 %v2030
    %v2213 = vunpack.c.h.b16 %v2030
    %v2214 = vunpack.c.l.b16 %v2031
    %v2215 = vunpack.c.h.b16 %v2031
    %v2216 = vunpack.c.l.b16 %v2032
    %v2217 = vunpack.c.h.b16 %v2032
    %v2218 = vunpack.c.l.b16 %v2033
    %v2219 = vunpack.c.h.b16 %v2033
    %v2220 = vunpack.c.l.b16 %v2034
    %v2221 = vunpack.c.h.b16 %v2034
    %v2222 = vunpack.c.l.b16 %v2035
    %v2223 = vunpack.c.h.b16 %v2035
    %v2224 = vunpack.c.l.b16 %v2036
    %v2225 = vunpack.c.h.b16 %v2036
    %v2226 = vunpack.c.l.b16 %v2037
    %v2227 = vunpack.c.h.b16 %v2037
    %v2228 = vunpack.c.l.b16 %v2038
    %v2229 = vunpack.c.h.b16 %v2038
    %v2230 = vunpack.c.l.b16 %v2039
    %v2231 = vunpack.c.h.b16 %v2039
    %v2232 = vunpack.c.l.b16 %v2040
    %v2233 = vunpack.c.h.b16 %v2040
    %v2234 = vunpack.c.l.b16 %v2041
    %v2235 = vunpack.c.h.b16 %v2041
    %v2236 = vunpack.c.l.b16 %v2042
    %v2237 = vunpack.c.h.b16 %v2042
    %v2238 = vunpack.c.l.b16 %v2043
    %v2239 = vunpack.c.h.b16 %v2043
    %v2240 = vunpack.c.l.b16 %v2044
    %v2241 = vunpack.c.h.b16 %v2044
    %v2242 = vunpack.c.l.b16 %v2045
    %v2243 = vunpack.c.h.b16 %v2045
    %v2244 = vunpack.c.l.b16 %v2046
    %v2245 = vunpack.c.h.b16 %v2046
    %v2246 = vunpack.c.l.b16 %v2047
    %v2247 = vunpack.c.h.b16 %v2047
    %v2248 = vunpack.c.l.b16 %v2048
    %v2249 = vunpack.c.h.b16 %v2048
    %v2250 = vunpack.c.l.b16 %v2049
    %v2251 = vunpack.c.h.b16 %v2049
    %v2252 = vunpack.c.l.b16 %v2050
    %v2253 = vunpack.c.h.b16 %v2050
    %v2254 = vunpack.c.l.b16 %v2051
    %v2255 = vunpack.c.h.b16 %v2051
    %v2256 = vpack.c.b16 %v2130, %v2128
    %v2257 = vpack.c.b16 %v2131, %v2129
    %v2258 = vpack.c.b16 %v2134, %v2132
    %v2259 = vpack.c.b16 %v2135, %v2133
    %v2260 = vpack.c.b16 %v2138, %v2136
    %v2261 = vpack.c.b16 %v2139, %v2137
    %v2262 = vpack.c.b16 %v2142, %v2140
    %v2263 = vpack.c.b16 %v2143, %v2141
    %v2264 = vpack.c.b16 %v2146, %v2144
    %v2265 = vpack.c.b16 %v2147, %v2145
    %v2266 = vpack.c.b16 %v2150, %v2148
    %v2267 = vpack.c.b16 %v2151, %v2149
    %v2268 = vpack.c.b16 %v2154, %v2152
    %v2269 = vpack.c.b16 %v2155, %v2153
    %v2270 = vpack.c.b16 %v2158, %v2156
    %v2271 = vpack.c.b16 %v2159, %v2157
    %v2272 = vpack.c.b16 %v2162, %v2160
    %v2273 = vpack.c.b16 %v2163, %v2161
    %v2274 = vpack.c.b16 %v2166, %v2164
    %v2275 = vpack.c.b16 %v2167, %v2165
    %v2276 = vpack.c.b16 %v2170, %v2168
    %v2277 = vpack.c.b16 %v2171, %v2169
    %v2278 = vpack.c.b16 %v2174, %v2172
    %v2279 = vpack.c.b16 %v2175, %v2173
    %v2280 = vpack.c.b16 %v2178, %v2176
    %v2281 = vpack.c.b16 %v2179, %v2177
    %v2282 = vpack.c.b16 %v2182, %v2180
    %v2283 = vpack.c.b16 %v2183, %v2181
    %v2284 = vpack.c.b16 %v2186, %v2184
    %v2285 = vpack.c.b16 %v2187, %v2185
    %v2286 = vpack.c.b16 %v2190, %v2188
    %v2287 = vpack.c.b16 %v2191, %v2189
    %v2288 = vpack.c.b16 %v2194, %v2192
    %v2289 = vpack.c.b16 %v2195, %v2193
    %v2290 = vpack.c.b16 %v2198, %v2196
    %v2291 = vpack.c.b16 %v2199, %v2197
    %v2292 = vpack.c.b16 %v2202, %v2200
    %v2293 = vpack.c.b16 %v2203, %v2201
    %v2294 = vpack.c.b16 %v2206, %v2204
    %v2295 = vpack.c.b16 %v2207, %v2205
    %v2296 = vpack.c.b16 %v2210, %v2208
    %v2297 = vpack.c.b16 %v2211, %v2209
    %v2298 = vpack.c.b16 %v2214, %v2212
    %v2299 = vpack.c.b16 %v2215, %v2213
    %v2300 = vpack.c.b16 %v2218, %v2216
    %v2301 = vpack.c.b16 %v2219, %v2217
    %v2302 = vpack.c.b16 %v2222, %v2220
    %v2303 = vpack.c.b16 %v2223, %v2221
    %v2304 = vpack.c.b16 %v2226, %v2224
    %v2305 = vpack.c.b16 %v2227, %v2225
    %v2306 = vpack.c.b16 %v2230, %v2228
    %v2307 = vpack.c.b16 %v2231, %v2229
    %v2308 = vpack.c.b16 %v2234, %v2232
    %v2309 = vpack.c.b16 %v2235, %v2233
    %v2310 = vpack.c.b16 %v2238, %v2236
    %v2311 = vpack.c.b16 %v2239, %v2237
    %v2312 = vpack.c.b16 %v2242, %v2240
    %v2313 = vpack.c.b16 %v2243, %v2241
    %v2314 = vpack.c.b16 %v2246, %v2244
    %v2315 = vpack.c.b16 %v2247, %v2245
    %v2316 = vpack.c.b16 %v2250, %v2248
    %v2317 = vpack.c.b16 %v2251, %v2249
    %v2318 = vpack.c.b16 %v2254, %v2252
    %v2319 = vpack.c.b16 %v2255, %v2253
    %2384 = vmatprep.subr.bf16.mxu0 %v2271
    %2385 = vmatpush1.bf16.msra.mxu0 %v2270
    %2386 = vmatprep.subr.bf16.mxu0 %v2269
    %2387 = vmatpush1.bf16.msra.mxu0 %v2268
    %2388 = vmatprep.subr.bf16.mxu0 %v2267
    %2389 = vmatpush1.bf16.msra.mxu0 %v2266
    %2390 = vmatprep.subr.bf16.mxu0 %v2265
    %2391 = vmatpush1.bf16.msra.mxu0 %v2264
    %2392 = vmatprep.subr.bf16.mxu0 %v2263
    %2393 = vmatpush1.bf16.msra.mxu0 %v2262
    %2394 = vmatprep.subr.bf16.mxu0 %v2261
    %2395 = vmatpush1.bf16.msra.mxu0 %v2260
    %2396 = vmatprep.subr.bf16.mxu0 %v2259
    %2397 = vmatpush1.bf16.msra.mxu0 %v2258
    %2398 = vmatprep.subr.bf16.mxu0 %v2257
    %2399 = vmatpush1.bf16.msra.mxu0 %v2256
    %2400 = vmatprep.subr.bf16.mxu0 %v2287
    %2401 = vmatpush2.bf16.msra.mxu0 %v2286
    %2402 = vmatprep.subr.bf16.mxu0 %v2285
    %2403 = vmatpush2.bf16.msra.mxu0 %v2284
    %2404 = vmatprep.subr.bf16.mxu0 %v2283
    %2405 = vmatpush2.bf16.msra.mxu0 %v2282
    %2406 = vmatprep.subr.bf16.mxu0 %v2281
    %2407 = vmatpush2.bf16.msra.mxu0 %v2280
    %2408 = vmatprep.subr.bf16.mxu0 %v2279
    %2409 = vmatpush2.bf16.msra.mxu0 %v2278
    %2410 = vmatprep.subr.bf16.mxu0 %v2277
    %2411 = vmatpush2.bf16.msra.mxu0 %v2276
    %2412 = vmatprep.subr.bf16.mxu0 %v2275
    %2413 = vmatpush2.bf16.msra.mxu0 %v2274
    %2414 = vmatprep.subr.bf16.mxu0 %v2273
    %2415 = vmatpush2.bf16.msra.mxu0 %v2272
    %2416 = vmatprep.mubr.bf16.mxu0 %v1985
    %2417 = vmatmul.mubr.bf16.gmra.mxu0 %v1984
    %v2418 = vpop.f32.mrf.mxu0
    %v2419 = vadd.f32 %v2057, %v2418
    %v2420 = vpop.f32.mrf.mxu0
    %v2421 = vadd.f32 %v2061, %v2420
    %v2422 = vpop.f32.mrf.mxu0
    %v2423 = vpop.f32.mrf.mxu0
    %2424 = vdwg.mxu0
    %2425 = vmatprep.subr.bf16.mxu0 %v2303
    %2426 = vmatpush1.bf16.msra.mxu0 %v2302
    %2427 = vmatprep.subr.bf16.mxu0 %v2301
    %2428 = vmatpush1.bf16.msra.mxu0 %v2300
    %2429 = vmatprep.subr.bf16.mxu0 %v2299
    %2430 = vmatpush1.bf16.msra.mxu0 %v2298
    %2431 = vmatprep.subr.bf16.mxu0 %v2297
    %2432 = vmatpush1.bf16.msra.mxu0 %v2296
    %2433 = vmatprep.subr.bf16.mxu0 %v2295
    %2434 = vmatpush1.bf16.msra.mxu0 %v2294
    %2435 = vmatprep.subr.bf16.mxu0 %v2293
    %2436 = vmatpush1.bf16.msra.mxu0 %v2292
    %2437 = vmatprep.subr.bf16.mxu0 %v2291
    %2438 = vmatpush1.bf16.msra.mxu0 %v2290
    %2439 = vmatprep.subr.bf16.mxu0 %v2289
    %2440 = vmatpush1.bf16.msra.mxu0 %v2288
    %2441 = vmatprep.subr.bf16.mxu0 %v2319
    %2442 = vmatpush2.bf16.msra.mxu0 %v2318
    %2443 = vmatprep.subr.bf16.mxu0 %v2317
    %2444 = vmatpush2.bf16.msra.mxu0 %v2316
    %2445 = vmatprep.subr.bf16.mxu0 %v2315
    %2446 = vmatpush2.bf16.msra.mxu0 %v2314
    %2447 = vmatprep.subr.bf16.mxu0 %v2313
    %2448 = vmatpush2.bf16.msra.mxu0 %v2312
    %2449 = vmatprep.subr.bf16.mxu0 %v2311
    %2450 = vmatpush2.bf16.msra.mxu0 %v2310
    %2451 = vmatprep.subr.bf16.mxu0 %v2309
    %2452 = vmatpush2.bf16.msra.mxu0 %v2308
    %2453 = vmatprep.subr.bf16.mxu0 %v2307
    %2454 = vmatpush2.bf16.msra.mxu0 %v2306
    %2455 = vmatprep.subr.bf16.mxu0 %v2305
    %2456 = vmatpush2.bf16.msra.mxu0 %v2304
    %2457 = vmatprep.mubr.bf16.mxu0 %v1987
    %2458 = vmatmul.mubr.bf16.gmra.mxu0 %v1986
    %v2459 = vpop.f32.mrf.mxu0
    %v2460 = vadd.f32 %v2419, %v2459
    %v2461 = vpop.f32.mrf.mxu0
    %v2462 = vadd.f32 %v2421, %v2461
    %v2463 = vpop.f32.mrf.mxu0
    %v2464 = vpop.f32.mrf.mxu0
    %2465 = vdwg.mxu0
    %v2466 = vmax.f32 %v2460, 0.0
    %v2467 = vmax.f32 %v2462, 0.0
    %v2468 = vld [vmem:[%s5] sm:$0xff]
    %v2469 = vld [vmem:[%s5 + $0x8] sm:$0xff]
    %v2470 = vld [vmem:[%s5 + $0x10] sm:$0xff]
    %v2471 = vld [vmem:[%s5 + $0x18] sm:$0xff]
    %v2472 = vld [vmem:[%s5 + $0x20] sm:$0xff]
    %v2473 = vld [vmem:[%s5 + $0x28] sm:$0xff]
    %v2474 = vld [vmem:[%s5 + $0x30] sm:$0xff]
    %v2475 = vld [vmem:[%s5 + $0x38] sm:$0xff]
    %v2476 = vld [vmem:[%s5 + $0x40] sm:$0xff]
    %v2477 = vld [vmem:[%s5 + $0x48] sm:$0xff]
    %v2478 = vld [vmem:[%s5 + $0x50] sm:$0xff]
    %v2479 = vld [vmem:[%s5 + $0x58] sm:$0xff]
    %v2480 = vld [vmem:[%s5 + $0x60] sm:$0xff]
    %v2481 = vld [vmem:[%s5 + $0x68] sm:$0xff]
    %v2482 = vld [vmem:[%s5 + $0x70] sm:$0xff]
    %v2483 = vld [vmem:[%s5 + $0x78] sm:$0xff]
    %v2484 = vld [vmem:[%s5 + $0x80] sm:$0xff]
    %v2485 = vld [vmem:[%s5 + $0x88] sm:$0xff]
    %v2486 = vld [vmem:[%s5 + $0x90] sm:$0xff]
    %v2487 = vld [vmem:[%s5 + $0x98] sm:$0xff]
    %v2488 = vld [vmem:[%s5 + $0xa0] sm:$0xff]
    %v2489 = vld [vmem:[%s5 + $0xa8] sm:$0xff]
    %v2490 = vld [vmem:[%s5 + $0xb0] sm:$0xff]
    %v2491 = vld [vmem:[%s5 + $0xb8] sm:$0xff]
    %v2492 = vld [vmem:[%s5 + $0xc0] sm:$0xff]
    %v2493 = vld [vmem:[%s5 + $0xc8] sm:$0xff]
    %v2494 = vld [vmem:[%s5 + $0xd0] sm:$0xff]
    %v2495 = vld [vmem:[%s5 + $0xd8] sm:$0xff]
    %v2496 = vld [vmem:[%s5 + $0xe0] sm:$0xff]
    %v2497 = vld [vmem:[%s5 + $0xe8] sm:$0xff]
    %v2498 = vld [vmem:[%s5 + $0xf0] sm:$0xff]
    %v2499 = vld [vmem:[%s5 + $0xf8] sm:$0xff]
    %v2500 = vld [vmem:[%s6] sm:$0x1]
    %v2502 = vlaneseq
    %v2503 = vshrl.u32 %v2502, 7
    %v2504 = vsub.s32 0, %v2503
    %v2505 = vrot.slane %v2500, %v2504
    %2507 = vmatprep.subr.mxu0 0.0
    %2508 = vmatpush1.msra.mxu0 %v2483
    %2509 = vmatprep.subr.mxu0 0.0
    %2510 = vmatpush1.msra.mxu0 %v2482
    %2511 = vmatprep.subr.mxu0 0.0
    %2512 = vmatpush1.msra.mxu0 %v2481
    %2513 = vmatprep.subr.mxu0 0.0
    %2514 = vmatpush1.msra.mxu0 %v2480
    %2515 = vmatprep.subr.mxu0 0.0
    %2516 = vmatpush1.msra.mxu0 %v2479
    %2517 = vmatprep.subr.mxu0 0.0
    %2518 = vmatpush1.msra.mxu0 %v2478
    %2519 = vmatprep.subr.mxu0 0.0
    %2520 = vmatpush1.msra.mxu0 %v2477
    %2521 = vmatprep.subr.mxu0 0.0
    %2522 = vmatpush1.msra.mxu0 %v2476
    %2523 = vmatprep.subr.mxu0 0.0
    %2524 = vmatpush1.msra.mxu0 %v2475
    %2525 = vmatprep.subr.mxu0 0.0
    %2526 = vmatpush1.msra.mxu0 %v2474
    %2527 = vmatprep.subr.mxu0 0.0
    %2528 = vmatpush1.msra.mxu0 %v2473
    %2529 = vmatprep.subr.mxu0 0.0
    %2530 = vmatpush1.msra.mxu0 %v2472
    %2531 = vmatprep.subr.mxu0 0.0
    %2532 = vmatpush1.msra.mxu0 %v2471
    %2533 = vmatprep.subr.mxu0 0.0
    %2534 = vmatpush1.msra.mxu0 %v2470
    %2535 = vmatprep.subr.mxu0 0.0
    %2536 = vmatpush1.msra.mxu0 %v2469
    %2537 = vmatprep.subr.mxu0 0.0
    %2538 = vmatpush1.msra.mxu0 %v2468
    %2539 = vmatprep.subr.mxu0 0.0
    %2540 = vmatpush2.msra.mxu0 %v2499
    %2541 = vmatprep.subr.mxu0 0.0
    %2542 = vmatpush2.msra.mxu0 %v2498
    %2543 = vmatprep.subr.mxu0 0.0
    %2544 = vmatpush2.msra.mxu0 %v2497
    %2545 = vmatprep.subr.mxu0 0.0
    %2546 = vmatpush2.msra.mxu0 %v2496
    %2547 = vmatprep.subr.mxu0 0.0
    %2548 = vmatpush2.msra.mxu0 %v2495
    %2549 = vmatprep.subr.mxu0 0.0
    %2550 = vmatpush2.msra.mxu0 %v2494
    %2551 = vmatprep.subr.mxu0 0.0
    %2552 = vmatpush2.msra.mxu0 %v2493
    %2553 = vmatprep.subr.mxu0 0.0
    %2554 = vmatpush2.msra.mxu0 %v2492
    %2555 = vmatprep.subr.mxu0 0.0
    %2556 = vmatpush2.msra.mxu0 %v2491
    %2557 = vmatprep.subr.mxu0 0.0
    %2558 = vmatpush2.msra.mxu0 %v2490
    %2559 = vmatprep.subr.mxu0 0.0
    %2560 = vmatpush2.msra.mxu0 %v2489
    %2561 = vmatprep.subr.mxu0 0.0
    %2562 = vmatpush2.msra.mxu0 %v2488
    %2563 = vmatprep.subr.mxu0 0.0
    %2564 = vmatpush2.msra.mxu0 %v2487
    %2565 = vmatprep.subr.mxu0 0.0
    %2566 = vmatpush2.msra.mxu0 %v2486
    %2567 = vmatprep.subr.mxu0 0.0
    %2568 = vmatpush2.msra.mxu0 %v2485
    %2569 = vmatprep.subr.mxu0 0.0
    %2570 = vmatpush2.msra.mxu0 %v2484
    %2571 = vmatprep.mubr.f32.mxu0 %v2467
    %2572 = vmatmul.mubr.f32.gmra.mxu0 %v2466
    %v2573 = vpop.f32.mrf.mxu0
    %v2574 = vadd.f32 %v2505, %v2573
    %v2575 = vpop.f32.mrf.mxu0
    %2576 = vdwg.mxu0
    %vm2577 = vcmask 66560
    %2578 = vst.msk [vmem:[%s7] sm:$0x3] %vm2577, %v2574
    // Predicated region
    $region34: #{stn3d_forward.3} parent=1 // pred_check
      _
    $region35: #{stn3d_forward.3} parent=1 // pred_check_branch
      %2580 = sbr.rel (0) target = $region37
    $region36: #{stn3d_forward.3} parent=1 // pred_region
      _
    $region37: #{stn3d_forward.3} parent=1 // pred_fallthru
      _
    // Predicated region
    $region38: #{stn3d_forward.3} parent=1 // pred_check
      _
    $region39: #{stn3d_forward.3} parent=1 // pred_check_branch
      %2582 = sbr.rel (0) target = $region41
    $region40: #{stn3d_forward.3} parent=1 // pred_region
      _
    $region41: #{stn3d_forward.3} parent=1 // pred_fallthru
      _
    %2583 = vsyncpa [#allocation3], 1

</llo_original>
